<compile_context>
chip_gen: v6e
topology: v6e:2x2x1
jax: 0.10.0
libtpu: 0.0.40
codegen_flags: <defaults>
</compile_context>

<pallas_src>
import math

import jax
import jax.numpy as jnp
from jax.experimental import pallas as pl
from jax.experimental.pallas import tpu as pltpu

# ----------------------------- config -----------------------------
B = 2            # batch
N = 8            # num nodes
D = 32           # d_model
H = 4            # num heads
DK = D // H      # head dim
FF = 4 * D       # d_ff (ff_factor = 4)
NODE_ROWS = B * N            # 16 node rows
GRAPH_ROWS = B * N * N       # 128 relation rows
ROWS = NODE_ROWS + GRAPH_ROWS  # 144 rows of the merged residual stream


def _layer_norm(v, gamma, beta, eps=1e-5):
    mu = jnp.mean(v, axis=-1, keepdims=True)
    var = jnp.mean((v - mu) ** 2, axis=-1, keepdims=True)
    return (v - mu) * jax.lax.rsqrt(var + eps) * gamma + beta


def rel_transformer_kernel(stream_ref, maskb_ref, hm_ref,
                           Wproj_ref, bproj_ref, Wpost_ref, bpost_ref,
                           W1_ref, b1_ref, W2_ref, b2_ref,
                           gb_ref, out_ref):
    stream = stream_ref[...]        # (ROWS, D): node rows (B*N) then graph rows (B*N*N)
    maskb = maskb_ref[...]          # (B, N, N, D) additive mask (-1e9 where masked)
    hm = hm_ref[...]                # (D, D) block-diag head indicator * 1/sqrt(d_k)

    # Row-type selector: first NODE_ROWS rows are the node stream.
    is_node = jax.lax.broadcasted_iota(jnp.int32, (ROWS, 1), 0) < NODE_ROWS

    def lin(v, W_ref, b_ref):
        return jnp.dot(v, W_ref[...], preferred_element_type=jnp.float32) + b_ref[...]

    # ---- fused q/k/v + relation_key/value projections: ONE matmul ----
    proj = lin(stream, Wproj_ref, bproj_ref)            # (ROWS, 5D)
    qkv = proj[:NODE_ROWS, :3 * D]                      # (B*N, 3D)   node rows use cols 0:3D
    q = qkv[:, :D].reshape(B, N, D)
    k = qkv[:, D:2 * D].reshape(B, N, D)
    v = qkv[:, 2 * D:].reshape(B, N, D)
    rel = proj[NODE_ROWS:, 3 * D:]                      # (B*N*N, 2D) graph rows use cols 3D:5D
    gk = rel[:, :D].reshape(B, N, N, D)                 # relation_key_map
    gv = rel[:, D:].reshape(B, N, N, D)                 # relation_value_map

    # ---- all-head attention at full D lane width (head-replicated scores) ----
    kq = q[:, :, None, :] * (k[:, None, :, :] + gk)                     # (B, N, N, D)
    s = jnp.dot(kq.reshape(B * N * N, D), hm,
                preferred_element_type=jnp.float32).reshape(B, N, N, D)  # scaled, head-replicated
    s = s + maskb                                                        # additive -1e9 mask
    m = jnp.max(s, axis=2, keepdims=True)                                # softmax over y
    e = jnp.exp(s - m)
    p = e / jnp.sum(e, axis=2, keepdims=True)                            # exact divide
    xa = jnp.sum(p * (v[:, None, :, :] + gv), axis=2)                    # (B, N, D)
    xa = xa.reshape(NODE_ROWS, D)

    # ---- fused output / left / right projections: ONE matmul ----
    post = lin(xa, Wpost_ref, bpost_ref)                 # (B*N, 3D)
    attn_out = post[:, :D]
    x_left = post[:, D:2 * D].reshape(B, N, D)
    x_right = post[:, 2 * D:].reshape(B, N, D)
    bg2 = (x_left[:, :, None, :] + x_right[:, None, :, :]).reshape(GRAPH_ROWS, D)
    update = jnp.concatenate([attn_out, bg2], axis=0)    # (ROWS, D)

    # Row-blocked LayerNorm (node rows use norm1/norm2, graph rows norm_graph1/2).
    def ln(val, node_idx, graph_idx):
        gamma = jnp.where(is_node, gb_ref[0, node_idx], gb_ref[0, graph_idx])
        beta = jnp.where(is_node, gb_ref[1, node_idx], gb_ref[1, graph_idx])
        return _layer_norm(val, gamma, beta)

    y1 = ln(stream + update, 0, 2)                       # residual + norm1 / norm_graph1

    # ---- merged node+graph FFN: 2 matmuls for both streams ----
    h = jnp.maximum(lin(y1, W1_ref, b1_ref), 0.0)        # (ROWS, 2FF)
    o2 = lin(h, W2_ref, b2_ref)                          # (ROWS, 2D), block-diagonal W2
    ffn = jnp.where(is_node, o2[:, :D], o2[:, D:])       # pick the correct half per row

    out_ref[...] = ln(y1 + ffn, 1, 3)                    # residual + norm2 / norm_graph2


def relation_transformer_layer(x, bg, mask_f, params):
    Wdd, bdd, Wdf, bf, Wfd, bd2, gam, bet = params

    # --- wrapper-side weight/bias fusion (trace-time constants, free) ---
    # W_dd layout: 0=Wq 1=Wk 2=Wv 3=Wout 4=Wrel_k 5=Wrel_v 6=Wleft 7=Wright
    Wproj = jnp.concatenate([Wdd[0], Wdd[1], Wdd[2], Wdd[4], Wdd[5]], axis=1)   # (D, 5D)
    bproj = jnp.concatenate([bdd[0], bdd[1], bdd[2], bdd[4], bdd[5]], axis=1)   # (1, 5D)
    Wpost = jnp.concatenate([Wdd[3], Wdd[6], Wdd[7]], axis=1)                   # (D, 3D)
    bpost = jnp.concatenate([bdd[3], bdd[6], bdd[7]], axis=1)                   # (1, 3D)
    W1cat = jnp.concatenate([Wdf[0], Wdf[1]], axis=1)                           # (D, 2FF)
    b1cat = jnp.concatenate([bf[0], bf[1]], axis=1)                             # (1, 2FF)
    zblk = jnp.zeros((FF, D), jnp.float32)
    W2cat = jnp.concatenate(
        [jnp.concatenate([Wfd[0], zblk], axis=1),
         jnp.concatenate([zblk, Wfd[1]], axis=1)], axis=0)                      # (2FF, 2D) block-diag
    b2cat = jnp.concatenate([bd2[0], bd2[1]], axis=1)                           # (1, 2D)
    gb = jnp.stack([gam, bet], axis=0)                                          # (2, 4, 1, D)

    # Block-diagonal head indicator with 1/sqrt(d_k) folded in.
    head_ids = jnp.arange(D, dtype=jnp.int32) // DK
    hm_scaled = (head_ids[:, None] == head_ids[None, :]).astype(jnp.float32) / math.sqrt(DK)

    # HBM-side layout plumbing (free): merged residual stream + additive mask.
    stream_in = jnp.concatenate(
        [x.reshape(NODE_ROWS, D), bg.reshape(GRAPH_ROWS, D)], axis=0)           # (ROWS, D)
    mask_bias = jnp.broadcast_to((mask_f * -1e9)[:, :, :, None], (B, N, N, D))

    args = (stream_in, mask_bias, hm_scaled, Wproj, bproj, Wpost, bpost,
            W1cat, b1cat, W2cat, b2cat, gb)

    def full(a):
        nd = a.ndim
        return pl.BlockSpec(a.shape, lambda i, _nd=nd: (0,) * _nd)

    # Single grid step: batch is folded into the row dimension (best for 1-TC
    # v5e/v6e).  v7x alternative: grid=(B,) with dimension_semantics=("parallel",)
    # to put one batch on each TensorCore — benchmark before switching.
    stream_out = pl.pallas_call(
        rel_transformer_kernel,
        out_shape=jax.ShapeDtypeStruct((ROWS, D), jnp.float32),
        grid=(1,),
        in_specs=[full(a) for a in args],
        out_specs=pl.BlockSpec((ROWS, D), lambda i: (0, 0)),
        compiler_params=pltpu.CompilerParams(dimension_semantics=("arbitrary",)),
    )(*args)

    x_out = stream_out[:NODE_ROWS].reshape(B, N, D)
    bg_out = stream_out[NODE_ROWS:].reshape(B, N, N, D)
    return x_out, bg_out


# ----------------------------- pure-JAX reference -----------------------------
def reference(x, bg, mask_bool, params):
    Wdd, bdd, Wdf, bf, Wfd, bd2, gam, bet = params
    ln = lambda v, i: _layer_norm(v, gam[i, 0], bet[i, 0])
    gk = (bg @ Wdd[4] + bdd[4, 0]).reshape(B, N, N, H, DK)
    gv = (bg @ Wdd[5] + bdd[5, 0]).reshape(B, N, N, H, DK)
    q = (x @ Wdd[0] + bdd[0, 0]).reshape(B, N, H, DK)
    k = (x @ Wdd[1] + bdd[1, 0]).reshape(B, N, H, DK)
    v = (x @ Wdd[2] + bdd[2, 0]).reshape(B, N, H, DK)
    s = (jnp.einsum('bxhd,byhd->bxyh', q, k) +
         jnp.einsum('bxhd,bxyhd->bxyh', q, gk)) / math.sqrt(DK)
    s = jnp.where(mask_bool[..., None], -1e9, s)
    p = jax.nn.softmax(s, axis=2)
    xa = (jnp.einsum('bxyh,byhd->bxhd', p, v) +
          jnp.einsum('bxyh,bxyhd->bxhd', p, gv)).reshape(B, N, D)
    x_left = (xa @ Wdd[6] + bdd[6, 0])[:, :, None, :]
    x_right = (xa @ Wdd[7] + bdd[7, 0])[:, None, :, :]
    bg2 = x_left + x_right
    attn_out = xa @ Wdd[3] + bdd[3, 0]
    x1 = ln(x + attn_out, 0)
    ff = jax.nn.relu(x1 @ Wdf[0] + bf[0, 0]) @ Wfd[0] + bd2[0, 0]
    x2 = ln(x1 + ff, 1)
    g1 = ln(bg + bg2, 2)
    ffg = jax.nn.relu(g1 @ Wdf[1] + bf[1, 0]) @ Wfd[1] + bd2[1, 0]
    g2 = ln(g1 + ffg, 3)
    return x2, g2


if __name__ == "__main__":
    key = jax.random.PRNGKey(0)
    ks = jax.random.split(key, 11)
    sc = 0.05
    # Packed weight layout (weights stored as (in, out); y = x @ W + b):
    #   W_dd[0..7] : Wq, Wk, Wv, Wout(linears[3]), Wrel_k, Wrel_v, Wleft, Wright
    Wdd = jax.random.normal(ks[0], (8, D, D), jnp.float32) * sc
    bdd = jax.random.normal(ks[1], (8, 1, D), jnp.float32) * sc
    Wdf = jax.random.normal(ks[2], (2, D, FF), jnp.float32) * sc     # linear1, linear_graph1
    bf = jax.random.normal(ks[3], (2, 1, FF), jnp.float32) * sc
    Wfd = jax.random.normal(ks[4], (2, FF, D), jnp.float32) * sc     # linear2, linear_graph2
    bd2 = jax.random.normal(ks[5], (2, 1, D), jnp.float32) * sc
    # Randomized affine LN params so the row-blocked gamma/beta path is exercised.
    gam = 1.0 + 0.1 * jax.random.normal(ks[9], (4, 1, D), jnp.float32)   # norm1, norm2, norm_g1, norm_g2
    bet = 0.1 * jax.random.normal(ks[10], (4, 1, D), jnp.float32)
    params = (Wdd, bdd, Wdf, bf, Wfd, bd2, gam, bet)

    x = jax.random.normal(ks[6], (B, N, D), jnp.float32)
    bg = jax.random.normal(ks[7], (B, N, N, D), jnp.float32)
    mask_bool = jax.random.uniform(ks[8], (B, N, N)) < 0.2
    # Keep the self-edge unmasked (as in real CLUTRR graphs) so no attention row
    # is fully masked; the additive -1e9 mask then matches masked_fill exactly
    # after the softmax max-subtraction.
    mask_bool = jnp.logical_and(mask_bool, ~jnp.eye(N, dtype=jnp.bool_)[None])
    mask_f = mask_bool.astype(jnp.float32)

    x_out, bg_out = relation_transformer_layer(x, bg, mask_f, params)
    jax.block_until_ready((x_out, bg_out))

    # Reference at highest matmul precision; kernel is exact fp32 throughout
    # (no approx reciprocal), so the tolerance is tightened vs the previous rev.
    with jax.default_matmul_precision("highest"):
        x_ref, bg_ref = reference(x, bg, mask_bool, params)
    assert jnp.allclose(x_out, x_ref, atol=5e-4, rtol=5e-4), "node output mismatch"
    assert jnp.allclose(bg_out, bg_ref, atol=5e-4, rtol=5e-4), "graph output mismatch"

    print("KERNEL_OK")
</pallas_src>

<mosaic_0001>
module attributes {stable_mosaic.version = 11 : i64} {
  func.func @rel_transformer_kernel(%arg0: i32, %arg1: memref<144x32xf32, #tpu.memory_space<vmem>>, %arg2: memref<2x8x8x32xf32, #tpu.memory_space<vmem>>, %arg3: memref<32x32xf32, #tpu.memory_space<vmem>>, %arg4: memref<32x160xf32, #tpu.memory_space<vmem>>, %arg5: memref<1x160xf32, #tpu.memory_space<vmem>>, %arg6: memref<32x96xf32, #tpu.memory_space<vmem>>, %arg7: memref<1x96xf32, #tpu.memory_space<vmem>>, %arg8: memref<32x256xf32, #tpu.memory_space<vmem>>, %arg9: memref<1x256xf32, #tpu.memory_space<vmem>>, %arg10: memref<256x64xf32, #tpu.memory_space<vmem>>, %arg11: memref<1x64xf32, #tpu.memory_space<vmem>>, %arg12: memref<2x4x1x32xf32, #tpu.memory_space<vmem>>, %arg13: memref<144x32xf32, #tpu.memory_space<vmem>>) attributes {dimension_semantics = [#tpu.dimension_semantics<arbitrary>], iteration_bounds = array<i64: 1>, scalar_prefetch = 0 : i64, scratch_operands = 0 : i64, tpu.core_type = #tpu.core_type<tc>, window_params = [{pipeline_mode = #tpu.pipeline_mode<synchronous>, transform_indices = @transform_0, window_bounds = array<i64: 144, 32>}, {pipeline_mode = #tpu.pipeline_mode<synchronous>, transform_indices = @transform_1, window_bounds = array<i64: 2, 8, 8, 32>}, {pipeline_mode = #tpu.pipeline_mode<synchronous>, transform_indices = @transform_2, window_bounds = array<i64: 32, 32>}, {pipeline_mode = #tpu.pipeline_mode<synchronous>, transform_indices = @transform_3, window_bounds = array<i64: 32, 160>}, {pipeline_mode = #tpu.pipeline_mode<synchronous>, transform_indices = @transform_4, window_bounds = array<i64: 1, 160>}, {pipeline_mode = #tpu.pipeline_mode<synchronous>, transform_indices = @transform_5, window_bounds = array<i64: 32, 96>}, {pipeline_mode = #tpu.pipeline_mode<synchronous>, transform_indices = @transform_6, window_bounds = array<i64: 1, 96>}, {pipeline_mode = #tpu.pipeline_mode<synchronous>, transform_indices = @transform_7, window_bounds = array<i64: 32, 256>}, {pipeline_mode = #tpu.pipeline_mode<synchronous>, transform_indices = @transform_8, window_bounds = array<i64: 1, 256>}, {pipeline_mode = #tpu.pipeline_mode<synchronous>, transform_indices = @transform_9, window_bounds = array<i64: 256, 64>}, {pipeline_mode = #tpu.pipeline_mode<synchronous>, transform_indices = @transform_10, window_bounds = array<i64: 1, 64>}, {pipeline_mode = #tpu.pipeline_mode<synchronous>, transform_indices = @transform_11, window_bounds = array<i64: 2, 4, 1, 32>}, {pipeline_mode = #tpu.pipeline_mode<synchronous>, transform_indices = @transform_12, window_bounds = array<i64: 144, 32>}]} {
    %c0 = arith.constant 0 : index
    %c0_0 = arith.constant 0 : index
    %0 = vector.load %arg1[%c0, %c0_0] : memref<144x32xf32, #tpu.memory_space<vmem>>, vector<144x32xf32>
    %c0_1 = arith.constant 0 : index
    %c0_2 = arith.constant 0 : index
    %c0_3 = arith.constant 0 : index
    %c0_4 = arith.constant 0 : index
    %1 = vector.load %arg2[%c0_1, %c0_2, %c0_3, %c0_4] : memref<2x8x8x32xf32, #tpu.memory_space<vmem>>, vector<2x8x8x32xf32>
    %c0_5 = arith.constant 0 : index
    %c0_6 = arith.constant 0 : index
    %2 = vector.load %arg3[%c0_5, %c0_6] : memref<32x32xf32, #tpu.memory_space<vmem>>, vector<32x32xf32>
    %3 = tpu.iota {dimensions = array<i32: 0>} : vector<144x1xi32>
    %c16_i32 = arith.constant 16 : i32
    %4 = vector.broadcast %c16_i32 : i32 to vector<144x1xi32>
    %5 = arith.cmpi slt, %3, %4 : vector<144x1xi32>
    %c0_7 = arith.constant 0 : index
    %c0_8 = arith.constant 0 : index
    %6 = vector.load %arg4[%c0_7, %c0_8] : memref<32x160xf32, #tpu.memory_space<vmem>>, vector<32x160xf32>
    %cst = arith.constant dense<0.000000e+00> : vector<144x160xf32>
    %7 = tpu.matmul %0, %6, %cst {dimension_numbers = #tpu.dot_dimension_numbers<[1], [0], [0], [1], [0, 0, 1, 1], [], []>} : vector<144x32xf32>, vector<32x160xf32>, vector<144x160xf32> -> vector<144x160xf32>
    %c0_9 = arith.constant 0 : index
    %c0_10 = arith.constant 0 : index
    %8 = vector.load %arg5[%c0_9, %c0_10] : memref<1x160xf32, #tpu.memory_space<vmem>>, vector<1x160xf32>
    %9 = vector.broadcast %8 : vector<1x160xf32> to vector<144x160xf32>
    %10 = arith.addf %7, %9 : vector<144x160xf32>
    %11 = vector.extract_strided_slice %10 {offsets = [0, 0], sizes = [16, 96], strides = [1, 1]} : vector<144x160xf32> to vector<16x96xf32>
    %12 = vector.extract_strided_slice %11 {offsets = [0, 0], sizes = [16, 32], strides = [1, 1]} : vector<16x96xf32> to vector<16x32xf32>
    %13 = vector.shape_cast %12 : vector<16x32xf32> to vector<2x8x32xf32>
    %14 = vector.extract_strided_slice %11 {offsets = [0, 32], sizes = [16, 32], strides = [1, 1]} : vector<16x96xf32> to vector<16x32xf32>
    %15 = vector.shape_cast %14 : vector<16x32xf32> to vector<2x8x32xf32>
    %16 = vector.extract_strided_slice %11 {offsets = [0, 64], sizes = [16, 32], strides = [1, 1]} : vector<16x96xf32> to vector<16x32xf32>
    %17 = vector.shape_cast %16 : vector<16x32xf32> to vector<2x8x32xf32>
    %18 = vector.extract_strided_slice %10 {offsets = [16, 96], sizes = [128, 64], strides = [1, 1]} : vector<144x160xf32> to vector<128x64xf32>
    %19 = vector.extract_strided_slice %18 {offsets = [0, 0], sizes = [128, 32], strides = [1, 1]} : vector<128x64xf32> to vector<128x32xf32>
    %20 = vector.shape_cast %19 : vector<128x32xf32> to vector<2x8x8x32xf32>
    %21 = vector.extract_strided_slice %18 {offsets = [0, 32], sizes = [128, 32], strides = [1, 1]} : vector<128x64xf32> to vector<128x32xf32>
    %22 = vector.shape_cast %21 : vector<128x32xf32> to vector<2x8x8x32xf32>
    %23 = vector.shape_cast %13 : vector<2x8x32xf32> to vector<2x8x1x32xf32>
    %24 = vector.shape_cast %15 : vector<2x8x32xf32> to vector<2x1x8x32xf32>
    %25 = vector.broadcast %24 : vector<2x1x8x32xf32> to vector<2x8x8x32xf32>
    %26 = arith.addf %25, %20 : vector<2x8x8x32xf32>
    %27 = vector.broadcast %23 : vector<2x8x1x32xf32> to vector<2x8x8x32xf32>
    %28 = arith.mulf %27, %26 : vector<2x8x8x32xf32>
    %29 = vector.shape_cast %28 : vector<2x8x8x32xf32> to vector<128x32xf32>
    %cst_11 = arith.constant dense<0.000000e+00> : vector<128x32xf32>
    %30 = tpu.matmul %29, %2, %cst_11 {dimension_numbers = #tpu.dot_dimension_numbers<[1], [0], [0], [1], [0, 0, 1, 1], [], []>} : vector<128x32xf32>, vector<32x32xf32>, vector<128x32xf32> -> vector<128x32xf32>
    %31 = vector.shape_cast %30 : vector<128x32xf32> to vector<2x8x8x32xf32>
    %32 = arith.addf %31, %1 : vector<2x8x8x32xf32>
    %cst_12 = arith.constant dense<0xFF800000> : vector<2x8x32xf32>
    %33 = vector.multi_reduction <maximumf>, %32, %cst_12 [2] : vector<2x8x8x32xf32> to vector<2x8x32xf32>
    %34 = vector.shape_cast %33 : vector<2x8x32xf32> to vector<2x8x1x32xf32>
    %35 = vector.broadcast %34 : vector<2x8x1x32xf32> to vector<2x8x8x32xf32>
    %36 = arith.subf %32, %35 : vector<2x8x8x32xf32>
    %37 = math.exp %36 : vector<2x8x8x32xf32>
    %cst_13 = arith.constant dense<0.000000e+00> : vector<2x8x32xf32>
    %38 = vector.multi_reduction <add>, %37, %cst_13 [2] : vector<2x8x8x32xf32> to vector<2x8x32xf32>
    %39 = vector.shape_cast %38 : vector<2x8x32xf32> to vector<2x8x1x32xf32>
    %40 = vector.broadcast %39 : vector<2x8x1x32xf32> to vector<2x8x8x32xf32>
    %41 = arith.divf %37, %40 : vector<2x8x8x32xf32>
    %42 = vector.shape_cast %17 : vector<2x8x32xf32> to vector<2x1x8x32xf32>
    %43 = vector.broadcast %42 : vector<2x1x8x32xf32> to vector<2x8x8x32xf32>
    %44 = arith.addf %43, %22 : vector<2x8x8x32xf32>
    %45 = arith.mulf %41, %44 : vector<2x8x8x32xf32>
    %cst_14 = arith.constant dense<0.000000e+00> : vector<2x8x32xf32>
    %46 = vector.multi_reduction <add>, %45, %cst_14 [2] : vector<2x8x8x32xf32> to vector<2x8x32xf32>
    %47 = vector.shape_cast %46 : vector<2x8x32xf32> to vector<16x32xf32>
    %c0_15 = arith.constant 0 : index
    %c0_16 = arith.constant 0 : index
    %48 = vector.load %arg6[%c0_15, %c0_16] : memref<32x96xf32, #tpu.memory_space<vmem>>, vector<32x96xf32>
    %cst_17 = arith.constant dense<0.000000e+00> : vector<16x96xf32>
    %49 = tpu.matmul %47, %48, %cst_17 {dimension_numbers = #tpu.dot_dimension_numbers<[1], [0], [0], [1], [0, 0, 1, 1], [], []>} : vector<16x32xf32>, vector<32x96xf32>, vector<16x96xf32> -> vector<16x96xf32>
    %c0_18 = arith.constant 0 : index
    %c0_19 = arith.constant 0 : index
    %50 = vector.load %arg7[%c0_18, %c0_19] : memref<1x96xf32, #tpu.memory_space<vmem>>, vector<1x96xf32>
    %51 = vector.broadcast %50 : vector<1x96xf32> to vector<16x96xf32>
    %52 = arith.addf %49, %51 : vector<16x96xf32>
    %53 = vector.extract_strided_slice %52 {offsets = [0, 0], sizes = [16, 32], strides = [1, 1]} : vector<16x96xf32> to vector<16x32xf32>
    %54 = vector.extract_strided_slice %52 {offsets = [0, 32], sizes = [16, 32], strides = [1, 1]} : vector<16x96xf32> to vector<16x32xf32>
    %55 = vector.shape_cast %54 : vector<16x32xf32> to vector<2x8x32xf32>
    %56 = vector.extract_strided_slice %52 {offsets = [0, 64], sizes = [16, 32], strides = [1, 1]} : vector<16x96xf32> to vector<16x32xf32>
    %57 = vector.shape_cast %56 : vector<16x32xf32> to vector<2x8x32xf32>
    %58 = vector.shape_cast %55 : vector<2x8x32xf32> to vector<2x8x1x32xf32>
    %59 = vector.shape_cast %57 : vector<2x8x32xf32> to vector<2x1x8x32xf32>
    %60 = vector.broadcast %58 : vector<2x8x1x32xf32> to vector<2x8x8x32xf32>
    %61 = vector.broadcast %59 : vector<2x1x8x32xf32> to vector<2x8x8x32xf32>
    %62 = arith.addf %60, %61 : vector<2x8x8x32xf32>
    %63 = vector.shape_cast %62 : vector<2x8x8x32xf32> to vector<128x32xf32>
    %64 = tpu.concatenate %53, %63 in 0 : vector<16x32xf32>, vector<128x32xf32> -> vector<144x32xf32>
    %65 = arith.addf %0, %64 : vector<144x32xf32>
    %c0_20 = arith.constant 0 : index
    %c0_21 = arith.constant 0 : index
    %c0_22 = arith.constant 0 : index
    %c0_23 = arith.constant 0 : index
    %66 = vector.load %arg12[%c0_20, %c0_21, %c0_22, %c0_23] : memref<2x4x1x32xf32, #tpu.memory_space<vmem>>, vector<1x1x1x32xf32>
    %67 = vector.shape_cast %66 : vector<1x1x1x32xf32> to vector<1x32xf32>
    %c0_24 = arith.constant 0 : index
    %c2 = arith.constant 2 : index
    %c0_25 = arith.constant 0 : index
    %c0_26 = arith.constant 0 : index
    %68 = vector.load %arg12[%c0_24, %c2, %c0_25, %c0_26] : memref<2x4x1x32xf32, #tpu.memory_space<vmem>>, vector<1x1x1x32xf32>
    %69 = vector.shape_cast %68 : vector<1x1x1x32xf32> to vector<1x32xf32>
    %70 = vector.shape_cast %5 : vector<144x1xi1> to vector<144x1xi1>
    %71 = vector.broadcast %70 : vector<144x1xi1> to vector<144x32xi1>
    %72 = vector.shape_cast %67 : vector<1x32xf32> to vector<1x32xf32>
    %73 = vector.broadcast %72 : vector<1x32xf32> to vector<144x32xf32>
    %74 = vector.shape_cast %69 : vector<1x32xf32> to vector<1x32xf32>
    %75 = vector.broadcast %74 : vector<1x32xf32> to vector<144x32xf32>
    %76 = arith.select %71, %73, %75 : vector<144x32xi1>, vector<144x32xf32>
    %c1 = arith.constant 1 : index
    %c0_27 = arith.constant 0 : index
    %c0_28 = arith.constant 0 : index
    %c0_29 = arith.constant 0 : index
    %77 = vector.load %arg12[%c1, %c0_27, %c0_28, %c0_29] : memref<2x4x1x32xf32, #tpu.memory_space<vmem>>, vector<1x1x1x32xf32>
    %78 = vector.shape_cast %77 : vector<1x1x1x32xf32> to vector<1x32xf32>
    %c1_30 = arith.constant 1 : index
    %c2_31 = arith.constant 2 : index
    %c0_32 = arith.constant 0 : index
    %c0_33 = arith.constant 0 : index
    %79 = vector.load %arg12[%c1_30, %c2_31, %c0_32, %c0_33] : memref<2x4x1x32xf32, #tpu.memory_space<vmem>>, vector<1x1x1x32xf32>
    %80 = vector.shape_cast %79 : vector<1x1x1x32xf32> to vector<1x32xf32>
    %81 = vector.shape_cast %5 : vector<144x1xi1> to vector<144x1xi1>
    %82 = vector.broadcast %81 : vector<144x1xi1> to vector<144x32xi1>
    %83 = vector.shape_cast %78 : vector<1x32xf32> to vector<1x32xf32>
    %84 = vector.broadcast %83 : vector<1x32xf32> to vector<144x32xf32>
    %85 = vector.shape_cast %80 : vector<1x32xf32> to vector<1x32xf32>
    %86 = vector.broadcast %85 : vector<1x32xf32> to vector<144x32xf32>
    %87 = arith.select %82, %84, %86 : vector<144x32xi1>, vector<144x32xf32>
    %cst_34 = arith.constant dense<0.000000e+00> : vector<144xf32>
    %88 = vector.multi_reduction <add>, %65, %cst_34 [1] : vector<144x32xf32> to vector<144xf32>
    %89 = vector.shape_cast %88 : vector<144xf32> to vector<144x1xf32>
    %cst_35 = arith.constant 3.200000e+01 : f32
    %90 = vector.broadcast %cst_35 : f32 to vector<144x1xf32>
    %91 = arith.divf %89, %90 : vector<144x1xf32>
    %92 = vector.broadcast %91 : vector<144x1xf32> to vector<144x32xf32>
    %93 = arith.subf %65, %92 : vector<144x32xf32>
    %94 = arith.mulf %93, %93 : vector<144x32xf32>
    %cst_36 = arith.constant dense<0.000000e+00> : vector<144xf32>
    %95 = vector.multi_reduction <add>, %94, %cst_36 [1] : vector<144x32xf32> to vector<144xf32>
    %96 = vector.shape_cast %95 : vector<144xf32> to vector<144x1xf32>
    %cst_37 = arith.constant 3.200000e+01 : f32
    %97 = vector.broadcast %cst_37 : f32 to vector<144x1xf32>
    %98 = arith.divf %96, %97 : vector<144x1xf32>
    %99 = vector.broadcast %91 : vector<144x1xf32> to vector<144x32xf32>
    %100 = arith.subf %65, %99 : vector<144x32xf32>
    %cst_38 = arith.constant 9.99999974E-6 : f32
    %101 = vector.broadcast %cst_38 : f32 to vector<144x1xf32>
    %102 = arith.addf %98, %101 : vector<144x1xf32>
    %103 = math.rsqrt %102 : vector<144x1xf32>
    %104 = vector.broadcast %103 : vector<144x1xf32> to vector<144x32xf32>
    %105 = arith.mulf %100, %104 : vector<144x32xf32>
    %106 = arith.mulf %105, %76 : vector<144x32xf32>
    %107 = arith.addf %106, %87 : vector<144x32xf32>
    %c0_39 = arith.constant 0 : index
    %c0_40 = arith.constant 0 : index
    %108 = vector.load %arg8[%c0_39, %c0_40] : memref<32x256xf32, #tpu.memory_space<vmem>>, vector<32x256xf32>
    %cst_41 = arith.constant dense<0.000000e+00> : vector<144x256xf32>
    %109 = tpu.matmul %107, %108, %cst_41 {dimension_numbers = #tpu.dot_dimension_numbers<[1], [0], [0], [1], [0, 0, 1, 1], [], []>} : vector<144x32xf32>, vector<32x256xf32>, vector<144x256xf32> -> vector<144x256xf32>
    %c0_42 = arith.constant 0 : index
    %c0_43 = arith.constant 0 : index
    %110 = vector.load %arg9[%c0_42, %c0_43] : memref<1x256xf32, #tpu.memory_space<vmem>>, vector<1x256xf32>
    %111 = vector.broadcast %110 : vector<1x256xf32> to vector<144x256xf32>
    %112 = arith.addf %109, %111 : vector<144x256xf32>
    %cst_44 = arith.constant 0.000000e+00 : f32
    %113 = vector.broadcast %cst_44 : f32 to vector<144x256xf32>
    %114 = arith.maximumf %112, %113 : vector<144x256xf32>
    %c0_45 = arith.constant 0 : index
    %c0_46 = arith.constant 0 : index
    %115 = vector.load %arg10[%c0_45, %c0_46] : memref<256x64xf32, #tpu.memory_space<vmem>>, vector<256x64xf32>
    %cst_47 = arith.constant dense<0.000000e+00> : vector<144x64xf32>
    %116 = tpu.matmul %114, %115, %cst_47 {dimension_numbers = #tpu.dot_dimension_numbers<[1], [0], [0], [1], [0, 0, 1, 1], [], []>} : vector<144x256xf32>, vector<256x64xf32>, vector<144x64xf32> -> vector<144x64xf32>
    %c0_48 = arith.constant 0 : index
    %c0_49 = arith.constant 0 : index
    %117 = vector.load %arg11[%c0_48, %c0_49] : memref<1x64xf32, #tpu.memory_space<vmem>>, vector<1x64xf32>
    %118 = vector.broadcast %117 : vector<1x64xf32> to vector<144x64xf32>
    %119 = arith.addf %116, %118 : vector<144x64xf32>
    %120 = vector.extract_strided_slice %119 {offsets = [0, 0], sizes = [144, 32], strides = [1, 1]} : vector<144x64xf32> to vector<144x32xf32>
    %121 = vector.extract_strided_slice %119 {offsets = [0, 32], sizes = [144, 32], strides = [1, 1]} : vector<144x64xf32> to vector<144x32xf32>
    %122 = vector.shape_cast %5 : vector<144x1xi1> to vector<144x1xi1>
    %123 = vector.broadcast %122 : vector<144x1xi1> to vector<144x32xi1>
    %124 = arith.select %123, %120, %121 : vector<144x32xi1>, vector<144x32xf32>
    %125 = arith.addf %107, %124 : vector<144x32xf32>
    %c0_50 = arith.constant 0 : index
    %c1_51 = arith.constant 1 : index
    %c0_52 = arith.constant 0 : index
    %c0_53 = arith.constant 0 : index
    %126 = vector.load %arg12[%c0_50, %c1_51, %c0_52, %c0_53] : memref<2x4x1x32xf32, #tpu.memory_space<vmem>>, vector<1x1x1x32xf32>
    %127 = vector.shape_cast %126 : vector<1x1x1x32xf32> to vector<1x32xf32>
    %c0_54 = arith.constant 0 : index
    %c3 = arith.constant 3 : index
    %c0_55 = arith.constant 0 : index
    %c0_56 = arith.constant 0 : index
    %128 = vector.load %arg12[%c0_54, %c3, %c0_55, %c0_56] : memref<2x4x1x32xf32, #tpu.memory_space<vmem>>, vector<1x1x1x32xf32>
    %129 = vector.shape_cast %128 : vector<1x1x1x32xf32> to vector<1x32xf32>
    %130 = vector.shape_cast %5 : vector<144x1xi1> to vector<144x1xi1>
    %131 = vector.broadcast %130 : vector<144x1xi1> to vector<144x32xi1>
    %132 = vector.shape_cast %127 : vector<1x32xf32> to vector<1x32xf32>
    %133 = vector.broadcast %132 : vector<1x32xf32> to vector<144x32xf32>
    %134 = vector.shape_cast %129 : vector<1x32xf32> to vector<1x32xf32>
    %135 = vector.broadcast %134 : vector<1x32xf32> to vector<144x32xf32>
    %136 = arith.select %131, %133, %135 : vector<144x32xi1>, vector<144x32xf32>
    %c1_57 = arith.constant 1 : index
    %c1_58 = arith.constant 1 : index
    %c0_59 = arith.constant 0 : index
    %c0_60 = arith.constant 0 : index
    %137 = vector.load %arg12[%c1_57, %c1_58, %c0_59, %c0_60] : memref<2x4x1x32xf32, #tpu.memory_space<vmem>>, vector<1x1x1x32xf32>
    %138 = vector.shape_cast %137 : vector<1x1x1x32xf32> to vector<1x32xf32>
    %c1_61 = arith.constant 1 : index
    %c3_62 = arith.constant 3 : index
    %c0_63 = arith.constant 0 : index
    %c0_64 = arith.constant 0 : index
    %139 = vector.load %arg12[%c1_61, %c3_62, %c0_63, %c0_64] : memref<2x4x1x32xf32, #tpu.memory_space<vmem>>, vector<1x1x1x32xf32>
    %140 = vector.shape_cast %139 : vector<1x1x1x32xf32> to vector<1x32xf32>
    %141 = vector.shape_cast %5 : vector<144x1xi1> to vector<144x1xi1>
    %142 = vector.broadcast %141 : vector<144x1xi1> to vector<144x32xi1>
    %143 = vector.shape_cast %138 : vector<1x32xf32> to vector<1x32xf32>
    %144 = vector.broadcast %143 : vector<1x32xf32> to vector<144x32xf32>
    %145 = vector.shape_cast %140 : vector<1x32xf32> to vector<1x32xf32>
    %146 = vector.broadcast %145 : vector<1x32xf32> to vector<144x32xf32>
    %147 = arith.select %142, %144, %146 : vector<144x32xi1>, vector<144x32xf32>
    %cst_65 = arith.constant dense<0.000000e+00> : vector<144xf32>
    %148 = vector.multi_reduction <add>, %125, %cst_65 [1] : vector<144x32xf32> to vector<144xf32>
    %149 = vector.shape_cast %148 : vector<144xf32> to vector<144x1xf32>
    %cst_66 = arith.constant 3.200000e+01 : f32
    %150 = vector.broadcast %cst_66 : f32 to vector<144x1xf32>
    %151 = arith.divf %149, %150 : vector<144x1xf32>
    %152 = vector.broadcast %151 : vector<144x1xf32> to vector<144x32xf32>
    %153 = arith.subf %125, %152 : vector<144x32xf32>
    %154 = arith.mulf %153, %153 : vector<144x32xf32>
    %cst_67 = arith.constant dense<0.000000e+00> : vector<144xf32>
    %155 = vector.multi_reduction <add>, %154, %cst_67 [1] : vector<144x32xf32> to vector<144xf32>
    %156 = vector.shape_cast %155 : vector<144xf32> to vector<144x1xf32>
    %cst_68 = arith.constant 3.200000e+01 : f32
    %157 = vector.broadcast %cst_68 : f32 to vector<144x1xf32>
    %158 = arith.divf %156, %157 : vector<144x1xf32>
    %159 = vector.broadcast %151 : vector<144x1xf32> to vector<144x32xf32>
    %160 = arith.subf %125, %159 : vector<144x32xf32>
    %cst_69 = arith.constant 9.99999974E-6 : f32
    %161 = vector.broadcast %cst_69 : f32 to vector<144x1xf32>
    %162 = arith.addf %158, %161 : vector<144x1xf32>
    %163 = math.rsqrt %162 : vector<144x1xf32>
    %164 = vector.broadcast %163 : vector<144x1xf32> to vector<144x32xf32>
    %165 = arith.mulf %160, %164 : vector<144x32xf32>
    %166 = arith.mulf %165, %136 : vector<144x32xf32>
    %167 = arith.addf %166, %147 : vector<144x32xf32>
    %c0_70 = arith.constant 0 : index
    %c0_71 = arith.constant 0 : index
    %168 = vector.load %arg13[%c0_70, %c0_71] : memref<144x32xf32, #tpu.memory_space<vmem>>, vector<144x32xf32>
    tpu.vector_store %arg13[%c0_70, %c0_71], %167 {strides = array<i32>} : memref<144x32xf32, #tpu.memory_space<vmem>>, vector<144x32xf32>,
    return
  }
  func.func @transform_0(%arg0: i32) -> (i32, i32) {
    %c0_i32 = arith.constant 0 : i32
    %c0_i32_0 = arith.constant 0 : i32
    %c0_i32_1 = arith.constant 0 : i32
    return %c0_i32, %c0_i32_0 : i32, i32
  }
  func.func @transform_1(%arg0: i32) -> (i32, i32, i32, i32) {
    %c0_i32 = arith.constant 0 : i32
    %c0_i32_0 = arith.constant 0 : i32
    %c0_i32_1 = arith.constant 0 : i32
    %c0_i32_2 = arith.constant 0 : i32
    %c0_i32_3 = arith.constant 0 : i32
    return %c0_i32, %c0_i32_0, %c0_i32_1, %c0_i32_2 : i32, i32, i32, i32
  }
  func.func @transform_2(%arg0: i32) -> (i32, i32) {
    %c0_i32 = arith.constant 0 : i32
    %c0_i32_0 = arith.constant 0 : i32
    %c0_i32_1 = arith.constant 0 : i32
    return %c0_i32, %c0_i32_0 : i32, i32
  }
  func.func @transform_3(%arg0: i32) -> (i32, i32) {
    %c0_i32 = arith.constant 0 : i32
    %c0_i32_0 = arith.constant 0 : i32
    %c0_i32_1 = arith.constant 0 : i32
    return %c0_i32, %c0_i32_0 : i32, i32
  }
  func.func @transform_4(%arg0: i32) -> (i32, i32) {
    %c0_i32 = arith.constant 0 : i32
    %c0_i32_0 = arith.constant 0 : i32
    %c0_i32_1 = arith.constant 0 : i32
    return %c0_i32, %c0_i32_0 : i32, i32
  }
  func.func @transform_5(%arg0: i32) -> (i32, i32) {
    %c0_i32 = arith.constant 0 : i32
    %c0_i32_0 = arith.constant 0 : i32
    %c0_i32_1 = arith.constant 0 : i32
    return %c0_i32, %c0_i32_0 : i32, i32
  }
  func.func @transform_6(%arg0: i32) -> (i32, i32) {
    %c0_i32 = arith.constant 0 : i32
    %c0_i32_0 = arith.constant 0 : i32
    %c0_i32_1 = arith.constant 0 : i32
    return %c0_i32, %c0_i32_0 : i32, i32
  }
  func.func @transform_7(%arg0: i32) -> (i32, i32) {
    %c0_i32 = arith.constant 0 : i32
    %c0_i32_0 = arith.constant 0 : i32
    %c0_i32_1 = arith.constant 0 : i32
    return %c0_i32, %c0_i32_0 : i32, i32
  }
  func.func @transform_8(%arg0: i32) -> (i32, i32) {
    %c0_i32 = arith.constant 0 : i32
    %c0_i32_0 = arith.constant 0 : i32
    %c0_i32_1 = arith.constant 0 : i32
    return %c0_i32, %c0_i32_0 : i32, i32
  }
  func.func @transform_9(%arg0: i32) -> (i32, i32) {
    %c0_i32 = arith.constant 0 : i32
    %c0_i32_0 = arith.constant 0 : i32
    %c0_i32_1 = arith.constant 0 : i32
    return %c0_i32, %c0_i32_0 : i32, i32
  }
  func.func @transform_10(%arg0: i32) -> (i32, i32) {
    %c0_i32 = arith.constant 0 : i32
    %c0_i32_0 = arith.constant 0 : i32
    %c0_i32_1 = arith.constant 0 : i32
    return %c0_i32, %c0_i32_0 : i32, i32
  }
  func.func @transform_11(%arg0: i32) -> (i32, i32, i32, i32) {
    %c0_i32 = arith.constant 0 : i32
    %c0_i32_0 = arith.constant 0 : i32
    %c0_i32_1 = arith.constant 0 : i32
    %c0_i32_2 = arith.constant 0 : i32
    %c0_i32_3 = arith.constant 0 : i32
    return %c0_i32, %c0_i32_0, %c0_i32_1, %c0_i32_2 : i32, i32, i32, i32
  }
  func.func @transform_12(%arg0: i32) -> (i32, i32) {
    %c0_i32 = arith.constant 0 : i32
    %c0_i32_0 = arith.constant 0 : i32
    %c0_i32_1 = arith.constant 0 : i32
    return %c0_i32, %c0_i32_0 : i32, i32
  }
}

</mosaic_0001>

<llo_original>
// kernel: tpu_custom_call.1
$region0: #{tpu_custom_call.1}
  #allocation0 [shape = 'u32[]', space=smem, size = 0x4, offset = 0x4, fixed_abs, tag = 'smem constant byte address 0x4 - core index']
  #allocation1 [shape = 'u32[144,128]{1,0:T(1,128)}', space=vmem, size = 0x12000, scoped, tag = 'internal scratch']
  %s0 = inlined_call_operand.vmem [shape: f32[144,32], index: 0, kind: input, shape index: {}]
  %s1 = inlined_call_operand.vmem [shape: f32[2,8,8,32], index: 1, kind: input, shape index: {}]
  %s2 = inlined_call_operand.vmem [shape: f32[32,32], index: 2, kind: input, shape index: {}]
  %s3 = inlined_call_operand.vmem [shape: f32[32,160], index: 3, kind: input, shape index: {}]
  %s4 = inlined_call_operand.vmem [shape: f32[1,160], index: 4, kind: input, shape index: {}]
  %s5 = inlined_call_operand.vmem [shape: f32[32,96], index: 5, kind: input, shape index: {}]
  %s6 = inlined_call_operand.vmem [shape: f32[1,96], index: 6, kind: input, shape index: {}]
  %s7 = inlined_call_operand.vmem [shape: f32[32,256], index: 7, kind: input, shape index: {}]
  %s8 = inlined_call_operand.vmem [shape: f32[1,256], index: 8, kind: input, shape index: {}]
  %s9 = inlined_call_operand.vmem [shape: f32[256,64], index: 9, kind: input, shape index: {}]
  %s10 = inlined_call_operand.vmem [shape: f32[1,64], index: 10, kind: input, shape index: {}]
  %s11 = inlined_call_operand.vmem [shape: f32[2,4,1,32], index: 11, kind: input, shape index: {}]
  %s12 = inlined_call_operand.vmem [shape: f32[144,32], index: 12, kind: output, shape index: {}]
  %s13 = sld [smem:[#allocation0]]
  $region58: #{tpu_custom_call.1} parent=0
    _
  %s15 = ssub.s32 1, %s13
  %s16 = scalar_select 0, %s15, %s13
  // Predicated region
  $region2: #{tpu_custom_call.1} parent=0 // pred_check
    _
  $region3: #{tpu_custom_call.1} parent=0 // pred_check_branch
    %18 = sbr.rel (0) target = $region5
  $region4: #{tpu_custom_call.1} parent=0 // pred_region
    _
  $region5: #{tpu_custom_call.1} parent=0 // pred_fallthru
    _
  // Predicated region
  $region6: #{tpu_custom_call.1} parent=0 // pred_check
    _
  $region7: #{tpu_custom_call.1} parent=0 // pred_check_branch
    %20 = sbr.rel (0) target = $region9
  $region8: #{tpu_custom_call.1} parent=0 // pred_region
    _
  $region9: #{tpu_custom_call.1} parent=0 // pred_fallthru
    _
  // Predicated region
  $region10: #{tpu_custom_call.1} parent=0 // pred_check
    _
  $region11: #{tpu_custom_call.1} parent=0 // pred_check_branch
    %22 = sbr.rel (0) target = $region13
  $region12: #{tpu_custom_call.1} parent=0 // pred_region
    _
  $region13: #{tpu_custom_call.1} parent=0 // pred_fallthru
    _
  // Predicated region
  $region14: #{tpu_custom_call.1} parent=0 // pred_check
    _
  $region15: #{tpu_custom_call.1} parent=0 // pred_check_branch
    %24 = sbr.rel (0) target = $region17
  $region16: #{tpu_custom_call.1} parent=0 // pred_region
    _
  $region17: #{tpu_custom_call.1} parent=0 // pred_fallthru
    _
  // Predicated region
  $region18: #{tpu_custom_call.1} parent=0 // pred_check
    _
  $region19: #{tpu_custom_call.1} parent=0 // pred_check_branch
    %26 = sbr.rel (0) target = $region21
  $region20: #{tpu_custom_call.1} parent=0 // pred_region
    _
  $region21: #{tpu_custom_call.1} parent=0 // pred_fallthru
    _
  // Predicated region
  $region22: #{tpu_custom_call.1} parent=0 // pred_check
    _
  $region23: #{tpu_custom_call.1} parent=0 // pred_check_branch
    %28 = sbr.rel (0) target = $region25
  $region24: #{tpu_custom_call.1} parent=0 // pred_region
    _
  $region25: #{tpu_custom_call.1} parent=0 // pred_fallthru
    _
  // Predicated region
  $region26: #{tpu_custom_call.1} parent=0 // pred_check
    _
  $region27: #{tpu_custom_call.1} parent=0 // pred_check_branch
    %30 = sbr.rel (0) target = $region29
  $region28: #{tpu_custom_call.1} parent=0 // pred_region
    _
  $region29: #{tpu_custom_call.1} parent=0 // pred_fallthru
    _
  // Predicated region
  $region30: #{tpu_custom_call.1} parent=0 // pred_check
    _
  $region31: #{tpu_custom_call.1} parent=0 // pred_check_branch
    %32 = sbr.rel (0) target = $region33
  $region32: #{tpu_custom_call.1} parent=0 // pred_region
    _
  $region33: #{tpu_custom_call.1} parent=0 // pred_fallthru
    _
  // Predicated region
  $region34: #{tpu_custom_call.1} parent=0 // pred_check
    _
  $region35: #{tpu_custom_call.1} parent=0 // pred_check_branch
    %34 = sbr.rel (0) target = $region37
  $region36: #{tpu_custom_call.1} parent=0 // pred_region
    _
  $region37: #{tpu_custom_call.1} parent=0 // pred_fallthru
    _
  // Predicated region
  $region38: #{tpu_custom_call.1} parent=0 // pred_check
    _
  $region39: #{tpu_custom_call.1} parent=0 // pred_check_branch
    %36 = sbr.rel (0) target = $region41
  $region40: #{tpu_custom_call.1} parent=0 // pred_region
    _
  $region41: #{tpu_custom_call.1} parent=0 // pred_fallthru
    _
  // Predicated region
  $region42: #{tpu_custom_call.1} parent=0 // pred_check
    _
  $region43: #{tpu_custom_call.1} parent=0 // pred_check_branch
    %38 = sbr.rel (0) target = $region45
  $region44: #{tpu_custom_call.1} parent=0 // pred_region
    _
  $region45: #{tpu_custom_call.1} parent=0 // pred_fallthru
    _
  // Predicated region
  $region46: #{tpu_custom_call.1} parent=0 // pred_check
    _
  $region47: #{tpu_custom_call.1} parent=0 // pred_check_branch
    %40 = sbr.rel (0) target = $region49
  $region48: #{tpu_custom_call.1} parent=0 // pred_region
    _
  $region49: #{tpu_custom_call.1} parent=0 // pred_fallthru
    _
  %v41 = vld [vmem:[%s0] sm:$0xff]
  %v42 = vld [vmem:[%s0 + $0x8] sm:$0xff]
  %v43 = vld [vmem:[%s0 + $0x10] sm:$0xff]
  %v44 = vld [vmem:[%s0 + $0x18] sm:$0xff]
  %v45 = vld [vmem:[%s0 + $0x20] sm:$0xff]
  %v46 = vld [vmem:[%s0 + $0x28] sm:$0xff]
  %v47 = vld [vmem:[%s0 + $0x30] sm:$0xff]
  %v48 = vld [vmem:[%s0 + $0x38] sm:$0xff]
  %v49 = vld [vmem:[%s0 + $0x40] sm:$0xff]
  %v50 = vld [vmem:[%s0 + $0x48] sm:$0xff]
  %v51 = vld [vmem:[%s0 + $0x50] sm:$0xff]
  %v52 = vld [vmem:[%s0 + $0x58] sm:$0xff]
  %v53 = vld [vmem:[%s0 + $0x60] sm:$0xff]
  %v54 = vld [vmem:[%s0 + $0x68] sm:$0xff]
  %v55 = vld [vmem:[%s0 + $0x70] sm:$0xff]
  %v56 = vld [vmem:[%s0 + $0x78] sm:$0xff]
  %v57 = vld [vmem:[%s0 + $0x80] sm:$0xff]
  %v58 = vld [vmem:[%s0 + $0x88] sm:$0xff]
  %v59 = vld [vmem:[%s1] sm:$0xff]
  %v60 = vld [vmem:[%s1 + $0x8] sm:$0xff]
  %v61 = vld [vmem:[%s1 + $0x10] sm:$0xff]
  %v62 = vld [vmem:[%s1 + $0x18] sm:$0xff]
  %v63 = vld [vmem:[%s1 + $0x20] sm:$0xff]
  %v64 = vld [vmem:[%s1 + $0x28] sm:$0xff]
  %v65 = vld [vmem:[%s1 + $0x30] sm:$0xff]
  %v66 = vld [vmem:[%s1 + $0x38] sm:$0xff]
  %v67 = vld [vmem:[%s1 + $0x40] sm:$0xff]
  %v68 = vld [vmem:[%s1 + $0x48] sm:$0xff]
  %v69 = vld [vmem:[%s1 + $0x50] sm:$0xff]
  %v70 = vld [vmem:[%s1 + $0x58] sm:$0xff]
  %v71 = vld [vmem:[%s1 + $0x60] sm:$0xff]
  %v72 = vld [vmem:[%s1 + $0x68] sm:$0xff]
  %v73 = vld [vmem:[%s1 + $0x70] sm:$0xff]
  %v74 = vld [vmem:[%s1 + $0x78] sm:$0xff]
  %v75 = vld [vmem:[%s2] sm:$0xff]
  %v76 = vld [vmem:[%s2 + $0x8] sm:$0xff]
  %v77 = vld [vmem:[%s2 + $0x10] sm:$0xff]
  %v78 = vld [vmem:[%s2 + $0x18] sm:$0xff]
  %v79 = vlaneseq
  %v80 = vshrl.u32 %v79, 7
  %v81 = vadd.s32 %v80, 8
  %v82 = vadd.s32 %v80, 16
  %v83 = vadd.s32 %v80, 24
  %v84 = vadd.s32 %v80, 32
  %v85 = vadd.s32 %v80, 40
  %v86 = vadd.s32 %v80, 48
  %v87 = vadd.s32 %v80, 56
  %v88 = vadd.s32 %v80, 64
  %v89 = vadd.s32 %v80, 72
  %v90 = vadd.s32 %v80, 80
  %v91 = vadd.s32 %v80, 88
  %v92 = vadd.s32 %v80, 96
  %v93 = vadd.s32 %v80, 104
  %v94 = vadd.s32 %v80, 112
  %v95 = vadd.s32 %v80, 120
  %v96 = vadd.s32 %v80, 128
  %v97 = vadd.s32 %v80, 136
  %vm98 = vcmp.lt.s32.totalorder %v80, 16
  %vm99 = vcmp.lt.s32.totalorder %v81, 16
  %vm100 = vcmp.lt.s32.totalorder %v82, 16
  %vm101 = vcmp.lt.s32.totalorder %v83, 16
  %vm102 = vcmp.lt.s32.totalorder %v84, 16
  %vm103 = vcmp.lt.s32.totalorder %v85, 16
  %vm104 = vcmp.lt.s32.totalorder %v86, 16
  %vm105 = vcmp.lt.s32.totalorder %v87, 16
  %vm106 = vcmp.lt.s32.totalorder %v88, 16
  %vm107 = vcmp.lt.s32.totalorder %v89, 16
  %vm108 = vcmp.lt.s32.totalorder %v90, 16
  %vm109 = vcmp.lt.s32.totalorder %v91, 16
  %vm110 = vcmp.lt.s32.totalorder %v92, 16
  %vm111 = vcmp.lt.s32.totalorder %v93, 16
  %vm112 = vcmp.lt.s32.totalorder %v94, 16
  %vm113 = vcmp.lt.s32.totalorder %v95, 16
  %vm114 = vcmp.lt.s32.totalorder %v96, 16
  %vm115 = vcmp.lt.s32.totalorder %v97, 16
  %v116 = vld [vmem:[%s3] sm:$0xff]
  %v117 = vld [vmem:[%s3 + $0x8] sm:$0xff]
  %v118 = vld [vmem:[%s3 + $0x10] sm:$0xff]
  %v119 = vld [vmem:[%s3 + $0x18] sm:$0xff]
  %v120 = vld [vmem:[%s3 + $0x20] sm:$0xff]
  %v121 = vld [vmem:[%s3 + $0x28] sm:$0xff]
  %v122 = vld [vmem:[%s3 + $0x30] sm:$0xff]
  %v123 = vld [vmem:[%s3 + $0x38] sm:$0xff]
  %v124 = vld [vmem:[%s4] sm:$0x3]
  %v126 = vlaneseq
  %v127 = vshrl.u32 %v126, 7
  %v128 = vsub.s32 0, %v127
  %v129 = vrot.slane %v124, %v128
  %v130 = vlaneseq
  %v131 = vshrl.u32 %v130, 7
  %v132 = vsub.s32 1, %v131
  %v133 = vrot.slane %v124, %v132
  %vm136 = vcmask 261120
  %v138 = vsel %vm136, %v41, 0
  %v141 = vsel %vm136, %v42, 0
  %v144 = vsel %vm136, %v43, 0
  %v147 = vsel %vm136, %v44, 0
  %v150 = vsel %vm136, %v45, 0
  %v153 = vsel %vm136, %v46, 0
  %v156 = vsel %vm136, %v47, 0
  %v159 = vsel %vm136, %v48, 0
  %v162 = vsel %vm136, %v49, 0
  %v165 = vsel %vm136, %v50, 0
  %v168 = vsel %vm136, %v51, 0
  %v171 = vsel %vm136, %v52, 0
  %v174 = vsel %vm136, %v53, 0
  %v177 = vsel %vm136, %v54, 0
  %v180 = vsel %vm136, %v55, 0
  %v183 = vsel %vm136, %v56, 0
  %v186 = vsel %vm136, %v57, 0
  %v189 = vsel %vm136, %v58, 0
  %191 = vmatprep.subr.mxu0 0.0
  %192 = vmatpush1.msra.mxu0 0.0
  %193 = vmatprep.subr.mxu0 0.0
  %194 = vmatpush1.msra.mxu0 0.0
  %195 = vmatprep.subr.mxu0 0.0
  %196 = vmatpush1.msra.mxu0 0.0
  %197 = vmatprep.subr.mxu0 0.0
  %198 = vmatpush1.msra.mxu0 0.0
  %199 = vmatprep.subr.mxu0 0.0
  %200 = vmatpush1.msra.mxu0 0.0
  %201 = vmatprep.subr.mxu0 0.0
  %202 = vmatpush1.msra.mxu0 0.0
  %203 = vmatprep.subr.mxu0 0.0
  %204 = vmatpush1.msra.mxu0 0.0
  %205 = vmatprep.subr.mxu0 0.0
  %206 = vmatpush1.msra.mxu0 0.0
  %207 = vmatprep.subr.mxu0 0.0
  %208 = vmatpush1.msra.mxu0 0.0
  %209 = vmatprep.subr.mxu0 0.0
  %210 = vmatpush1.msra.mxu0 0.0
  %211 = vmatprep.subr.mxu0 0.0
  %212 = vmatpush1.msra.mxu0 0.0
  %213 = vmatprep.subr.mxu0 0.0
  %214 = vmatpush1.msra.mxu0 0.0
  %215 = vmatprep.subr.mxu0 %v123
  %216 = vmatpush1.msra.mxu0 %v122
  %217 = vmatprep.subr.mxu0 %v121
  %218 = vmatpush1.msra.mxu0 %v120
  %219 = vmatprep.subr.mxu0 %v119
  %220 = vmatpush1.msra.mxu0 %v118
  %221 = vmatprep.subr.mxu0 %v117
  %222 = vmatpush1.msra.mxu0 %v116
  %223 = vmatprep.subr.mxu0 0.0
  %224 = vmatpush2.msra.mxu0 0.0
  %225 = vmatprep.subr.mxu0 0.0
  %226 = vmatpush2.msra.mxu0 0.0
  %227 = vmatprep.subr.mxu0 0.0
  %228 = vmatpush2.msra.mxu0 0.0
  %229 = vmatprep.subr.mxu0 0.0
  %230 = vmatpush2.msra.mxu0 0.0
  %231 = vmatprep.subr.mxu0 0.0
  %232 = vmatpush2.msra.mxu0 0.0
  %233 = vmatprep.subr.mxu0 0.0
  %234 = vmatpush2.msra.mxu0 0.0
  %235 = vmatprep.subr.mxu0 0.0
  %236 = vmatpush2.msra.mxu0 0.0
  %237 = vmatprep.subr.mxu0 0.0
  %238 = vmatpush2.msra.mxu0 0.0
  %239 = vmatprep.subr.mxu0 0.0
  %240 = vmatpush2.msra.mxu0 0.0
  %241 = vmatprep.subr.mxu0 0.0
  %242 = vmatpush2.msra.mxu0 0.0
  %243 = vmatprep.subr.mxu0 0.0
  %244 = vmatpush2.msra.mxu0 0.0
  %245 = vmatprep.subr.mxu0 0.0
  %246 = vmatpush2.msra.mxu0 0.0
  %247 = vmatprep.subr.mxu0 0.0
  %248 = vmatpush2.msra.mxu0 0.0
  %249 = vmatprep.subr.mxu0 0.0
  %250 = vmatpush2.msra.mxu0 0.0
  %251 = vmatprep.subr.mxu0 0.0
  %252 = vmatpush2.msra.mxu0 0.0
  %253 = vmatprep.subr.mxu0 0.0
  %254 = vmatpush2.msra.mxu0 0.0
  %255 = vmatprep.mubr.f32.mxu0 0.0
  %256 = vmatmul.mubr.f32.gmra.mxu0 %v138
  %v257 = vpop.f32.mrf.mxu0
  %v258 = vadd.f32 %v129, %v257
  %v259 = vpop.f32.mrf.mxu0
  %260 = vmatprep.mubr.f32.mxu0 0.0
  %261 = vmatmul.mubr.f32.gmra.mxu0 %v141
  %v262 = vpop.f32.mrf.mxu0
  %v263 = vadd.f32 %v129, %v262
  %v264 = vpop.f32.mrf.mxu0
  %265 = vmatprep.mubr.f32.mxu0 0.0
  %266 = vmatmul.mubr.f32.gmra.mxu0 %v144
  %v267 = vpop.f32.mrf.mxu0
  %v268 = vadd.f32 %v129, %v267
  %v269 = vpop.f32.mrf.mxu0
  %v270 = vadd.f32 %v133, %v269
  %271 = vmatprep.mubr.f32.mxu0 0.0
  %272 = vmatmul.mubr.f32.gmra.mxu0 %v147
  %v273 = vpop.f32.mrf.mxu0
  %v274 = vadd.f32 %v129, %v273
  %v275 = vpop.f32.mrf.mxu0
  %v276 = vadd.f32 %v133, %v275
  %277 = vmatprep.mubr.f32.mxu0 0.0
  %278 = vmatmul.mubr.f32.gmra.mxu0 %v150
  %v279 = vpop.f32.mrf.mxu0
  %v280 = vadd.f32 %v129, %v279
  %v281 = vpop.f32.mrf.mxu0
  %v282 = vadd.f32 %v133, %v281
  %283 = vmatprep.mubr.f32.mxu0 0.0
  %284 = vmatmul.mubr.f32.gmra.mxu0 %v153
  %v285 = vpop.f32.mrf.mxu0
  %v286 = vadd.f32 %v129, %v285
  %v287 = vpop.f32.mrf.mxu0
  %v288 = vadd.f32 %v133, %v287
  %289 = vmatprep.mubr.f32.mxu0 0.0
  %290 = vmatmul.mubr.f32.gmra.mxu0 %v156
  %v291 = vpop.f32.mrf.mxu0
  %v292 = vadd.f32 %v129, %v291
  %v293 = vpop.f32.mrf.mxu0
  %v294 = vadd.f32 %v133, %v293
  %295 = vmatprep.mubr.f32.mxu0 0.0
  %296 = vmatmul.mubr.f32.gmra.mxu0 %v159
  %v297 = vpop.f32.mrf.mxu0
  %v298 = vadd.f32 %v129, %v297
  %v299 = vpop.f32.mrf.mxu0
  %v300 = vadd.f32 %v133, %v299
  %301 = vmatprep.mubr.f32.mxu0 0.0
  %302 = vmatmul.mubr.f32.gmra.mxu0 %v162
  %v303 = vpop.f32.mrf.mxu0
  %v304 = vadd.f32 %v129, %v303
  %v305 = vpop.f32.mrf.mxu0
  %v306 = vadd.f32 %v133, %v305
  %307 = vmatprep.mubr.f32.mxu0 0.0
  %308 = vmatmul.mubr.f32.gmra.mxu0 %v165
  %v309 = vpop.f32.mrf.mxu0
  %v310 = vadd.f32 %v129, %v309
  %v311 = vpop.f32.mrf.mxu0
  %v312 = vadd.f32 %v133, %v311
  %313 = vmatprep.mubr.f32.mxu0 0.0
  %314 = vmatmul.mubr.f32.gmra.mxu0 %v168
  %v315 = vpop.f32.mrf.mxu0
  %v316 = vadd.f32 %v129, %v315
  %v317 = vpop.f32.mrf.mxu0
  %v318 = vadd.f32 %v133, %v317
  %319 = vmatprep.mubr.f32.mxu0 0.0
  %320 = vmatmul.mubr.f32.gmra.mxu0 %v171
  %v321 = vpop.f32.mrf.mxu0
  %v322 = vadd.f32 %v129, %v321
  %v323 = vpop.f32.mrf.mxu0
  %v324 = vadd.f32 %v133, %v323
  %325 = vmatprep.mubr.f32.mxu0 0.0
  %326 = vmatmul.mubr.f32.gmra.mxu0 %v174
  %v327 = vpop.f32.mrf.mxu0
  %v328 = vadd.f32 %v129, %v327
  %v329 = vpop.f32.mrf.mxu0
  %v330 = vadd.f32 %v133, %v329
  %331 = vmatprep.mubr.f32.mxu0 0.0
  %332 = vmatmul.mubr.f32.gmra.mxu0 %v177
  %v333 = vpop.f32.mrf.mxu0
  %v334 = vadd.f32 %v129, %v333
  %v335 = vpop.f32.mrf.mxu0
  %v336 = vadd.f32 %v133, %v335
  %337 = vmatprep.mubr.f32.mxu0 0.0
  %338 = vmatmul.mubr.f32.gmra.mxu0 %v180
  %v339 = vpop.f32.mrf.mxu0
  %v340 = vadd.f32 %v129, %v339
  %v341 = vpop.f32.mrf.mxu0
  %v342 = vadd.f32 %v133, %v341
  %343 = vmatprep.mubr.f32.mxu0 0.0
  %344 = vmatmul.mubr.f32.gmra.mxu0 %v183
  %v345 = vpop.f32.mrf.mxu0
  %v346 = vadd.f32 %v129, %v345
  %v347 = vpop.f32.mrf.mxu0
  %v348 = vadd.f32 %v133, %v347
  %349 = vmatprep.mubr.f32.mxu0 0.0
  %350 = vmatmul.mubr.f32.gmra.mxu0 %v186
  %v351 = vpop.f32.mrf.mxu0
  %v352 = vadd.f32 %v129, %v351
  %v353 = vpop.f32.mrf.mxu0
  %v354 = vadd.f32 %v133, %v353
  %355 = vmatprep.mubr.f32.mxu0 0.0
  %356 = vmatmul.mubr.f32.gmra.mxu0 %v189
  %v357 = vpop.f32.mrf.mxu0
  %v358 = vadd.f32 %v129, %v357
  %v359 = vpop.f32.mrf.mxu0
  %v360 = vadd.f32 %v133, %v359
  %361 = vdwg.mxu0
  %v364 = vcombine.high %v258, %v258
  %v366 = vunpack.c.l.s4 1966171168
  %v367 = vunpack.c.0.s8 %v366
  %v368 = vlaneseq
  %v369 = vshrl.u32 %v368, 7
  %v370 = vsub.s32 %v367, %v369
  %v371 = vrot.slane %v258, %v370
  %v373 = vunpack.c.l.s4 1966171168
  %v374 = vunpack.c.0.s8 %v373
  %v375 = vlaneseq
  %v376 = vshrl.u32 %v375, 7
  %v377 = vsub.s32 %v374, %v376
  %v378 = vrot.slane %v364, %v377
  %v379 = vcombine.high %v371, %v371
  %v380 = vcombine.high %v378, %v378
  %v382 = vunpack.c.l.s4 1966171168
  %v383 = vunpack.c.0.s8 %v382
  %v384 = vlaneseq
  %v385 = vshrl.u32 %v384, 7
  %v386 = vsub.s32 %v383, %v385
  %v387 = vrot.slane %v371, %v386
  %v389 = vunpack.c.l.s4 1966171168
  %v390 = vunpack.c.0.s8 %v389
  %v391 = vlaneseq
  %v392 = vshrl.u32 %v391, 7
  %v393 = vsub.s32 %v390, %v392
  %v394 = vrot.slane %v378, %v393
  %v396 = vunpack.c.l.s4 1966171168
  %v397 = vunpack.c.0.s8 %v396
  %v398 = vlaneseq
  %v399 = vshrl.u32 %v398, 7
  %v400 = vsub.s32 %v397, %v399
  %v401 = vrot.slane %v379, %v400
  %v403 = vunpack.c.l.s4 1966171168
  %v404 = vunpack.c.0.s8 %v403
  %v405 = vlaneseq
  %v406 = vshrl.u32 %v405, 7
  %v407 = vsub.s32 %v404, %v406
  %v408 = vrot.slane %v380, %v407
  %v409 = vcombine.high %v387, %v387
  %v410 = vcombine.high %v394, %v394
  %v411 = vcombine.high %v401, %v401
  %v412 = vcombine.high %v408, %v408
  %v413 = vcombine.high %v263, %v263
  %v415 = vunpack.c.l.s4 1966171168
  %v416 = vunpack.c.0.s8 %v415
  %v417 = vlaneseq
  %v418 = vshrl.u32 %v417, 7
  %v419 = vsub.s32 %v416, %v418
  %v420 = vrot.slane %v263, %v419
  %v422 = vunpack.c.l.s4 1966171168
  %v423 = vunpack.c.0.s8 %v422
  %v424 = vlaneseq
  %v425 = vshrl.u32 %v424, 7
  %v426 = vsub.s32 %v423, %v425
  %v427 = vrot.slane %v413, %v426
  %v428 = vcombine.high %v420, %v420
  %v429 = vcombine.high %v427, %v427
  %v431 = vunpack.c.l.s4 1966171168
  %v432 = vunpack.c.0.s8 %v431
  %v433 = vlaneseq
  %v434 = vshrl.u32 %v433, 7
  %v435 = vsub.s32 %v432, %v434
  %v436 = vrot.slane %v420, %v435
  %v438 = vunpack.c.l.s4 1966171168
  %v439 = vunpack.c.0.s8 %v438
  %v440 = vlaneseq
  %v441 = vshrl.u32 %v440, 7
  %v442 = vsub.s32 %v439, %v441
  %v443 = vrot.slane %v427, %v442
  %v445 = vunpack.c.l.s4 1966171168
  %v446 = vunpack.c.0.s8 %v445
  %v447 = vlaneseq
  %v448 = vshrl.u32 %v447, 7
  %v449 = vsub.s32 %v446, %v448
  %v450 = vrot.slane %v428, %v449
  %v452 = vunpack.c.l.s4 1966171168
  %v453 = vunpack.c.0.s8 %v452
  %v454 = vlaneseq
  %v455 = vshrl.u32 %v454, 7
  %v456 = vsub.s32 %v453, %v455
  %v457 = vrot.slane %v429, %v456
  %v458 = vcombine.high %v436, %v436
  %v459 = vcombine.high %v443, %v443
  %v460 = vcombine.high %v450, %v450
  %v461 = vcombine.high %v457, %v457
  %478 = vrot.lane.b32.xlu0 %v268, 64
  %v479 = vpop.permute.xlu0 %478
  %480 = vrot.lane.b32.xlu0 %v274, 64
  %v481 = vpop.permute.xlu0 %480
  %482 = vrot.lane.b32.xlu0 %v280, 64
  %v483 = vpop.permute.xlu0 %482
  %484 = vrot.lane.b32.xlu0 %v286, 64
  %v485 = vpop.permute.xlu0 %484
  %486 = vrot.lane.b32.xlu0 %v292, 64
  %v487 = vpop.permute.xlu0 %486
  %488 = vrot.lane.b32.xlu0 %v298, 64
  %v489 = vpop.permute.xlu0 %488
  %490 = vrot.lane.b32.xlu0 %v304, 64
  %v491 = vpop.permute.xlu0 %490
  %492 = vrot.lane.b32.xlu0 %v310, 64
  %v493 = vpop.permute.xlu0 %492
  %494 = vrot.lane.b32.xlu0 %v316, 64
  %v495 = vpop.permute.xlu0 %494
  %496 = vrot.lane.b32.xlu0 %v322, 64
  %v497 = vpop.permute.xlu0 %496
  %498 = vrot.lane.b32.xlu0 %v328, 64
  %v499 = vpop.permute.xlu0 %498
  %500 = vrot.lane.b32.xlu0 %v334, 64
  %v501 = vpop.permute.xlu0 %500
  %502 = vrot.lane.b32.xlu0 %v340, 64
  %v503 = vpop.permute.xlu0 %502
  %504 = vrot.lane.b32.xlu0 %v346, 64
  %v505 = vpop.permute.xlu0 %504
  %506 = vrot.lane.b32.xlu0 %v352, 64
  %v507 = vpop.permute.xlu0 %506
  %508 = vrot.lane.b32.xlu0 %v358, 64
  %v509 = vpop.permute.xlu0 %508
  %v526 = vadd.f32 %v258, %v479
  %v527 = vadd.f32 %v258, %v481
  %v528 = vadd.f32 %v258, %v483
  %v529 = vadd.f32 %v258, %v485
  %v530 = vadd.f32 %v258, %v487
  %v531 = vadd.f32 %v258, %v489
  %v532 = vadd.f32 %v258, %v491
  %v533 = vadd.f32 %v258, %v493
  %v534 = vadd.f32 %v263, %v495
  %v535 = vadd.f32 %v263, %v497
  %v536 = vadd.f32 %v263, %v499
  %v537 = vadd.f32 %v263, %v501
  %v538 = vadd.f32 %v263, %v503
  %v539 = vadd.f32 %v263, %v505
  %v540 = vadd.f32 %v263, %v507
  %v541 = vadd.f32 %v263, %v509
  %v542 = vlaneseq
  %v543 = vshrl.u32 %v542, 7
  %v544 = vsub.s32 0, %v543
  %v545 = vrot.slane %v387, %v544
  %v546 = vlaneseq
  %v547 = vshrl.u32 %v546, 7
  %v548 = vsub.s32 0, %v547
  %v549 = vrot.slane %v401, %v548
  %v550 = vlaneseq
  %v551 = vshrl.u32 %v550, 7
  %v552 = vsub.s32 0, %v551
  %v553 = vrot.slane %v409, %v552
  %v554 = vlaneseq
  %v555 = vshrl.u32 %v554, 7
  %v556 = vsub.s32 0, %v555
  %v557 = vrot.slane %v411, %v556
  %v558 = vlaneseq
  %v559 = vshrl.u32 %v558, 7
  %v560 = vsub.s32 0, %v559
  %v561 = vrot.slane %v394, %v560
  %v562 = vlaneseq
  %v563 = vshrl.u32 %v562, 7
  %v564 = vsub.s32 0, %v563
  %v565 = vrot.slane %v408, %v564
  %v566 = vlaneseq
  %v567 = vshrl.u32 %v566, 7
  %v568 = vsub.s32 0, %v567
  %v569 = vrot.slane %v410, %v568
  %v570 = vlaneseq
  %v571 = vshrl.u32 %v570, 7
  %v572 = vsub.s32 0, %v571
  %v573 = vrot.slane %v412, %v572
  %v574 = vlaneseq
  %v575 = vshrl.u32 %v574, 7
  %v576 = vsub.s32 0, %v575
  %v577 = vrot.slane %v436, %v576
  %v578 = vlaneseq
  %v579 = vshrl.u32 %v578, 7
  %v580 = vsub.s32 0, %v579
  %v581 = vrot.slane %v450, %v580
  %v582 = vlaneseq
  %v583 = vshrl.u32 %v582, 7
  %v584 = vsub.s32 0, %v583
  %v585 = vrot.slane %v458, %v584
  %v586 = vlaneseq
  %v587 = vshrl.u32 %v586, 7
  %v588 = vsub.s32 0, %v587
  %v589 = vrot.slane %v460, %v588
  %v590 = vlaneseq
  %v591 = vshrl.u32 %v590, 7
  %v592 = vsub.s32 0, %v591
  %v593 = vrot.slane %v443, %v592
  %v594 = vlaneseq
  %v595 = vshrl.u32 %v594, 7
  %v596 = vsub.s32 0, %v595
  %v597 = vrot.slane %v457, %v596
  %v598 = vlaneseq
  %v599 = vshrl.u32 %v598, 7
  %v600 = vsub.s32 0, %v599
  %v601 = vrot.slane %v459, %v600
  %v602 = vlaneseq
  %v603 = vshrl.u32 %v602, 7
  %v604 = vsub.s32 0, %v603
  %v605 = vrot.slane %v461, %v604
  %638 = vrot.lane.b32.xlu0 %v526, 96
  %v639 = vpop.permute.xlu0 %638
  %640 = vrot.lane.b32.xlu0 %v527, 96
  %v641 = vpop.permute.xlu0 %640
  %642 = vrot.lane.b32.xlu0 %v528, 96
  %v643 = vpop.permute.xlu0 %642
  %644 = vrot.lane.b32.xlu0 %v529, 96
  %v645 = vpop.permute.xlu0 %644
  %646 = vrot.lane.b32.xlu0 %v530, 96
  %v647 = vpop.permute.xlu0 %646
  %648 = vrot.lane.b32.xlu0 %v531, 96
  %v649 = vpop.permute.xlu0 %648
  %650 = vrot.lane.b32.xlu0 %v532, 96
  %v651 = vpop.permute.xlu0 %650
  %652 = vrot.lane.b32.xlu0 %v533, 96
  %v653 = vpop.permute.xlu0 %652
  %654 = vrot.lane.b32.xlu0 %v534, 96
  %v655 = vpop.permute.xlu0 %654
  %656 = vrot.lane.b32.xlu0 %v535, 96
  %v657 = vpop.permute.xlu0 %656
  %658 = vrot.lane.b32.xlu0 %v536, 96
  %v659 = vpop.permute.xlu0 %658
  %660 = vrot.lane.b32.xlu0 %v537, 96
  %v661 = vpop.permute.xlu0 %660
  %662 = vrot.lane.b32.xlu0 %v538, 96
  %v663 = vpop.permute.xlu0 %662
  %664 = vrot.lane.b32.xlu0 %v539, 96
  %v665 = vpop.permute.xlu0 %664
  %666 = vrot.lane.b32.xlu0 %v540, 96
  %v667 = vpop.permute.xlu0 %666
  %668 = vrot.lane.b32.xlu0 %v541, 96
  %v669 = vpop.permute.xlu0 %668
  %v686 = vmul.f32 %v545, %v639
  %v687 = vmul.f32 %v549, %v641
  %v688 = vmul.f32 %v553, %v643
  %v689 = vmul.f32 %v557, %v645
  %v690 = vmul.f32 %v561, %v647
  %v691 = vmul.f32 %v565, %v649
  %v692 = vmul.f32 %v569, %v651
  %v693 = vmul.f32 %v573, %v653
  %v694 = vmul.f32 %v577, %v655
  %v695 = vmul.f32 %v581, %v657
  %v696 = vmul.f32 %v585, %v659
  %v697 = vmul.f32 %v589, %v661
  %v698 = vmul.f32 %v593, %v663
  %v699 = vmul.f32 %v597, %v665
  %v700 = vmul.f32 %v601, %v667
  %v701 = vmul.f32 %v605, %v669
  %v703 = vsel %vm136, %v686, 0
  %v706 = vsel %vm136, %v687, 0
  %v709 = vsel %vm136, %v688, 0
  %v712 = vsel %vm136, %v689, 0
  %v715 = vsel %vm136, %v690, 0
  %v718 = vsel %vm136, %v691, 0
  %v721 = vsel %vm136, %v692, 0
  %v724 = vsel %vm136, %v693, 0
  %v727 = vsel %vm136, %v694, 0
  %v730 = vsel %vm136, %v695, 0
  %v733 = vsel %vm136, %v696, 0
  %v736 = vsel %vm136, %v697, 0
  %v739 = vsel %vm136, %v698, 0
  %v742 = vsel %vm136, %v699, 0
  %v745 = vsel %vm136, %v700, 0
  %v748 = vsel %vm136, %v701, 0
  %750 = vmatprep.subr.mxu0 0.0
  %751 = vmatpush1.msra.mxu0 0.0
  %752 = vmatprep.subr.mxu0 0.0
  %753 = vmatpush1.msra.mxu0 0.0
  %754 = vmatprep.subr.mxu0 0.0
  %755 = vmatpush1.msra.mxu0 0.0
  %756 = vmatprep.subr.mxu0 0.0
  %757 = vmatpush1.msra.mxu0 0.0
  %758 = vmatprep.subr.mxu0 0.0
  %759 = vmatpush1.msra.mxu0 0.0
  %760 = vmatprep.subr.mxu0 0.0
  %761 = vmatpush1.msra.mxu0 0.0
  %762 = vmatprep.subr.mxu0 0.0
  %763 = vmatpush1.msra.mxu0 0.0
  %764 = vmatprep.subr.mxu0 0.0
  %765 = vmatpush1.msra.mxu0 0.0
  %766 = vmatprep.subr.mxu0 0.0
  %767 = vmatpush1.msra.mxu0 0.0
  %768 = vmatprep.subr.mxu0 0.0
  %769 = vmatpush1.msra.mxu0 0.0
  %770 = vmatprep.subr.mxu0 0.0
  %771 = vmatpush1.msra.mxu0 0.0
  %772 = vmatprep.subr.mxu0 0.0
  %773 = vmatpush1.msra.mxu0 0.0
  %774 = vmatprep.subr.mxu0 0.0
  %775 = vmatpush1.msra.mxu0 %v78
  %776 = vmatprep.subr.mxu0 0.0
  %777 = vmatpush1.msra.mxu0 %v77
  %778 = vmatprep.subr.mxu0 0.0
  %779 = vmatpush1.msra.mxu0 %v76
  %780 = vmatprep.subr.mxu0 0.0
  %781 = vmatpush1.msra.mxu0 %v75
  %782 = vmatprep.subr.mxu0 0.0
  %783 = vmatpush2.msra.mxu0 0.0
  %784 = vmatprep.subr.mxu0 0.0
  %785 = vmatpush2.msra.mxu0 0.0
  %786 = vmatprep.subr.mxu0 0.0
  %787 = vmatpush2.msra.mxu0 0.0
  %788 = vmatprep.subr.mxu0 0.0
  %789 = vmatpush2.msra.mxu0 0.0
  %790 = vmatprep.subr.mxu0 0.0
  %791 = vmatpush2.msra.mxu0 0.0
  %792 = vmatprep.subr.mxu0 0.0
  %793 = vmatpush2.msra.mxu0 0.0
  %794 = vmatprep.subr.mxu0 0.0
  %795 = vmatpush2.msra.mxu0 0.0
  %796 = vmatprep.subr.mxu0 0.0
  %797 = vmatpush2.msra.mxu0 0.0
  %798 = vmatprep.subr.mxu0 0.0
  %799 = vmatpush2.msra.mxu0 0.0
  %800 = vmatprep.subr.mxu0 0.0
  %801 = vmatpush2.msra.mxu0 0.0
  %802 = vmatprep.subr.mxu0 0.0
  %803 = vmatpush2.msra.mxu0 0.0
  %804 = vmatprep.subr.mxu0 0.0
  %805 = vmatpush2.msra.mxu0 0.0
  %806 = vmatprep.subr.mxu0 0.0
  %807 = vmatpush2.msra.mxu0 0.0
  %808 = vmatprep.subr.mxu0 0.0
  %809 = vmatpush2.msra.mxu0 0.0
  %810 = vmatprep.subr.mxu0 0.0
  %811 = vmatpush2.msra.mxu0 0.0
  %812 = vmatprep.subr.mxu0 0.0
  %813 = vmatpush2.msra.mxu0 0.0
  %814 = vmatprep.mubr.f32.mxu0 0.0
  %815 = vmatmul.mubr.f32.gmra.mxu0 %v703
  %v816 = vpop.f32.mrf.mxu0
  %v817 = vadd.f32 0.0, %v816
  %v818 = vpop.f32.mrf.mxu0
  %819 = vmatprep.mubr.f32.mxu0 0.0
  %820 = vmatmul.mubr.f32.gmra.mxu0 %v706
  %v821 = vpop.f32.mrf.mxu0
  %v822 = vadd.f32 0.0, %v821
  %v823 = vpop.f32.mrf.mxu0
  %824 = vmatprep.mubr.f32.mxu0 0.0
  %825 = vmatmul.mubr.f32.gmra.mxu0 %v709
  %v826 = vpop.f32.mrf.mxu0
  %v827 = vadd.f32 0.0, %v826
  %v828 = vpop.f32.mrf.mxu0
  %829 = vmatprep.mubr.f32.mxu0 0.0
  %830 = vmatmul.mubr.f32.gmra.mxu0 %v712
  %v831 = vpop.f32.mrf.mxu0
  %v832 = vadd.f32 0.0, %v831
  %v833 = vpop.f32.mrf.mxu0
  %834 = vmatprep.mubr.f32.mxu0 0.0
  %835 = vmatmul.mubr.f32.gmra.mxu0 %v715
  %v836 = vpop.f32.mrf.mxu0
  %v837 = vadd.f32 0.0, %v836
  %v838 = vpop.f32.mrf.mxu0
  %839 = vmatprep.mubr.f32.mxu0 0.0
  %840 = vmatmul.mubr.f32.gmra.mxu0 %v718
  %v841 = vpop.f32.mrf.mxu0
  %v842 = vadd.f32 0.0, %v841
  %v843 = vpop.f32.mrf.mxu0
  %844 = vmatprep.mubr.f32.mxu0 0.0
  %845 = vmatmul.mubr.f32.gmra.mxu0 %v721
  %v846 = vpop.f32.mrf.mxu0
  %v847 = vadd.f32 0.0, %v846
  %v848 = vpop.f32.mrf.mxu0
  %849 = vmatprep.mubr.f32.mxu0 0.0
  %850 = vmatmul.mubr.f32.gmra.mxu0 %v724
  %v851 = vpop.f32.mrf.mxu0
  %v852 = vadd.f32 0.0, %v851
  %v853 = vpop.f32.mrf.mxu0
  %854 = vmatprep.mubr.f32.mxu0 0.0
  %855 = vmatmul.mubr.f32.gmra.mxu0 %v727
  %v856 = vpop.f32.mrf.mxu0
  %v857 = vadd.f32 0.0, %v856
  %v858 = vpop.f32.mrf.mxu0
  %859 = vmatprep.mubr.f32.mxu0 0.0
  %860 = vmatmul.mubr.f32.gmra.mxu0 %v730
  %v861 = vpop.f32.mrf.mxu0
  %v862 = vadd.f32 0.0, %v861
  %v863 = vpop.f32.mrf.mxu0
  %864 = vmatprep.mubr.f32.mxu0 0.0
  %865 = vmatmul.mubr.f32.gmra.mxu0 %v733
  %v866 = vpop.f32.mrf.mxu0
  %v867 = vadd.f32 0.0, %v866
  %v868 = vpop.f32.mrf.mxu0
  %869 = vmatprep.mubr.f32.mxu0 0.0
  %870 = vmatmul.mubr.f32.gmra.mxu0 %v736
  %v871 = vpop.f32.mrf.mxu0
  %v872 = vadd.f32 0.0, %v871
  %v873 = vpop.f32.mrf.mxu0
  %874 = vmatprep.mubr.f32.mxu0 0.0
  %875 = vmatmul.mubr.f32.gmra.mxu0 %v739
  %v876 = vpop.f32.mrf.mxu0
  %v877 = vadd.f32 0.0, %v876
  %v878 = vpop.f32.mrf.mxu0
  %879 = vmatprep.mubr.f32.mxu0 0.0
  %880 = vmatmul.mubr.f32.gmra.mxu0 %v742
  %v881 = vpop.f32.mrf.mxu0
  %v882 = vadd.f32 0.0, %v881
  %v883 = vpop.f32.mrf.mxu0
  %884 = vmatprep.mubr.f32.mxu0 0.0
  %885 = vmatmul.mubr.f32.gmra.mxu0 %v745
  %v886 = vpop.f32.mrf.mxu0
  %v887 = vadd.f32 0.0, %v886
  %v888 = vpop.f32.mrf.mxu0
  %889 = vmatprep.mubr.f32.mxu0 0.0
  %890 = vmatmul.mubr.f32.gmra.mxu0 %v748
  %v891 = vpop.f32.mrf.mxu0
  %v892 = vadd.f32 0.0, %v891
  %v893 = vpop.f32.mrf.mxu0
  %894 = vdwg.mxu0
  %v895 = vadd.f32 %v817, %v59
  %v896 = vadd.f32 %v822, %v60
  %v897 = vadd.f32 %v827, %v61
  %v898 = vadd.f32 %v832, %v62
  %v899 = vadd.f32 %v837, %v63
  %v900 = vadd.f32 %v842, %v64
  %v901 = vadd.f32 %v847, %v65
  %v902 = vadd.f32 %v852, %v66
  %v903 = vadd.f32 %v857, %v67
  %v904 = vadd.f32 %v862, %v68
  %v905 = vadd.f32 %v867, %v69
  %v906 = vadd.f32 %v872, %v70
  %v907 = vadd.f32 %v877, %v71
  %v908 = vadd.f32 %v882, %v72
  %v909 = vadd.f32 %v887, %v73
  %v910 = vadd.f32 %v892, %v74
  %v911 = vsel %vm136, %v895, -inf
  %v912 = vrot.slane %v911, 4
  %v913 = vmax.f32 %v911, %v912
  %v914 = vrot.slane %v913, 2
  %v915 = vmax.f32 %v913, %v914
  %v916 = vrot.slane %v915, 1
  %v917 = vmax.f32 %v915, %v916
  %v918 = vsel %vm136, %v896, -inf
  %v919 = vrot.slane %v918, 4
  %v920 = vmax.f32 %v918, %v919
  %v921 = vrot.slane %v920, 2
  %v922 = vmax.f32 %v920, %v921
  %v923 = vrot.slane %v922, 1
  %v924 = vmax.f32 %v922, %v923
  %v925 = vsel %vm136, %v897, -inf
  %v926 = vrot.slane %v925, 4
  %v927 = vmax.f32 %v925, %v926
  %v928 = vrot.slane %v927, 2
  %v929 = vmax.f32 %v927, %v928
  %v930 = vrot.slane %v929, 1
  %v931 = vmax.f32 %v929, %v930
  %v932 = vsel %vm136, %v898, -inf
  %v933 = vrot.slane %v932, 4
  %v934 = vmax.f32 %v932, %v933
  %v935 = vrot.slane %v934, 2
  %v936 = vmax.f32 %v934, %v935
  %v937 = vrot.slane %v936, 1
  %v938 = vmax.f32 %v936, %v937
  %v939 = vsel %vm136, %v899, -inf
  %v940 = vrot.slane %v939, 4
  %v941 = vmax.f32 %v939, %v940
  %v942 = vrot.slane %v941, 2
  %v943 = vmax.f32 %v941, %v942
  %v944 = vrot.slane %v943, 1
  %v945 = vmax.f32 %v943, %v944
  %v946 = vsel %vm136, %v900, -inf
  %v947 = vrot.slane %v946, 4
  %v948 = vmax.f32 %v946, %v947
  %v949 = vrot.slane %v948, 2
  %v950 = vmax.f32 %v948, %v949
  %v951 = vrot.slane %v950, 1
  %v952 = vmax.f32 %v950, %v951
  %v953 = vsel %vm136, %v901, -inf
  %v954 = vrot.slane %v953, 4
  %v955 = vmax.f32 %v953, %v954
  %v956 = vrot.slane %v955, 2
  %v957 = vmax.f32 %v955, %v956
  %v958 = vrot.slane %v957, 1
  %v959 = vmax.f32 %v957, %v958
  %v960 = vsel %vm136, %v902, -inf
  %v961 = vrot.slane %v960, 4
  %v962 = vmax.f32 %v960, %v961
  %v963 = vrot.slane %v962, 2
  %v964 = vmax.f32 %v962, %v963
  %v965 = vrot.slane %v964, 1
  %v966 = vmax.f32 %v964, %v965
  %v967 = vsel %vm136, %v903, -inf
  %v968 = vrot.slane %v967, 4
  %v969 = vmax.f32 %v967, %v968
  %v970 = vrot.slane %v969, 2
  %v971 = vmax.f32 %v969, %v970
  %v972 = vrot.slane %v971, 1
  %v973 = vmax.f32 %v971, %v972
  %v974 = vsel %vm136, %v904, -inf
  %v975 = vrot.slane %v974, 4
  %v976 = vmax.f32 %v974, %v975
  %v977 = vrot.slane %v976, 2
  %v978 = vmax.f32 %v976, %v977
  %v979 = vrot.slane %v978, 1
  %v980 = vmax.f32 %v978, %v979
  %v981 = vsel %vm136, %v905, -inf
  %v982 = vrot.slane %v981, 4
  %v983 = vmax.f32 %v981, %v982
  %v984 = vrot.slane %v983, 2
  %v985 = vmax.f32 %v983, %v984
  %v986 = vrot.slane %v985, 1
  %v987 = vmax.f32 %v985, %v986
  %v988 = vsel %vm136, %v906, -inf
  %v989 = vrot.slane %v988, 4
  %v990 = vmax.f32 %v988, %v989
  %v991 = vrot.slane %v990, 2
  %v992 = vmax.f32 %v990, %v991
  %v993 = vrot.slane %v992, 1
  %v994 = vmax.f32 %v992, %v993
  %v995 = vsel %vm136, %v907, -inf
  %v996 = vrot.slane %v995, 4
  %v997 = vmax.f32 %v995, %v996
  %v998 = vrot.slane %v997, 2
  %v999 = vmax.f32 %v997, %v998
  %v1000 = vrot.slane %v999, 1
  %v1001 = vmax.f32 %v999, %v1000
  %v1002 = vsel %vm136, %v908, -inf
  %v1003 = vrot.slane %v1002, 4
  %v1004 = vmax.f32 %v1002, %v1003
  %v1005 = vrot.slane %v1004, 2
  %v1006 = vmax.f32 %v1004, %v1005
  %v1007 = vrot.slane %v1006, 1
  %v1008 = vmax.f32 %v1006, %v1007
  %v1009 = vsel %vm136, %v909, -inf
  %v1010 = vrot.slane %v1009, 4
  %v1011 = vmax.f32 %v1009, %v1010
  %v1012 = vrot.slane %v1011, 2
  %v1013 = vmax.f32 %v1011, %v1012
  %v1014 = vrot.slane %v1013, 1
  %v1015 = vmax.f32 %v1013, %v1014
  %v1016 = vsel %vm136, %v910, -inf
  %v1017 = vrot.slane %v1016, 4
  %v1018 = vmax.f32 %v1016, %v1017
  %v1019 = vrot.slane %v1018, 2
  %v1020 = vmax.f32 %v1018, %v1019
  %v1021 = vrot.slane %v1020, 1
  %v1022 = vmax.f32 %v1020, %v1021
  %v1023 = vsub.f32 %v895, %v917
  %v1024 = vsub.f32 %v896, %v924
  %v1025 = vsub.f32 %v897, %v931
  %v1026 = vsub.f32 %v898, %v938
  %v1027 = vsub.f32 %v899, %v945
  %v1028 = vsub.f32 %v900, %v952
  %v1029 = vsub.f32 %v901, %v959
  %v1030 = vsub.f32 %v902, %v966
  %v1031 = vsub.f32 %v903, %v973
  %v1032 = vsub.f32 %v904, %v980
  %v1033 = vsub.f32 %v905, %v987
  %v1034 = vsub.f32 %v906, %v994
  %v1035 = vsub.f32 %v907, %v1001
  %v1036 = vsub.f32 %v908, %v1008
  %v1037 = vsub.f32 %v909, %v1015
  %v1038 = vsub.f32 %v910, %v1022
  %v1039 = vmul.f32 %v1023, 1.442695
  %v1040 = vpow.pop %v1039
  %v1041 = vmul.f32 %v1024, 1.442695
  %v1042 = vpow.pop %v1041
  %v1043 = vmul.f32 %v1025, 1.442695
  %v1044 = vpow.pop %v1043
  %v1045 = vmul.f32 %v1026, 1.442695
  %v1046 = vpow.pop %v1045
  %v1047 = vmul.f32 %v1027, 1.442695
  %v1048 = vpow.pop %v1047
  %v1049 = vmul.f32 %v1028, 1.442695
  %v1050 = vpow.pop %v1049
  %v1051 = vmul.f32 %v1029, 1.442695
  %v1052 = vpow.pop %v1051
  %v1053 = vmul.f32 %v1030, 1.442695
  %v1054 = vpow.pop %v1053
  %v1055 = vmul.f32 %v1031, 1.442695
  %v1056 = vpow.pop %v1055
  %v1057 = vmul.f32 %v1032, 1.442695
  %v1058 = vpow.pop %v1057
  %v1059 = vmul.f32 %v1033, 1.442695
  %v1060 = vpow.pop %v1059
  %v1061 = vmul.f32 %v1034, 1.442695
  %v1062 = vpow.pop %v1061
  %v1063 = vmul.f32 %v1035, 1.442695
  %v1064 = vpow.pop %v1063
  %v1065 = vmul.f32 %v1036, 1.442695
  %v1066 = vpow.pop %v1065
  %v1067 = vmul.f32 %v1037, 1.442695
  %v1068 = vpow.pop %v1067
  %v1069 = vmul.f32 %v1038, 1.442695
  %v1070 = vpow.pop %v1069
  %v1071 = vsel %vm136, %v1040, 0.0
  %v1072 = vrot.slane %v1071, 4
  %v1073 = vadd.f32 %v1071, %v1072
  %v1074 = vrot.slane %v1073, 2
  %v1075 = vadd.f32 %v1073, %v1074
  %v1076 = vrot.slane %v1075, 1
  %v1077 = vadd.f32 %v1075, %v1076
  %v1078 = vsel %vm136, %v1042, 0.0
  %v1079 = vrot.slane %v1078, 4
  %v1080 = vadd.f32 %v1078, %v1079
  %v1081 = vrot.slane %v1080, 2
  %v1082 = vadd.f32 %v1080, %v1081
  %v1083 = vrot.slane %v1082, 1
  %v1084 = vadd.f32 %v1082, %v1083
  %v1085 = vsel %vm136, %v1044, 0.0
  %v1086 = vrot.slane %v1085, 4
  %v1087 = vadd.f32 %v1085, %v1086
  %v1088 = vrot.slane %v1087, 2
  %v1089 = vadd.f32 %v1087, %v1088
  %v1090 = vrot.slane %v1089, 1
  %v1091 = vadd.f32 %v1089, %v1090
  %v1092 = vsel %vm136, %v1046, 0.0
  %v1093 = vrot.slane %v1092, 4
  %v1094 = vadd.f32 %v1092, %v1093
  %v1095 = vrot.slane %v1094, 2
  %v1096 = vadd.f32 %v1094, %v1095
  %v1097 = vrot.slane %v1096, 1
  %v1098 = vadd.f32 %v1096, %v1097
  %v1099 = vsel %vm136, %v1048, 0.0
  %v1100 = vrot.slane %v1099, 4
  %v1101 = vadd.f32 %v1099, %v1100
  %v1102 = vrot.slane %v1101, 2
  %v1103 = vadd.f32 %v1101, %v1102
  %v1104 = vrot.slane %v1103, 1
  %v1105 = vadd.f32 %v1103, %v1104
  %v1106 = vsel %vm136, %v1050, 0.0
  %v1107 = vrot.slane %v1106, 4
  %v1108 = vadd.f32 %v1106, %v1107
  %v1109 = vrot.slane %v1108, 2
  %v1110 = vadd.f32 %v1108, %v1109
  %v1111 = vrot.slane %v1110, 1
  %v1112 = vadd.f32 %v1110, %v1111
  %v1113 = vsel %vm136, %v1052, 0.0
  %v1114 = vrot.slane %v1113, 4
  %v1115 = vadd.f32 %v1113, %v1114
  %v1116 = vrot.slane %v1115, 2
  %v1117 = vadd.f32 %v1115, %v1116
  %v1118 = vrot.slane %v1117, 1
  %v1119 = vadd.f32 %v1117, %v1118
  %v1120 = vsel %vm136, %v1054, 0.0
  %v1121 = vrot.slane %v1120, 4
  %v1122 = vadd.f32 %v1120, %v1121
  %v1123 = vrot.slane %v1122, 2
  %v1124 = vadd.f32 %v1122, %v1123
  %v1125 = vrot.slane %v1124, 1
  %v1126 = vadd.f32 %v1124, %v1125
  %v1127 = vsel %vm136, %v1056, 0.0
  %v1128 = vrot.slane %v1127, 4
  %v1129 = vadd.f32 %v1127, %v1128
  %v1130 = vrot.slane %v1129, 2
  %v1131 = vadd.f32 %v1129, %v1130
  %v1132 = vrot.slane %v1131, 1
  %v1133 = vadd.f32 %v1131, %v1132
  %v1134 = vsel %vm136, %v1058, 0.0
  %v1135 = vrot.slane %v1134, 4
  %v1136 = vadd.f32 %v1134, %v1135
  %v1137 = vrot.slane %v1136, 2
  %v1138 = vadd.f32 %v1136, %v1137
  %v1139 = vrot.slane %v1138, 1
  %v1140 = vadd.f32 %v1138, %v1139
  %v1141 = vsel %vm136, %v1060, 0.0
  %v1142 = vrot.slane %v1141, 4
  %v1143 = vadd.f32 %v1141, %v1142
  %v1144 = vrot.slane %v1143, 2
  %v1145 = vadd.f32 %v1143, %v1144
  %v1146 = vrot.slane %v1145, 1
  %v1147 = vadd.f32 %v1145, %v1146
  %v1148 = vsel %vm136, %v1062, 0.0
  %v1149 = vrot.slane %v1148, 4
  %v1150 = vadd.f32 %v1148, %v1149
  %v1151 = vrot.slane %v1150, 2
  %v1152 = vadd.f32 %v1150, %v1151
  %v1153 = vrot.slane %v1152, 1
  %v1154 = vadd.f32 %v1152, %v1153
  %v1155 = vsel %vm136, %v1064, 0.0
  %v1156 = vrot.slane %v1155, 4
  %v1157 = vadd.f32 %v1155, %v1156
  %v1158 = vrot.slane %v1157, 2
  %v1159 = vadd.f32 %v1157, %v1158
  %v1160 = vrot.slane %v1159, 1
  %v1161 = vadd.f32 %v1159, %v1160
  %v1162 = vsel %vm136, %v1066, 0.0
  %v1163 = vrot.slane %v1162, 4
  %v1164 = vadd.f32 %v1162, %v1163
  %v1165 = vrot.slane %v1164, 2
  %v1166 = vadd.f32 %v1164, %v1165
  %v1167 = vrot.slane %v1166, 1
  %v1168 = vadd.f32 %v1166, %v1167
  %v1169 = vsel %vm136, %v1068, 0.0
  %v1170 = vrot.slane %v1169, 4
  %v1171 = vadd.f32 %v1169, %v1170
  %v1172 = vrot.slane %v1171, 2
  %v1173 = vadd.f32 %v1171, %v1172
  %v1174 = vrot.slane %v1173, 1
  %v1175 = vadd.f32 %v1173, %v1174
  %v1176 = vsel %vm136, %v1070, 0.0
  %v1177 = vrot.slane %v1176, 4
  %v1178 = vadd.f32 %v1176, %v1177
  %v1179 = vrot.slane %v1178, 2
  %v1180 = vadd.f32 %v1178, %v1179
  %v1181 = vrot.slane %v1180, 1
  %v1182 = vadd.f32 %v1180, %v1181
  %v1183 = vrcp.pop %v1077
  %v1184 = vmul.f32 %v1040, %v1183
  %v1185 = vrcp.pop %v1084
  %v1186 = vmul.f32 %v1042, %v1185
  %v1187 = vrcp.pop %v1091
  %v1188 = vmul.f32 %v1044, %v1187
  %v1189 = vrcp.pop %v1098
  %v1190 = vmul.f32 %v1046, %v1189
  %v1191 = vrcp.pop %v1105
  %v1192 = vmul.f32 %v1048, %v1191
  %v1193 = vrcp.pop %v1112
  %v1194 = vmul.f32 %v1050, %v1193
  %v1195 = vrcp.pop %v1119
  %v1196 = vmul.f32 %v1052, %v1195
  %v1197 = vrcp.pop %v1126
  %v1198 = vmul.f32 %v1054, %v1197
  %v1199 = vrcp.pop %v1133
  %v1200 = vmul.f32 %v1056, %v1199
  %v1201 = vrcp.pop %v1140
  %v1202 = vmul.f32 %v1058, %v1201
  %v1203 = vrcp.pop %v1147
  %v1204 = vmul.f32 %v1060, %v1203
  %v1205 = vrcp.pop %v1154
  %v1206 = vmul.f32 %v1062, %v1205
  %v1207 = vrcp.pop %v1161
  %v1208 = vmul.f32 %v1064, %v1207
  %v1209 = vrcp.pop %v1168
  %v1210 = vmul.f32 %v1066, %v1209
  %v1211 = vrcp.pop %v1175
  %v1212 = vmul.f32 %v1068, %v1211
  %v1213 = vrcp.pop %v1182
  %v1214 = vmul.f32 %v1070, %v1213
  %1231 = vrot.lane.b32.xlu0 %v270, 64
  %v1232 = vpop.permute.xlu0 %1231
  %1233 = vrot.lane.b32.xlu0 %v276, 64
  %v1234 = vpop.permute.xlu0 %1233
  %1235 = vrot.lane.b32.xlu0 %v282, 64
  %v1236 = vpop.permute.xlu0 %1235
  %1237 = vrot.lane.b32.xlu0 %v288, 64
  %v1238 = vpop.permute.xlu0 %1237
  %1239 = vrot.lane.b32.xlu0 %v294, 64
  %v1240 = vpop.permute.xlu0 %1239
  %1241 = vrot.lane.b32.xlu0 %v300, 64
  %v1242 = vpop.permute.xlu0 %1241
  %1243 = vrot.lane.b32.xlu0 %v306, 64
  %v1244 = vpop.permute.xlu0 %1243
  %1245 = vrot.lane.b32.xlu0 %v312, 64
  %v1246 = vpop.permute.xlu0 %1245
  %1247 = vrot.lane.b32.xlu0 %v318, 64
  %v1248 = vpop.permute.xlu0 %1247
  %1249 = vrot.lane.b32.xlu0 %v324, 64
  %v1250 = vpop.permute.xlu0 %1249
  %1251 = vrot.lane.b32.xlu0 %v330, 64
  %v1252 = vpop.permute.xlu0 %1251
  %1253 = vrot.lane.b32.xlu0 %v336, 64
  %v1254 = vpop.permute.xlu0 %1253
  %1255 = vrot.lane.b32.xlu0 %v342, 64
  %v1256 = vpop.permute.xlu0 %1255
  %1257 = vrot.lane.b32.xlu0 %v348, 64
  %v1258 = vpop.permute.xlu0 %1257
  %1259 = vrot.lane.b32.xlu0 %v354, 64
  %v1260 = vpop.permute.xlu0 %1259
  %1261 = vrot.lane.b32.xlu0 %v360, 64
  %v1262 = vpop.permute.xlu0 %1261
  %v1279 = vadd.f32 %v258, %v1232
  %v1280 = vadd.f32 %v258, %v1234
  %v1281 = vadd.f32 %v258, %v1236
  %v1282 = vadd.f32 %v258, %v1238
  %v1283 = vadd.f32 %v258, %v1240
  %v1284 = vadd.f32 %v258, %v1242
  %v1285 = vadd.f32 %v258, %v1244
  %v1286 = vadd.f32 %v258, %v1246
  %v1287 = vadd.f32 %v263, %v1248
  %v1288 = vadd.f32 %v263, %v1250
  %v1289 = vadd.f32 %v263, %v1252
  %v1290 = vadd.f32 %v263, %v1254
  %v1291 = vadd.f32 %v263, %v1256
  %v1292 = vadd.f32 %v263, %v1258
  %v1293 = vadd.f32 %v263, %v1260
  %v1294 = vadd.f32 %v263, %v1262
  %1311 = vrot.lane.b32.xlu0 %v1279, 64
  %v1312 = vpop.permute.xlu0 %1311
  %1313 = vrot.lane.b32.xlu0 %v1280, 64
  %v1314 = vpop.permute.xlu0 %1313
  %1315 = vrot.lane.b32.xlu0 %v1281, 64
  %v1316 = vpop.permute.xlu0 %1315
  %1317 = vrot.lane.b32.xlu0 %v1282, 64
  %v1318 = vpop.permute.xlu0 %1317
  %1319 = vrot.lane.b32.xlu0 %v1283, 64
  %v1320 = vpop.permute.xlu0 %1319
  %1321 = vrot.lane.b32.xlu0 %v1284, 64
  %v1322 = vpop.permute.xlu0 %1321
  %1323 = vrot.lane.b32.xlu0 %v1285, 64
  %v1324 = vpop.permute.xlu0 %1323
  %1325 = vrot.lane.b32.xlu0 %v1286, 64
  %v1326 = vpop.permute.xlu0 %1325
  %1327 = vrot.lane.b32.xlu0 %v1287, 64
  %v1328 = vpop.permute.xlu0 %1327
  %1329 = vrot.lane.b32.xlu0 %v1288, 64
  %v1330 = vpop.permute.xlu0 %1329
  %1331 = vrot.lane.b32.xlu0 %v1289, 64
  %v1332 = vpop.permute.xlu0 %1331
  %1333 = vrot.lane.b32.xlu0 %v1290, 64
  %v1334 = vpop.permute.xlu0 %1333
  %1335 = vrot.lane.b32.xlu0 %v1291, 64
  %v1336 = vpop.permute.xlu0 %1335
  %1337 = vrot.lane.b32.xlu0 %v1292, 64
  %v1338 = vpop.permute.xlu0 %1337
  %1339 = vrot.lane.b32.xlu0 %v1293, 64
  %v1340 = vpop.permute.xlu0 %1339
  %1341 = vrot.lane.b32.xlu0 %v1294, 64
  %v1342 = vpop.permute.xlu0 %1341
  %v1359 = vmul.f32 %v1184, %v1312
  %v1360 = vmul.f32 %v1186, %v1314
  %v1361 = vmul.f32 %v1188, %v1316
  %v1362 = vmul.f32 %v1190, %v1318
  %v1363 = vmul.f32 %v1192, %v1320
  %v1364 = vmul.f32 %v1194, %v1322
  %v1365 = vmul.f32 %v1196, %v1324
  %v1366 = vmul.f32 %v1198, %v1326
  %v1367 = vmul.f32 %v1200, %v1328
  %v1368 = vmul.f32 %v1202, %v1330
  %v1369 = vmul.f32 %v1204, %v1332
  %v1370 = vmul.f32 %v1206, %v1334
  %v1371 = vmul.f32 %v1208, %v1336
  %v1372 = vmul.f32 %v1210, %v1338
  %v1373 = vmul.f32 %v1212, %v1340
  %v1374 = vmul.f32 %v1214, %v1342
  %v1375 = vsel %vm136, %v1359, 0.0
  %v1376 = vrot.slane %v1375, 4
  %v1377 = vadd.f32 %v1375, %v1376
  %v1378 = vrot.slane %v1377, 2
  %v1379 = vadd.f32 %v1377, %v1378
  %v1380 = vrot.slane %v1379, 1
  %v1381 = vadd.f32 %v1379, %v1380
  %v1382 = vsel %vm136, %v1360, 0.0
  %v1383 = vrot.slane %v1382, 4
  %v1384 = vadd.f32 %v1382, %v1383
  %v1385 = vrot.slane %v1384, 2
  %v1386 = vadd.f32 %v1384, %v1385
  %v1387 = vrot.slane %v1386, 1
  %v1388 = vadd.f32 %v1386, %v1387
  %v1389 = vsel %vm136, %v1361, 0.0
  %v1390 = vrot.slane %v1389, 4
  %v1391 = vadd.f32 %v1389, %v1390
  %v1392 = vrot.slane %v1391, 2
  %v1393 = vadd.f32 %v1391, %v1392
  %v1394 = vrot.slane %v1393, 1
  %v1395 = vadd.f32 %v1393, %v1394
  %v1396 = vsel %vm136, %v1362, 0.0
  %v1397 = vrot.slane %v1396, 4
  %v1398 = vadd.f32 %v1396, %v1397
  %v1399 = vrot.slane %v1398, 2
  %v1400 = vadd.f32 %v1398, %v1399
  %v1401 = vrot.slane %v1400, 1
  %v1402 = vadd.f32 %v1400, %v1401
  %v1403 = vsel %vm136, %v1363, 0.0
  %v1404 = vrot.slane %v1403, 4
  %v1405 = vadd.f32 %v1403, %v1404
  %v1406 = vrot.slane %v1405, 2
  %v1407 = vadd.f32 %v1405, %v1406
  %v1408 = vrot.slane %v1407, 1
  %v1409 = vadd.f32 %v1407, %v1408
  %v1410 = vsel %vm136, %v1364, 0.0
  %v1411 = vrot.slane %v1410, 4
  %v1412 = vadd.f32 %v1410, %v1411
  %v1413 = vrot.slane %v1412, 2
  %v1414 = vadd.f32 %v1412, %v1413
  %v1415 = vrot.slane %v1414, 1
  %v1416 = vadd.f32 %v1414, %v1415
  %v1417 = vsel %vm136, %v1365, 0.0
  %v1418 = vrot.slane %v1417, 4
  %v1419 = vadd.f32 %v1417, %v1418
  %v1420 = vrot.slane %v1419, 2
  %v1421 = vadd.f32 %v1419, %v1420
  %v1422 = vrot.slane %v1421, 1
  %v1423 = vadd.f32 %v1421, %v1422
  %v1424 = vsel %vm136, %v1366, 0.0
  %v1425 = vrot.slane %v1424, 4
  %v1426 = vadd.f32 %v1424, %v1425
  %v1427 = vrot.slane %v1426, 2
  %v1428 = vadd.f32 %v1426, %v1427
  %v1429 = vrot.slane %v1428, 1
  %v1430 = vadd.f32 %v1428, %v1429
  %v1431 = vsel %vm136, %v1367, 0.0
  %v1432 = vrot.slane %v1431, 4
  %v1433 = vadd.f32 %v1431, %v1432
  %v1434 = vrot.slane %v1433, 2
  %v1435 = vadd.f32 %v1433, %v1434
  %v1436 = vrot.slane %v1435, 1
  %v1437 = vadd.f32 %v1435, %v1436
  %v1438 = vsel %vm136, %v1368, 0.0
  %v1439 = vrot.slane %v1438, 4
  %v1440 = vadd.f32 %v1438, %v1439
  %v1441 = vrot.slane %v1440, 2
  %v1442 = vadd.f32 %v1440, %v1441
  %v1443 = vrot.slane %v1442, 1
  %v1444 = vadd.f32 %v1442, %v1443
  %v1445 = vsel %vm136, %v1369, 0.0
  %v1446 = vrot.slane %v1445, 4
  %v1447 = vadd.f32 %v1445, %v1446
  %v1448 = vrot.slane %v1447, 2
  %v1449 = vadd.f32 %v1447, %v1448
  %v1450 = vrot.slane %v1449, 1
  %v1451 = vadd.f32 %v1449, %v1450
  %v1452 = vsel %vm136, %v1370, 0.0
  %v1453 = vrot.slane %v1452, 4
  %v1454 = vadd.f32 %v1452, %v1453
  %v1455 = vrot.slane %v1454, 2
  %v1456 = vadd.f32 %v1454, %v1455
  %v1457 = vrot.slane %v1456, 1
  %v1458 = vadd.f32 %v1456, %v1457
  %v1459 = vsel %vm136, %v1371, 0.0
  %v1460 = vrot.slane %v1459, 4
  %v1461 = vadd.f32 %v1459, %v1460
  %v1462 = vrot.slane %v1461, 2
  %v1463 = vadd.f32 %v1461, %v1462
  %v1464 = vrot.slane %v1463, 1
  %v1465 = vadd.f32 %v1463, %v1464
  %v1466 = vsel %vm136, %v1372, 0.0
  %v1467 = vrot.slane %v1466, 4
  %v1468 = vadd.f32 %v1466, %v1467
  %v1469 = vrot.slane %v1468, 2
  %v1470 = vadd.f32 %v1468, %v1469
  %v1471 = vrot.slane %v1470, 1
  %v1472 = vadd.f32 %v1470, %v1471
  %v1473 = vsel %vm136, %v1373, 0.0
  %v1474 = vrot.slane %v1473, 4
  %v1475 = vadd.f32 %v1473, %v1474
  %v1476 = vrot.slane %v1475, 2
  %v1477 = vadd.f32 %v1475, %v1476
  %v1478 = vrot.slane %v1477, 1
  %v1479 = vadd.f32 %v1477, %v1478
  %v1480 = vsel %vm136, %v1374, 0.0
  %v1481 = vrot.slane %v1480, 4
  %v1482 = vadd.f32 %v1480, %v1481
  %v1483 = vrot.slane %v1482, 2
  %v1484 = vadd.f32 %v1482, %v1483
  %v1485 = vrot.slane %v1484, 1
  %v1486 = vadd.f32 %v1484, %v1485
  %v1487 = vld [vmem:[%s5] sm:$0xff]
  %v1488 = vld [vmem:[%s5 + $0x8] sm:$0xff]
  %v1489 = vld [vmem:[%s5 + $0x10] sm:$0xff]
  %v1490 = vld [vmem:[%s5 + $0x18] sm:$0xff]
  %v1491 = vld [vmem:[%s6] sm:$0x1]
  %v1493 = vlaneseq
  %v1494 = vshrl.u32 %v1493, 7
  %v1495 = vsub.s32 0, %v1494
  %v1496 = vrot.slane %v1491, %v1495
  %vm1514 = vcmask 1041409
  %v1515 = vsel %vm1514, %v1388, %v1381
  %vm1516 = vcmask 1042434
  %v1517 = vsel %vm1516, %v1395, %v1515
  %vm1518 = vcmask 1043459
  %v1519 = vsel %vm1518, %v1402, %v1517
  %vm1520 = vcmask 1044484
  %v1521 = vsel %vm1520, %v1409, %v1519
  %vm1522 = vcmask 1045509
  %v1523 = vsel %vm1522, %v1416, %v1521
  %vm1524 = vcmask 1046534
  %v1525 = vsel %vm1524, %v1423, %v1523
  %vm1526 = vcmask 1047559
  %v1527 = vsel %vm1526, %v1430, %v1525
  %v1528 = vsel %vm1514, %v1444, %v1437
  %v1529 = vsel %vm1516, %v1451, %v1528
  %v1530 = vsel %vm1518, %v1458, %v1529
  %v1531 = vsel %vm1520, %v1465, %v1530
  %v1532 = vsel %vm1522, %v1472, %v1531
  %v1533 = vsel %vm1524, %v1479, %v1532
  %v1534 = vsel %vm1526, %v1486, %v1533
  %v1535 = vsel %vm136, %v1527, 0
  %v1537 = vsel %vm136, %v1534, 0
  %1539 = vmatprep.subr.mxu0 0.0
  %1540 = vmatpush1.msra.mxu0 0.0
  %1541 = vmatprep.subr.mxu0 0.0
  %1542 = vmatpush1.msra.mxu0 0.0
  %1543 = vmatprep.subr.mxu0 0.0
  %1544 = vmatpush1.msra.mxu0 0.0
  %1545 = vmatprep.subr.mxu0 0.0
  %1546 = vmatpush1.msra.mxu0 0.0
  %1547 = vmatprep.subr.mxu0 0.0
  %1548 = vmatpush1.msra.mxu0 0.0
  %1549 = vmatprep.subr.mxu0 0.0
  %1550 = vmatpush1.msra.mxu0 0.0
  %1551 = vmatprep.subr.mxu0 0.0
  %1552 = vmatpush1.msra.mxu0 0.0
  %1553 = vmatprep.subr.mxu0 0.0
  %1554 = vmatpush1.msra.mxu0 0.0
  %1555 = vmatprep.subr.mxu0 0.0
  %1556 = vmatpush1.msra.mxu0 0.0
  %1557 = vmatprep.subr.mxu0 0.0
  %1558 = vmatpush1.msra.mxu0 0.0
  %1559 = vmatprep.subr.mxu0 0.0
  %1560 = vmatpush1.msra.mxu0 0.0
  %1561 = vmatprep.subr.mxu0 0.0
  %1562 = vmatpush1.msra.mxu0 0.0
  %1563 = vmatprep.subr.mxu0 0.0
  %1564 = vmatpush1.msra.mxu0 %v1490
  %1565 = vmatprep.subr.mxu0 0.0
  %1566 = vmatpush1.msra.mxu0 %v1489
  %1567 = vmatprep.subr.mxu0 0.0
  %1568 = vmatpush1.msra.mxu0 %v1488
  %1569 = vmatprep.subr.mxu0 0.0
  %1570 = vmatpush1.msra.mxu0 %v1487
  %1571 = vmatprep.subr.mxu0 0.0
  %1572 = vmatpush2.msra.mxu0 0.0
  %1573 = vmatprep.subr.mxu0 0.0
  %1574 = vmatpush2.msra.mxu0 0.0
  %1575 = vmatprep.subr.mxu0 0.0
  %1576 = vmatpush2.msra.mxu0 0.0
  %1577 = vmatprep.subr.mxu0 0.0
  %1578 = vmatpush2.msra.mxu0 0.0
  %1579 = vmatprep.subr.mxu0 0.0
  %1580 = vmatpush2.msra.mxu0 0.0
  %1581 = vmatprep.subr.mxu0 0.0
  %1582 = vmatpush2.msra.mxu0 0.0
  %1583 = vmatprep.subr.mxu0 0.0
  %1584 = vmatpush2.msra.mxu0 0.0
  %1585 = vmatprep.subr.mxu0 0.0
  %1586 = vmatpush2.msra.mxu0 0.0
  %1587 = vmatprep.subr.mxu0 0.0
  %1588 = vmatpush2.msra.mxu0 0.0
  %1589 = vmatprep.subr.mxu0 0.0
  %1590 = vmatpush2.msra.mxu0 0.0
  %1591 = vmatprep.subr.mxu0 0.0
  %1592 = vmatpush2.msra.mxu0 0.0
  %1593 = vmatprep.subr.mxu0 0.0
  %1594 = vmatpush2.msra.mxu0 0.0
  %1595 = vmatprep.subr.mxu0 0.0
  %1596 = vmatpush2.msra.mxu0 0.0
  %1597 = vmatprep.subr.mxu0 0.0
  %1598 = vmatpush2.msra.mxu0 0.0
  %1599 = vmatprep.subr.mxu0 0.0
  %1600 = vmatpush2.msra.mxu0 0.0
  %1601 = vmatprep.subr.mxu0 0.0
  %1602 = vmatpush2.msra.mxu0 0.0
  %1603 = vmatprep.mubr.f32.mxu0 0.0
  %1604 = vmatmul.mubr.f32.gmra.mxu0 %v1535
  %v1605 = vpop.f32.mrf.mxu0
  %v1606 = vadd.f32 %v1496, %v1605
  %v1607 = vpop.f32.mrf.mxu0
  %1608 = vmatprep.mubr.f32.mxu0 0.0
  %1609 = vmatmul.mubr.f32.gmra.mxu0 %v1537
  %v1610 = vpop.f32.mrf.mxu0
  %v1611 = vadd.f32 %v1496, %v1610
  %v1612 = vpop.f32.mrf.mxu0
  %1613 = vdwg.mxu0
  %v1616 = vcombine.high %v1606, %v1606
  %v1618 = vunpack.c.l.s4 1966171168
  %v1619 = vunpack.c.0.s8 %v1618
  %v1620 = vlaneseq
  %v1621 = vshrl.u32 %v1620, 7
  %v1622 = vsub.s32 %v1619, %v1621
  %v1623 = vrot.slane %v1606, %v1622
  %v1625 = vunpack.c.l.s4 1966171168
  %v1626 = vunpack.c.0.s8 %v1625
  %v1627 = vlaneseq
  %v1628 = vshrl.u32 %v1627, 7
  %v1629 = vsub.s32 %v1626, %v1628
  %v1630 = vrot.slane %v1616, %v1629
  %v1631 = vcombine.high %v1623, %v1623
  %v1632 = vcombine.high %v1630, %v1630
  %v1634 = vunpack.c.l.s4 1966171168
  %v1635 = vunpack.c.0.s8 %v1634
  %v1636 = vlaneseq
  %v1637 = vshrl.u32 %v1636, 7
  %v1638 = vsub.s32 %v1635, %v1637
  %v1639 = vrot.slane %v1623, %v1638
  %v1641 = vunpack.c.l.s4 1966171168
  %v1642 = vunpack.c.0.s8 %v1641
  %v1643 = vlaneseq
  %v1644 = vshrl.u32 %v1643, 7
  %v1645 = vsub.s32 %v1642, %v1644
  %v1646 = vrot.slane %v1630, %v1645
  %v1648 = vunpack.c.l.s4 1966171168
  %v1649 = vunpack.c.0.s8 %v1648
  %v1650 = vlaneseq
  %v1651 = vshrl.u32 %v1650, 7
  %v1652 = vsub.s32 %v1649, %v1651
  %v1653 = vrot.slane %v1631, %v1652
  %v1655 = vunpack.c.l.s4 1966171168
  %v1656 = vunpack.c.0.s8 %v1655
  %v1657 = vlaneseq
  %v1658 = vshrl.u32 %v1657, 7
  %v1659 = vsub.s32 %v1656, %v1658
  %v1660 = vrot.slane %v1632, %v1659
  %v1661 = vcombine.high %v1639, %v1639
  %v1662 = vcombine.high %v1646, %v1646
  %v1663 = vcombine.high %v1653, %v1653
  %v1664 = vcombine.high %v1660, %v1660
  %v1665 = vcombine.high %v1611, %v1611
  %v1667 = vunpack.c.l.s4 1966171168
  %v1668 = vunpack.c.0.s8 %v1667
  %v1669 = vlaneseq
  %v1670 = vshrl.u32 %v1669, 7
  %v1671 = vsub.s32 %v1668, %v1670
  %v1672 = vrot.slane %v1611, %v1671
  %v1674 = vunpack.c.l.s4 1966171168
  %v1675 = vunpack.c.0.s8 %v1674
  %v1676 = vlaneseq
  %v1677 = vshrl.u32 %v1676, 7
  %v1678 = vsub.s32 %v1675, %v1677
  %v1679 = vrot.slane %v1665, %v1678
  %v1680 = vcombine.high %v1672, %v1672
  %v1681 = vcombine.high %v1679, %v1679
  %v1683 = vunpack.c.l.s4 1966171168
  %v1684 = vunpack.c.0.s8 %v1683
  %v1685 = vlaneseq
  %v1686 = vshrl.u32 %v1685, 7
  %v1687 = vsub.s32 %v1684, %v1686
  %v1688 = vrot.slane %v1672, %v1687
  %v1690 = vunpack.c.l.s4 1966171168
  %v1691 = vunpack.c.0.s8 %v1690
  %v1692 = vlaneseq
  %v1693 = vshrl.u32 %v1692, 7
  %v1694 = vsub.s32 %v1691, %v1693
  %v1695 = vrot.slane %v1679, %v1694
  %v1697 = vunpack.c.l.s4 1966171168
  %v1698 = vunpack.c.0.s8 %v1697
  %v1699 = vlaneseq
  %v1700 = vshrl.u32 %v1699, 7
  %v1701 = vsub.s32 %v1698, %v1700
  %v1702 = vrot.slane %v1680, %v1701
  %v1704 = vunpack.c.l.s4 1966171168
  %v1705 = vunpack.c.0.s8 %v1704
  %v1706 = vlaneseq
  %v1707 = vshrl.u32 %v1706, 7
  %v1708 = vsub.s32 %v1705, %v1707
  %v1709 = vrot.slane %v1681, %v1708
  %v1710 = vcombine.high %v1688, %v1688
  %v1711 = vcombine.high %v1695, %v1695
  %v1712 = vcombine.high %v1702, %v1702
  %v1713 = vcombine.high %v1709, %v1709
  %v1714 = vlaneseq
  %v1715 = vshrl.u32 %v1714, 7
  %v1716 = vsub.s32 0, %v1715
  %v1717 = vrot.slane %v1639, %v1716
  %v1718 = vlaneseq
  %v1719 = vshrl.u32 %v1718, 7
  %v1720 = vsub.s32 0, %v1719
  %v1721 = vrot.slane %v1653, %v1720
  %v1722 = vlaneseq
  %v1723 = vshrl.u32 %v1722, 7
  %v1724 = vsub.s32 0, %v1723
  %v1725 = vrot.slane %v1661, %v1724
  %v1726 = vlaneseq
  %v1727 = vshrl.u32 %v1726, 7
  %v1728 = vsub.s32 0, %v1727
  %v1729 = vrot.slane %v1663, %v1728
  %v1730 = vlaneseq
  %v1731 = vshrl.u32 %v1730, 7
  %v1732 = vsub.s32 0, %v1731
  %v1733 = vrot.slane %v1646, %v1732
  %v1734 = vlaneseq
  %v1735 = vshrl.u32 %v1734, 7
  %v1736 = vsub.s32 0, %v1735
  %v1737 = vrot.slane %v1660, %v1736
  %v1738 = vlaneseq
  %v1739 = vshrl.u32 %v1738, 7
  %v1740 = vsub.s32 0, %v1739
  %v1741 = vrot.slane %v1662, %v1740
  %v1742 = vlaneseq
  %v1743 = vshrl.u32 %v1742, 7
  %v1744 = vsub.s32 0, %v1743
  %v1745 = vrot.slane %v1664, %v1744
  %v1746 = vlaneseq
  %v1747 = vshrl.u32 %v1746, 7
  %v1748 = vsub.s32 0, %v1747
  %v1749 = vrot.slane %v1688, %v1748
  %v1750 = vlaneseq
  %v1751 = vshrl.u32 %v1750, 7
  %v1752 = vsub.s32 0, %v1751
  %v1753 = vrot.slane %v1702, %v1752
  %v1754 = vlaneseq
  %v1755 = vshrl.u32 %v1754, 7
  %v1756 = vsub.s32 0, %v1755
  %v1757 = vrot.slane %v1710, %v1756
  %v1758 = vlaneseq
  %v1759 = vshrl.u32 %v1758, 7
  %v1760 = vsub.s32 0, %v1759
  %v1761 = vrot.slane %v1712, %v1760
  %v1762 = vlaneseq
  %v1763 = vshrl.u32 %v1762, 7
  %v1764 = vsub.s32 0, %v1763
  %v1765 = vrot.slane %v1695, %v1764
  %v1766 = vlaneseq
  %v1767 = vshrl.u32 %v1766, 7
  %v1768 = vsub.s32 0, %v1767
  %v1769 = vrot.slane %v1709, %v1768
  %v1770 = vlaneseq
  %v1771 = vshrl.u32 %v1770, 7
  %v1772 = vsub.s32 0, %v1771
  %v1773 = vrot.slane %v1711, %v1772
  %v1774 = vlaneseq
  %v1775 = vshrl.u32 %v1774, 7
  %v1776 = vsub.s32 0, %v1775
  %v1777 = vrot.slane %v1713, %v1776
  %1794 = vrot.lane.b32.xlu0 %v1606, 96
  %v1795 = vpop.permute.xlu0 %1794
  %1796 = vrot.lane.b32.xlu0 %v1611, 96
  %v1797 = vpop.permute.xlu0 %1796
  %v1800 = vadd.f32 %v1717, %v1795
  %v1801 = vadd.f32 %v1721, %v1795
  %v1802 = vadd.f32 %v1725, %v1795
  %v1803 = vadd.f32 %v1729, %v1795
  %v1804 = vadd.f32 %v1733, %v1795
  %v1805 = vadd.f32 %v1737, %v1795
  %v1806 = vadd.f32 %v1741, %v1795
  %v1807 = vadd.f32 %v1745, %v1795
  %v1808 = vadd.f32 %v1749, %v1797
  %v1809 = vadd.f32 %v1753, %v1797
  %v1810 = vadd.f32 %v1757, %v1797
  %v1811 = vadd.f32 %v1761, %v1797
  %v1812 = vadd.f32 %v1765, %v1797
  %v1813 = vadd.f32 %v1769, %v1797
  %v1814 = vadd.f32 %v1773, %v1797
  %v1815 = vadd.f32 %v1777, %v1797
  %1832 = vrot.lane.b32.xlu0 %v1800, 96
  %v1833 = vpop.permute.xlu0 %1832
  %1834 = vrot.lane.b32.xlu0 %v1801, 96
  %v1835 = vpop.permute.xlu0 %1834
  %1836 = vrot.lane.b32.xlu0 %v1802, 96
  %v1837 = vpop.permute.xlu0 %1836
  %1838 = vrot.lane.b32.xlu0 %v1803, 96
  %v1839 = vpop.permute.xlu0 %1838
  %1840 = vrot.lane.b32.xlu0 %v1804, 96
  %v1841 = vpop.permute.xlu0 %1840
  %1842 = vrot.lane.b32.xlu0 %v1805, 96
  %v1843 = vpop.permute.xlu0 %1842
  %1844 = vrot.lane.b32.xlu0 %v1806, 96
  %v1845 = vpop.permute.xlu0 %1844
  %1846 = vrot.lane.b32.xlu0 %v1807, 96
  %v1847 = vpop.permute.xlu0 %1846
  %1848 = vrot.lane.b32.xlu0 %v1808, 96
  %v1849 = vpop.permute.xlu0 %1848
  %1850 = vrot.lane.b32.xlu0 %v1809, 96
  %v1851 = vpop.permute.xlu0 %1850
  %1852 = vrot.lane.b32.xlu0 %v1810, 96
  %v1853 = vpop.permute.xlu0 %1852
  %1854 = vrot.lane.b32.xlu0 %v1811, 96
  %v1855 = vpop.permute.xlu0 %1854
  %1856 = vrot.lane.b32.xlu0 %v1812, 96
  %v1857 = vpop.permute.xlu0 %1856
  %1858 = vrot.lane.b32.xlu0 %v1813, 96
  %v1859 = vpop.permute.xlu0 %1858
  %1860 = vrot.lane.b32.xlu0 %v1814, 96
  %v1861 = vpop.permute.xlu0 %1860
  %1862 = vrot.lane.b32.xlu0 %v1815, 96
  %v1863 = vpop.permute.xlu0 %1862
  %v1880 = vadd.f32 %v41, %v1606
  %v1881 = vadd.f32 %v42, %v1611
  %v1882 = vadd.f32 %v43, %v1833
  %v1883 = vadd.f32 %v44, %v1835
  %v1884 = vadd.f32 %v45, %v1837
  %v1885 = vadd.f32 %v46, %v1839
  %v1886 = vadd.f32 %v47, %v1841
  %v1887 = vadd.f32 %v48, %v1843
  %v1888 = vadd.f32 %v49, %v1845
  %v1889 = vadd.f32 %v50, %v1847
  %v1890 = vadd.f32 %v51, %v1849
  %v1891 = vadd.f32 %v52, %v1851
  %v1892 = vadd.f32 %v53, %v1853
  %v1893 = vadd.f32 %v54, %v1855
  %v1894 = vadd.f32 %v55, %v1857
  %v1895 = vadd.f32 %v56, %v1859
  %v1896 = vadd.f32 %v57, %v1861
  %v1897 = vadd.f32 %v58, %v1863
  %v1898 = vld [vmem:[%s11] sm:$0x1]
  %s1899 = scalar_lea.vmem %s11, 2
  %v1900 = vld [vmem:[%s1899] sm:$0x1]
  %v1901 = vsel %vm98, 1, 0
  %v1902 = vsel %vm99, 1, 0
  %v1903 = vsel %vm100, 1, 0
  %v1904 = vsel %vm101, 1, 0
  %v1905 = vsel %vm102, 1, 0
  %v1906 = vsel %vm103, 1, 0
  %v1907 = vsel %vm104, 1, 0
  %v1908 = vsel %vm105, 1, 0
  %v1909 = vsel %vm106, 1, 0
  %v1910 = vsel %vm107, 1, 0
  %v1911 = vsel %vm108, 1, 0
  %v1912 = vsel %vm109, 1, 0
  %v1913 = vsel %vm110, 1, 0
  %v1914 = vsel %vm111, 1, 0
  %v1915 = vsel %vm112, 1, 0
  %v1916 = vsel %vm113, 1, 0
  %v1917 = vsel %vm114, 1, 0
  %v1918 = vsel %vm115, 1, 0
  %vm1919 = vcmp.eq.s32.totalorder %v1901, 1
  %vm1920 = vcmp.eq.s32.totalorder %v1902, 1
  %vm1921 = vcmp.eq.s32.totalorder %v1903, 1
  %vm1922 = vcmp.eq.s32.totalorder %v1904, 1
  %vm1923 = vcmp.eq.s32.totalorder %v1905, 1
  %vm1924 = vcmp.eq.s32.totalorder %v1906, 1
  %vm1925 = vcmp.eq.s32.totalorder %v1907, 1
  %vm1926 = vcmp.eq.s32.totalorder %v1908, 1
  %vm1927 = vcmp.eq.s32.totalorder %v1909, 1
  %vm1928 = vcmp.eq.s32.totalorder %v1910, 1
  %vm1929 = vcmp.eq.s32.totalorder %v1911, 1
  %vm1930 = vcmp.eq.s32.totalorder %v1912, 1
  %vm1931 = vcmp.eq.s32.totalorder %v1913, 1
  %vm1932 = vcmp.eq.s32.totalorder %v1914, 1
  %vm1933 = vcmp.eq.s32.totalorder %v1915, 1
  %vm1934 = vcmp.eq.s32.totalorder %v1916, 1
  %vm1935 = vcmp.eq.s32.totalorder %v1917, 1
  %vm1936 = vcmp.eq.s32.totalorder %v1918, 1
  %v1938 = vlaneseq
  %v1939 = vshrl.u32 %v1938, 7
  %v1940 = vsub.s32 0, %v1939
  %v1941 = vrot.slane %v1898, %v1940
  %v1944 = vlaneseq
  %v1945 = vshrl.u32 %v1944, 7
  %v1946 = vsub.s32 0, %v1945
  %v1947 = vrot.slane %v1900, %v1946
  %v1949 = vsel %vm1919, %v1941, %v1947
  %v1950 = vsel %vm1920, %v1941, %v1947
  %v1951 = vsel %vm1921, %v1941, %v1947
  %v1952 = vsel %vm1922, %v1941, %v1947
  %v1953 = vsel %vm1923, %v1941, %v1947
  %v1954 = vsel %vm1924, %v1941, %v1947
  %v1955 = vsel %vm1925, %v1941, %v1947
  %v1956 = vsel %vm1926, %v1941, %v1947
  %v1957 = vsel %vm1927, %v1941, %v1947
  %v1958 = vsel %vm1928, %v1941, %v1947
  %v1959 = vsel %vm1929, %v1941, %v1947
  %v1960 = vsel %vm1930, %v1941, %v1947
  %v1961 = vsel %vm1931, %v1941, %v1947
  %v1962 = vsel %vm1932, %v1941, %v1947
  %v1963 = vsel %vm1933, %v1941, %v1947
  %v1964 = vsel %vm1934, %v1941, %v1947
  %v1965 = vsel %vm1935, %v1941, %v1947
  %v1966 = vsel %vm1936, %v1941, %v1947
  %s1967 = scalar_lea.vmem %s11, 4
  %v1968 = vld [vmem:[%s1967] sm:$0x1]
  %s1969 = scalar_lea.vmem %s11, 6
  %v1970 = vld [vmem:[%s1969] sm:$0x1]
  %v1972 = vlaneseq
  %v1973 = vshrl.u32 %v1972, 7
  %v1974 = vsub.s32 0, %v1973
  %v1975 = vrot.slane %v1968, %v1974
  %v1978 = vlaneseq
  %v1979 = vshrl.u32 %v1978, 7
  %v1980 = vsub.s32 0, %v1979
  %v1981 = vrot.slane %v1970, %v1980
  %v1983 = vsel %vm1919, %v1975, %v1981
  %v1984 = vsel %vm1920, %v1975, %v1981
  %v1985 = vsel %vm1921, %v1975, %v1981
  %v1986 = vsel %vm1922, %v1975, %v1981
  %v1987 = vsel %vm1923, %v1975, %v1981
  %v1988 = vsel %vm1924, %v1975, %v1981
  %v1989 = vsel %vm1925, %v1975, %v1981
  %v1990 = vsel %vm1926, %v1975, %v1981
  %v1991 = vsel %vm1927, %v1975, %v1981
  %v1992 = vsel %vm1928, %v1975, %v1981
  %v1993 = vsel %vm1929, %v1975, %v1981
  %v1994 = vsel %vm1930, %v1975, %v1981
  %v1995 = vsel %vm1931, %v1975, %v1981
  %v1996 = vsel %vm1932, %v1975, %v1981
  %v1997 = vsel %vm1933, %v1975, %v1981
  %v1998 = vsel %vm1934, %v1975, %v1981
  %v1999 = vsel %vm1935, %v1975, %v1981
  %v2000 = vsel %vm1936, %v1975, %v1981
  %v2001 = vsel %vm136, %v1880, 0.0
  %2002 = vadd.xlane.f32.xlu0 %v2001
  %v2003 = vpop.xlane.xlu0 %2002
  %v2004 = vsel %vm136, %v1881, 0.0
  %2005 = vadd.xlane.f32.xlu0 %v2004
  %v2006 = vpop.xlane.xlu0 %2005
  %v2007 = vsel %vm136, %v1882, 0.0
  %2008 = vadd.xlane.f32.xlu0 %v2007
  %v2009 = vpop.xlane.xlu0 %2008
  %v2010 = vsel %vm136, %v1883, 0.0
  %2011 = vadd.xlane.f32.xlu0 %v2010
  %v2012 = vpop.xlane.xlu0 %2011
  %v2013 = vsel %vm136, %v1884, 0.0
  %2014 = vadd.xlane.f32.xlu0 %v2013
  %v2015 = vpop.xlane.xlu0 %2014
  %v2016 = vsel %vm136, %v1885, 0.0
  %2017 = vadd.xlane.f32.xlu0 %v2016
  %v2018 = vpop.xlane.xlu0 %2017
  %v2019 = vsel %vm136, %v1886, 0.0
  %2020 = vadd.xlane.f32.xlu0 %v2019
  %v2021 = vpop.xlane.xlu0 %2020
  %v2022 = vsel %vm136, %v1887, 0.0
  %2023 = vadd.xlane.f32.xlu0 %v2022
  %v2024 = vpop.xlane.xlu0 %2023
  %v2025 = vsel %vm136, %v1888, 0.0
  %2026 = vadd.xlane.f32.xlu0 %v2025
  %v2027 = vpop.xlane.xlu0 %2026
  %v2028 = vsel %vm136, %v1889, 0.0
  %2029 = vadd.xlane.f32.xlu0 %v2028
  %v2030 = vpop.xlane.xlu0 %2029
  %v2031 = vsel %vm136, %v1890, 0.0
  %2032 = vadd.xlane.f32.xlu0 %v2031
  %v2033 = vpop.xlane.xlu0 %2032
  %v2034 = vsel %vm136, %v1891, 0.0
  %2035 = vadd.xlane.f32.xlu0 %v2034
  %v2036 = vpop.xlane.xlu0 %2035
  %v2037 = vsel %vm136, %v1892, 0.0
  %2038 = vadd.xlane.f32.xlu0 %v2037
  %v2039 = vpop.xlane.xlu0 %2038
  %v2040 = vsel %vm136, %v1893, 0.0
  %2041 = vadd.xlane.f32.xlu0 %v2040
  %v2042 = vpop.xlane.xlu0 %2041
  %v2043 = vsel %vm136, %v1894, 0.0
  %2044 = vadd.xlane.f32.xlu0 %v2043
  %v2045 = vpop.xlane.xlu0 %2044
  %v2046 = vsel %vm136, %v1895, 0.0
  %2047 = vadd.xlane.f32.xlu0 %v2046
  %v2048 = vpop.xlane.xlu0 %2047
  %v2049 = vsel %vm136, %v1896, 0.0
  %2050 = vadd.xlane.f32.xlu0 %v2049
  %v2051 = vpop.xlane.xlu0 %2050
  %v2052 = vsel %vm136, %v1897, 0.0
  %2053 = vadd.xlane.f32.xlu0 %v2052
  %v2054 = vpop.xlane.xlu0 %2053
  %v2055 = vrcp.pop 32.0
  %v2056 = vmul.f32 %v2003, %v2055
  %v2057 = vmul.f32 %v2006, %v2055
  %v2058 = vmul.f32 %v2009, %v2055
  %v2059 = vmul.f32 %v2012, %v2055
  %v2060 = vmul.f32 %v2015, %v2055
  %v2061 = vmul.f32 %v2018, %v2055
  %v2062 = vmul.f32 %v2021, %v2055
  %v2063 = vmul.f32 %v2024, %v2055
  %v2064 = vmul.f32 %v2027, %v2055
  %v2065 = vmul.f32 %v2030, %v2055
  %v2066 = vmul.f32 %v2033, %v2055
  %v2067 = vmul.f32 %v2036, %v2055
  %v2068 = vmul.f32 %v2039, %v2055
  %v2069 = vmul.f32 %v2042, %v2055
  %v2070 = vmul.f32 %v2045, %v2055
  %v2071 = vmul.f32 %v2048, %v2055
  %v2072 = vmul.f32 %v2051, %v2055
  %v2073 = vmul.f32 %v2054, %v2055
  %v2074 = vsub.f32 %v1880, %v2056
  %v2075 = vsub.f32 %v1881, %v2057
  %v2076 = vsub.f32 %v1882, %v2058
  %v2077 = vsub.f32 %v1883, %v2059
  %v2078 = vsub.f32 %v1884, %v2060
  %v2079 = vsub.f32 %v1885, %v2061
  %v2080 = vsub.f32 %v1886, %v2062
  %v2081 = vsub.f32 %v1887, %v2063
  %v2082 = vsub.f32 %v1888, %v2064
  %v2083 = vsub.f32 %v1889, %v2065
  %v2084 = vsub.f32 %v1890, %v2066
  %v2085 = vsub.f32 %v1891, %v2067
  %v2086 = vsub.f32 %v1892, %v2068
  %v2087 = vsub.f32 %v1893, %v2069
  %v2088 = vsub.f32 %v1894, %v2070
  %v2089 = vsub.f32 %v1895, %v2071
  %v2090 = vsub.f32 %v1896, %v2072
  %v2091 = vsub.f32 %v1897, %v2073
  %v2092 = vmul.f32 %v2074, %v2074
  %v2093 = vmul.f32 %v2075, %v2075
  %v2094 = vmul.f32 %v2076, %v2076
  %v2095 = vmul.f32 %v2077, %v2077
  %v2096 = vmul.f32 %v2078, %v2078
  %v2097 = vmul.f32 %v2079, %v2079
  %v2098 = vmul.f32 %v2080, %v2080
  %v2099 = vmul.f32 %v2081, %v2081
  %v2100 = vmul.f32 %v2082, %v2082
  %v2101 = vmul.f32 %v2083, %v2083
  %v2102 = vmul.f32 %v2084, %v2084
  %v2103 = vmul.f32 %v2085, %v2085
  %v2104 = vmul.f32 %v2086, %v2086
  %v2105 = vmul.f32 %v2087, %v2087
  %v2106 = vmul.f32 %v2088, %v2088
  %v2107 = vmul.f32 %v2089, %v2089
  %v2108 = vmul.f32 %v2090, %v2090
  %v2109 = vmul.f32 %v2091, %v2091
  %v2110 = vsel %vm136, %v2092, 0.0
  %2111 = vadd.xlane.f32.xlu0 %v2110
  %v2112 = vpop.xlane.xlu0 %2111
  %v2113 = vsel %vm136, %v2093, 0.0
  %2114 = vadd.xlane.f32.xlu0 %v2113
  %v2115 = vpop.xlane.xlu0 %2114
  %v2116 = vsel %vm136, %v2094, 0.0
  %2117 = vadd.xlane.f32.xlu0 %v2116
  %v2118 = vpop.xlane.xlu0 %2117
  %v2119 = vsel %vm136, %v2095, 0.0
  %2120 = vadd.xlane.f32.xlu0 %v2119
  %v2121 = vpop.xlane.xlu0 %2120
  %v2122 = vsel %vm136, %v2096, 0.0
  %2123 = vadd.xlane.f32.xlu0 %v2122
  %v2124 = vpop.xlane.xlu0 %2123
  %v2125 = vsel %vm136, %v2097, 0.0
  %2126 = vadd.xlane.f32.xlu0 %v2125
  %v2127 = vpop.xlane.xlu0 %2126
  %v2128 = vsel %vm136, %v2098, 0.0
  %2129 = vadd.xlane.f32.xlu0 %v2128
  %v2130 = vpop.xlane.xlu0 %2129
  %v2131 = vsel %vm136, %v2099, 0.0
  %2132 = vadd.xlane.f32.xlu0 %v2131
  %v2133 = vpop.xlane.xlu0 %2132
  %v2134 = vsel %vm136, %v2100, 0.0
  %2135 = vadd.xlane.f32.xlu0 %v2134
  %v2136 = vpop.xlane.xlu0 %2135
  %v2137 = vsel %vm136, %v2101, 0.0
  %2138 = vadd.xlane.f32.xlu0 %v2137
  %v2139 = vpop.xlane.xlu0 %2138
  %v2140 = vsel %vm136, %v2102, 0.0
  %2141 = vadd.xlane.f32.xlu0 %v2140
  %v2142 = vpop.xlane.xlu0 %2141
  %v2143 = vsel %vm136, %v2103, 0.0
  %2144 = vadd.xlane.f32.xlu0 %v2143
  %v2145 = vpop.xlane.xlu0 %2144
  %v2146 = vsel %vm136, %v2104, 0.0
  %2147 = vadd.xlane.f32.xlu0 %v2146
  %v2148 = vpop.xlane.xlu0 %2147
  %v2149 = vsel %vm136, %v2105, 0.0
  %2150 = vadd.xlane.f32.xlu0 %v2149
  %v2151 = vpop.xlane.xlu0 %2150
  %v2152 = vsel %vm136, %v2106, 0.0
  %2153 = vadd.xlane.f32.xlu0 %v2152
  %v2154 = vpop.xlane.xlu0 %2153
  %v2155 = vsel %vm136, %v2107, 0.0
  %2156 = vadd.xlane.f32.xlu0 %v2155
  %v2157 = vpop.xlane.xlu0 %2156
  %v2158 = vsel %vm136, %v2108, 0.0
  %2159 = vadd.xlane.f32.xlu0 %v2158
  %v2160 = vpop.xlane.xlu0 %2159
  %v2161 = vsel %vm136, %v2109, 0.0
  %2162 = vadd.xlane.f32.xlu0 %v2161
  %v2163 = vpop.xlane.xlu0 %2162
  %v2164 = vmul.f32 %v2112, %v2055
  %v2165 = vmul.f32 %v2115, %v2055
  %v2166 = vmul.f32 %v2118, %v2055
  %v2167 = vmul.f32 %v2121, %v2055
  %v2168 = vmul.f32 %v2124, %v2055
  %v2169 = vmul.f32 %v2127, %v2055
  %v2170 = vmul.f32 %v2130, %v2055
  %v2171 = vmul.f32 %v2133, %v2055
  %v2172 = vmul.f32 %v2136, %v2055
  %v2173 = vmul.f32 %v2139, %v2055
  %v2174 = vmul.f32 %v2142, %v2055
  %v2175 = vmul.f32 %v2145, %v2055
  %v2176 = vmul.f32 %v2148, %v2055
  %v2177 = vmul.f32 %v2151, %v2055
  %v2178 = vmul.f32 %v2154, %v2055
  %v2179 = vmul.f32 %v2157, %v2055
  %v2180 = vmul.f32 %v2160, %v2055
  %v2181 = vmul.f32 %v2163, %v2055
  %v2182 = vadd.f32 %v2164, 1e-05
  %v2183 = vadd.f32 %v2165, 1e-05
  %v2184 = vadd.f32 %v2166, 1e-05
  %v2185 = vadd.f32 %v2167, 1e-05
  %v2186 = vadd.f32 %v2168, 1e-05
  %v2187 = vadd.f32 %v2169, 1e-05
  %v2188 = vadd.f32 %v2170, 1e-05
  %v2189 = vadd.f32 %v2171, 1e-05
  %v2190 = vadd.f32 %v2172, 1e-05
  %v2191 = vadd.f32 %v2173, 1e-05
  %v2192 = vadd.f32 %v2174, 1e-05
  %v2193 = vadd.f32 %v2175, 1e-05
  %v2194 = vadd.f32 %v2176, 1e-05
  %v2195 = vadd.f32 %v2177, 1e-05
  %v2196 = vadd.f32 %v2178, 1e-05
  %v2197 = vadd.f32 %v2179, 1e-05
  %v2198 = vadd.f32 %v2180, 1e-05
  %v2199 = vadd.f32 %v2181, 1e-05
  %v2200 = vrsqrt.pop %v2182
  %v2201 = vrsqrt.pop %v2183
  %v2202 = vrsqrt.pop %v2184
  %v2203 = vrsqrt.pop %v2185
  %v2204 = vrsqrt.pop %v2186
  %v2205 = vrsqrt.pop %v2187
  %v2206 = vrsqrt.pop %v2188
  %v2207 = vrsqrt.pop %v2189
  %v2208 = vrsqrt.pop %v2190
  %v2209 = vrsqrt.pop %v2191
  %v2210 = vrsqrt.pop %v2192
  %v2211 = vrsqrt.pop %v2193
  %v2212 = vrsqrt.pop %v2194
  %v2213 = vrsqrt.pop %v2195
  %v2214 = vrsqrt.pop %v2196
  %v2215 = vrsqrt.pop %v2197
  %v2216 = vrsqrt.pop %v2198
  %v2217 = vrsqrt.pop %v2199
  %v2218 = vmul.f32 %v2074, %v2200
  %v2219 = vmul.f32 %v2075, %v2201
  %v2220 = vmul.f32 %v2076, %v2202
  %v2221 = vmul.f32 %v2077, %v2203
  %v2222 = vmul.f32 %v2078, %v2204
  %v2223 = vmul.f32 %v2079, %v2205
  %v2224 = vmul.f32 %v2080, %v2206
  %v2225 = vmul.f32 %v2081, %v2207
  %v2226 = vmul.f32 %v2082, %v2208
  %v2227 = vmul.f32 %v2083, %v2209
  %v2228 = vmul.f32 %v2084, %v2210
  %v2229 = vmul.f32 %v2085, %v2211
  %v2230 = vmul.f32 %v2086, %v2212
  %v2231 = vmul.f32 %v2087, %v2213
  %v2232 = vmul.f32 %v2088, %v2214
  %v2233 = vmul.f32 %v2089, %v2215
  %v2234 = vmul.f32 %v2090, %v2216
  %v2235 = vmul.f32 %v2091, %v2217
  %v2236 = vmul.f32 %v2218, %v1949
  %v2237 = vmul.f32 %v2219, %v1950
  %v2238 = vmul.f32 %v2220, %v1951
  %v2239 = vmul.f32 %v2221, %v1952
  %v2240 = vmul.f32 %v2222, %v1953
  %v2241 = vmul.f32 %v2223, %v1954
  %v2242 = vmul.f32 %v2224, %v1955
  %v2243 = vmul.f32 %v2225, %v1956
  %v2244 = vmul.f32 %v2226, %v1957
  %v2245 = vmul.f32 %v2227, %v1958
  %v2246 = vmul.f32 %v2228, %v1959
  %v2247 = vmul.f32 %v2229, %v1960
  %v2248 = vmul.f32 %v2230, %v1961
  %v2249 = vmul.f32 %v2231, %v1962
  %v2250 = vmul.f32 %v2232, %v1963
  %v2251 = vmul.f32 %v2233, %v1964
  %v2252 = vmul.f32 %v2234, %v1965
  %v2253 = vmul.f32 %v2235, %v1966
  %v2254 = vadd.f32 %v2236, %v1983
  %v2255 = vadd.f32 %v2237, %v1984
  %v2256 = vadd.f32 %v2238, %v1985
  %v2257 = vadd.f32 %v2239, %v1986
  %v2258 = vadd.f32 %v2240, %v1987
  %v2259 = vadd.f32 %v2241, %v1988
  %v2260 = vadd.f32 %v2242, %v1989
  %v2261 = vadd.f32 %v2243, %v1990
  %v2262 = vadd.f32 %v2244, %v1991
  %v2263 = vadd.f32 %v2245, %v1992
  %v2264 = vadd.f32 %v2246, %v1993
  %v2265 = vadd.f32 %v2247, %v1994
  %v2266 = vadd.f32 %v2248, %v1995
  %v2267 = vadd.f32 %v2249, %v1996
  %v2268 = vadd.f32 %v2250, %v1997
  %v2269 = vadd.f32 %v2251, %v1998
  %v2270 = vadd.f32 %v2252, %v1999
  %v2271 = vadd.f32 %v2253, %v2000
  %v2272 = vld [vmem:[%s7] sm:$0xff]
  %v2273 = vld [vmem:[%s7 + $0x8] sm:$0xff]
  %v2274 = vld [vmem:[%s7 + $0x10] sm:$0xff]
  %v2275 = vld [vmem:[%s7 + $0x18] sm:$0xff]
  %v2276 = vld [vmem:[%s7 + $0x20] sm:$0xff]
  %v2277 = vld [vmem:[%s7 + $0x28] sm:$0xff]
  %v2278 = vld [vmem:[%s7 + $0x30] sm:$0xff]
  %v2279 = vld [vmem:[%s7 + $0x38] sm:$0xff]
  %v2280 = vld [vmem:[%s8] sm:$0x3]
  %v2282 = vlaneseq
  %v2283 = vshrl.u32 %v2282, 7
  %v2284 = vsub.s32 0, %v2283
  %v2285 = vrot.slane %v2280, %v2284
  %v2286 = vlaneseq
  %v2287 = vshrl.u32 %v2286, 7
  %v2288 = vsub.s32 1, %v2287
  %v2289 = vrot.slane %v2280, %v2288
  %v2293 = vsel %vm136, %v2254, 0
  %v2296 = vsel %vm136, %v2255, 0
  %v2299 = vsel %vm136, %v2256, 0
  %v2302 = vsel %vm136, %v2257, 0
  %v2305 = vsel %vm136, %v2258, 0
  %v2308 = vsel %vm136, %v2259, 0
  %v2311 = vsel %vm136, %v2260, 0
  %v2314 = vsel %vm136, %v2261, 0
  %v2317 = vsel %vm136, %v2262, 0
  %v2320 = vsel %vm136, %v2263, 0
  %v2323 = vsel %vm136, %v2264, 0
  %v2326 = vsel %vm136, %v2265, 0
  %v2329 = vsel %vm136, %v2266, 0
  %v2332 = vsel %vm136, %v2267, 0
  %v2335 = vsel %vm136, %v2268, 0
  %v2338 = vsel %vm136, %v2269, 0
  %v2341 = vsel %vm136, %v2270, 0
  %v2344 = vsel %vm136, %v2271, 0
  %2346 = vmatprep.subr.mxu0 0.0
  %2347 = vmatpush1.msra.mxu0 0.0
  %2348 = vmatprep.subr.mxu0 0.0
  %2349 = vmatpush1.msra.mxu0 0.0
  %2350 = vmatprep.subr.mxu0 0.0
  %2351 = vmatpush1.msra.mxu0 0.0
  %2352 = vmatprep.subr.mxu0 0.0
  %2353 = vmatpush1.msra.mxu0 0.0
  %2354 = vmatprep.subr.mxu0 0.0
  %2355 = vmatpush1.msra.mxu0 0.0
  %2356 = vmatprep.subr.mxu0 0.0
  %2357 = vmatpush1.msra.mxu0 0.0
  %2358 = vmatprep.subr.mxu0 0.0
  %2359 = vmatpush1.msra.mxu0 0.0
  %2360 = vmatprep.subr.mxu0 0.0
  %2361 = vmatpush1.msra.mxu0 0.0
  %2362 = vmatprep.subr.mxu0 0.0
  %2363 = vmatpush1.msra.mxu0 0.0
  %2364 = vmatprep.subr.mxu0 0.0
  %2365 = vmatpush1.msra.mxu0 0.0
  %2366 = vmatprep.subr.mxu0 0.0
  %2367 = vmatpush1.msra.mxu0 0.0
  %2368 = vmatprep.subr.mxu0 0.0
  %2369 = vmatpush1.msra.mxu0 0.0
  %2370 = vmatprep.subr.mxu0 %v2279
  %2371 = vmatpush1.msra.mxu0 %v2278
  %2372 = vmatprep.subr.mxu0 %v2277
  %2373 = vmatpush1.msra.mxu0 %v2276
  %2374 = vmatprep.subr.mxu0 %v2275
  %2375 = vmatpush1.msra.mxu0 %v2274
  %2376 = vmatprep.subr.mxu0 %v2273
  %2377 = vmatpush1.msra.mxu0 %v2272
  %2378 = vmatprep.subr.mxu0 0.0
  %2379 = vmatpush2.msra.mxu0 0.0
  %2380 = vmatprep.subr.mxu0 0.0
  %2381 = vmatpush2.msra.mxu0 0.0
  %2382 = vmatprep.subr.mxu0 0.0
  %2383 = vmatpush2.msra.mxu0 0.0
  %2384 = vmatprep.subr.mxu0 0.0
  %2385 = vmatpush2.msra.mxu0 0.0
  %2386 = vmatprep.subr.mxu0 0.0
  %2387 = vmatpush2.msra.mxu0 0.0
  %2388 = vmatprep.subr.mxu0 0.0
  %2389 = vmatpush2.msra.mxu0 0.0
  %2390 = vmatprep.subr.mxu0 0.0
  %2391 = vmatpush2.msra.mxu0 0.0
  %2392 = vmatprep.subr.mxu0 0.0
  %2393 = vmatpush2.msra.mxu0 0.0
  %2394 = vmatprep.subr.mxu0 0.0
  %2395 = vmatpush2.msra.mxu0 0.0
  %2396 = vmatprep.subr.mxu0 0.0
  %2397 = vmatpush2.msra.mxu0 0.0
  %2398 = vmatprep.subr.mxu0 0.0
  %2399 = vmatpush2.msra.mxu0 0.0
  %2400 = vmatprep.subr.mxu0 0.0
  %2401 = vmatpush2.msra.mxu0 0.0
  %2402 = vmatprep.subr.mxu0 0.0
  %2403 = vmatpush2.msra.mxu0 0.0
  %2404 = vmatprep.subr.mxu0 0.0
  %2405 = vmatpush2.msra.mxu0 0.0
  %2406 = vmatprep.subr.mxu0 0.0
  %2407 = vmatpush2.msra.mxu0 0.0
  %2408 = vmatprep.subr.mxu0 0.0
  %2409 = vmatpush2.msra.mxu0 0.0
  %2410 = vmatprep.mubr.f32.mxu0 0.0
  %2411 = vmatmul.mubr.f32.gmra.mxu0 %v2293
  %v2412 = vpop.f32.mrf.mxu0
  %v2413 = vadd.f32 %v2285, %v2412
  %v2414 = vpop.f32.mrf.mxu0
  %v2415 = vadd.f32 %v2289, %v2414
  %2416 = vmatprep.mubr.f32.mxu0 0.0
  %2417 = vmatmul.mubr.f32.gmra.mxu0 %v2296
  %v2418 = vpop.f32.mrf.mxu0
  %v2419 = vadd.f32 %v2285, %v2418
  %v2420 = vpop.f32.mrf.mxu0
  %v2421 = vadd.f32 %v2289, %v2420
  %2422 = vmatprep.mubr.f32.mxu0 0.0
  %2423 = vmatmul.mubr.f32.gmra.mxu0 %v2299
  %v2424 = vpop.f32.mrf.mxu0
  %v2425 = vadd.f32 %v2285, %v2424
  %v2426 = vpop.f32.mrf.mxu0
  %v2427 = vadd.f32 %v2289, %v2426
  %2428 = vmatprep.mubr.f32.mxu0 0.0
  %2429 = vmatmul.mubr.f32.gmra.mxu0 %v2302
  %v2430 = vpop.f32.mrf.mxu0
  %v2431 = vadd.f32 %v2285, %v2430
  %v2432 = vpop.f32.mrf.mxu0
  %v2433 = vadd.f32 %v2289, %v2432
  %2434 = vmatprep.mubr.f32.mxu0 0.0
  %2435 = vmatmul.mubr.f32.gmra.mxu0 %v2305
  %v2436 = vpop.f32.mrf.mxu0
  %v2437 = vadd.f32 %v2285, %v2436
  %v2438 = vpop.f32.mrf.mxu0
  %v2439 = vadd.f32 %v2289, %v2438
  %2440 = vmatprep.mubr.f32.mxu0 0.0
  %2441 = vmatmul.mubr.f32.gmra.mxu0 %v2308
  %v2442 = vpop.f32.mrf.mxu0
  %v2443 = vadd.f32 %v2285, %v2442
  %v2444 = vpop.f32.mrf.mxu0
  %v2445 = vadd.f32 %v2289, %v2444
  %2446 = vmatprep.mubr.f32.mxu0 0.0
  %2447 = vmatmul.mubr.f32.gmra.mxu0 %v2311
  %v2448 = vpop.f32.mrf.mxu0
  %v2449 = vadd.f32 %v2285, %v2448
  %v2450 = vpop.f32.mrf.mxu0
  %v2451 = vadd.f32 %v2289, %v2450
  %2452 = vmatprep.mubr.f32.mxu0 0.0
  %2453 = vmatmul.mubr.f32.gmra.mxu0 %v2314
  %v2454 = vpop.f32.mrf.mxu0
  %v2455 = vadd.f32 %v2285, %v2454
  %v2456 = vpop.f32.mrf.mxu0
  %v2457 = vadd.f32 %v2289, %v2456
  %2458 = vmatprep.mubr.f32.mxu0 0.0
  %2459 = vmatmul.mubr.f32.gmra.mxu0 %v2317
  %v2460 = vpop.f32.mrf.mxu0
  %v2461 = vadd.f32 %v2285, %v2460
  %v2462 = vpop.f32.mrf.mxu0
  %v2463 = vadd.f32 %v2289, %v2462
  %2464 = vmatprep.mubr.f32.mxu0 0.0
  %2465 = vmatmul.mubr.f32.gmra.mxu0 %v2320
  %v2466 = vpop.f32.mrf.mxu0
  %v2467 = vadd.f32 %v2285, %v2466
  %v2468 = vpop.f32.mrf.mxu0
  %v2469 = vadd.f32 %v2289, %v2468
  %2470 = vmatprep.mubr.f32.mxu0 0.0
  %2471 = vmatmul.mubr.f32.gmra.mxu0 %v2323
  %v2472 = vpop.f32.mrf.mxu0
  %v2473 = vadd.f32 %v2285, %v2472
  %v2474 = vpop.f32.mrf.mxu0
  %v2475 = vadd.f32 %v2289, %v2474
  %2476 = vmatprep.mubr.f32.mxu0 0.0
  %2477 = vmatmul.mubr.f32.gmra.mxu0 %v2326
  %v2478 = vpop.f32.mrf.mxu0
  %v2479 = vadd.f32 %v2285, %v2478
  %v2480 = vpop.f32.mrf.mxu0
  %v2481 = vadd.f32 %v2289, %v2480
  %2482 = vmatprep.mubr.f32.mxu0 0.0
  %2483 = vmatmul.mubr.f32.gmra.mxu0 %v2329
  %v2484 = vpop.f32.mrf.mxu0
  %v2485 = vadd.f32 %v2285, %v2484
  %v2486 = vpop.f32.mrf.mxu0
  %v2487 = vadd.f32 %v2289, %v2486
  %2488 = vmatprep.mubr.f32.mxu0 0.0
  %2489 = vmatmul.mubr.f32.gmra.mxu0 %v2332
  %v2490 = vpop.f32.mrf.mxu0
  %v2491 = vadd.f32 %v2285, %v2490
  %v2492 = vpop.f32.mrf.mxu0
  %v2493 = vadd.f32 %v2289, %v2492
  %2494 = vmatprep.mubr.f32.mxu0 0.0
  %2495 = vmatmul.mubr.f32.gmra.mxu0 %v2335
  %v2496 = vpop.f32.mrf.mxu0
  %v2497 = vadd.f32 %v2285, %v2496
  %v2498 = vpop.f32.mrf.mxu0
  %v2499 = vadd.f32 %v2289, %v2498
  %2500 = vmatprep.mubr.f32.mxu0 0.0
  %2501 = vmatmul.mubr.f32.gmra.mxu0 %v2338
  %v2502 = vpop.f32.mrf.mxu0
  %v2503 = vadd.f32 %v2285, %v2502
  %v2504 = vpop.f32.mrf.mxu0
  %v2505 = vadd.f32 %v2289, %v2504
  %2506 = vmatprep.mubr.f32.mxu0 0.0
  %2507 = vmatmul.mubr.f32.gmra.mxu0 %v2341
  %v2508 = vpop.f32.mrf.mxu0
  %v2509 = vadd.f32 %v2285, %v2508
  %v2510 = vpop.f32.mrf.mxu0
  %v2511 = vadd.f32 %v2289, %v2510
  %2512 = vmatprep.mubr.f32.mxu0 0.0
  %2513 = vmatmul.mubr.f32.gmra.mxu0 %v2344
  %v2514 = vpop.f32.mrf.mxu0
  %v2515 = vadd.f32 %v2285, %v2514
  %v2516 = vpop.f32.mrf.mxu0
  %v2517 = vadd.f32 %v2289, %v2516
  %2518 = vdwg.mxu0
  %v2519 = vmax.f32 %v2413, 0.0
  %v2520 = vmax.f32 %v2415, 0.0
  %v2521 = vmax.f32 %v2419, 0.0
  %v2522 = vmax.f32 %v2421, 0.0
  %v2523 = vmax.f32 %v2425, 0.0
  %v2524 = vmax.f32 %v2427, 0.0
  %v2525 = vmax.f32 %v2431, 0.0
  %v2526 = vmax.f32 %v2433, 0.0
  %v2527 = vmax.f32 %v2437, 0.0
  %v2528 = vmax.f32 %v2439, 0.0
  %v2529 = vmax.f32 %v2443, 0.0
  %v2530 = vmax.f32 %v2445, 0.0
  %v2531 = vmax.f32 %v2449, 0.0
  %v2532 = vmax.f32 %v2451, 0.0
  %v2533 = vmax.f32 %v2455, 0.0
  %v2534 = vmax.f32 %v2457, 0.0
  %v2535 = vmax.f32 %v2461, 0.0
  %v2536 = vmax.f32 %v2463, 0.0
  %v2537 = vmax.f32 %v2467, 0.0
  %v2538 = vmax.f32 %v2469, 0.0
  %v2539 = vmax.f32 %v2473, 0.0
  %v2540 = vmax.f32 %v2475, 0.0
  %v2541 = vmax.f32 %v2479, 0.0
  %v2542 = vmax.f32 %v2481, 0.0
  %v2543 = vmax.f32 %v2485, 0.0
  %v2544 = vmax.f32 %v2487, 0.0
  %v2545 = vmax.f32 %v2491, 0.0
  %v2546 = vmax.f32 %v2493, 0.0
  %v2547 = vmax.f32 %v2497, 0.0
  %v2548 = vmax.f32 %v2499, 0.0
  %v2549 = vmax.f32 %v2503, 0.0
  %v2550 = vmax.f32 %v2505, 0.0
  %v2551 = vmax.f32 %v2509, 0.0
  %v2552 = vmax.f32 %v2511, 0.0
  %v2553 = vmax.f32 %v2515, 0.0
  %v2554 = vmax.f32 %v2517, 0.0
  %v2555 = vld [vmem:[%s9] sm:$0xff]
  %v2556 = vld [vmem:[%s9 + $0x8] sm:$0xff]
  %v2557 = vld [vmem:[%s9 + $0x10] sm:$0xff]
  %v2558 = vld [vmem:[%s9 + $0x18] sm:$0xff]
  %v2559 = vld [vmem:[%s9 + $0x20] sm:$0xff]
  %v2560 = vld [vmem:[%s9 + $0x28] sm:$0xff]
  %v2561 = vld [vmem:[%s9 + $0x30] sm:$0xff]
  %v2562 = vld [vmem:[%s9 + $0x38] sm:$0xff]
  %v2563 = vld [vmem:[%s9 + $0x40] sm:$0xff]
  %v2564 = vld [vmem:[%s9 + $0x48] sm:$0xff]
  %v2565 = vld [vmem:[%s9 + $0x50] sm:$0xff]
  %v2566 = vld [vmem:[%s9 + $0x58] sm:$0xff]
  %v2567 = vld [vmem:[%s9 + $0x60] sm:$0xff]
  %v2568 = vld [vmem:[%s9 + $0x68] sm:$0xff]
  %v2569 = vld [vmem:[%s9 + $0x70] sm:$0xff]
  %v2570 = vld [vmem:[%s9 + $0x78] sm:$0xff]
  %v2571 = vld [vmem:[%s9 + $0x80] sm:$0xff]
  %v2572 = vld [vmem:[%s9 + $0x88] sm:$0xff]
  %v2573 = vld [vmem:[%s9 + $0x90] sm:$0xff]
  %v2574 = vld [vmem:[%s9 + $0x98] sm:$0xff]
  %v2575 = vld [vmem:[%s9 + $0xa0] sm:$0xff]
  %v2576 = vld [vmem:[%s9 + $0xa8] sm:$0xff]
  %v2577 = vld [vmem:[%s9 + $0xb0] sm:$0xff]
  %v2578 = vld [vmem:[%s9 + $0xb8] sm:$0xff]
  %v2579 = vld [vmem:[%s9 + $0xc0] sm:$0xff]
  %v2580 = vld [vmem:[%s9 + $0xc8] sm:$0xff]
  %v2581 = vld [vmem:[%s9 + $0xd0] sm:$0xff]
  %v2582 = vld [vmem:[%s9 + $0xd8] sm:$0xff]
  %v2583 = vld [vmem:[%s9 + $0xe0] sm:$0xff]
  %v2584 = vld [vmem:[%s9 + $0xe8] sm:$0xff]
  %v2585 = vld [vmem:[%s9 + $0xf0] sm:$0xff]
  %v2586 = vld [vmem:[%s9 + $0xf8] sm:$0xff]
  %v2587 = vld [vmem:[%s10] sm:$0x1]
  %v2589 = vlaneseq
  %v2590 = vshrl.u32 %v2589, 7
  %v2591 = vsub.s32 0, %v2590
  %v2592 = vrot.slane %v2587, %v2591
  %2594 = vmatprep.subr.mxu0 0.0
  %2595 = vmatpush1.msra.mxu0 %v2570
  %2596 = vmatprep.subr.mxu0 0.0
  %2597 = vmatpush1.msra.mxu0 %v2569
  %2598 = vmatprep.subr.mxu0 0.0
  %2599 = vmatpush1.msra.mxu0 %v2568
  %2600 = vmatprep.subr.mxu0 0.0
  %2601 = vmatpush1.msra.mxu0 %v2567
  %2602 = vmatprep.subr.mxu0 0.0
  %2603 = vmatpush1.msra.mxu0 %v2566
  %2604 = vmatprep.subr.mxu0 0.0
  %2605 = vmatpush1.msra.mxu0 %v2565
  %2606 = vmatprep.subr.mxu0 0.0
  %2607 = vmatpush1.msra.mxu0 %v2564
  %2608 = vmatprep.subr.mxu0 0.0
  %2609 = vmatpush1.msra.mxu0 %v2563
  %2610 = vmatprep.subr.mxu0 0.0
  %2611 = vmatpush1.msra.mxu0 %v2562
  %2612 = vmatprep.subr.mxu0 0.0
  %2613 = vmatpush1.msra.mxu0 %v2561
  %2614 = vmatprep.subr.mxu0 0.0
  %2615 = vmatpush1.msra.mxu0 %v2560
  %2616 = vmatprep.subr.mxu0 0.0
  %2617 = vmatpush1.msra.mxu0 %v2559
  %2618 = vmatprep.subr.mxu0 0.0
  %2619 = vmatpush1.msra.mxu0 %v2558
  %2620 = vmatprep.subr.mxu0 0.0
  %2621 = vmatpush1.msra.mxu0 %v2557
  %2622 = vmatprep.subr.mxu0 0.0
  %2623 = vmatpush1.msra.mxu0 %v2556
  %2624 = vmatprep.subr.mxu0 0.0
  %2625 = vmatpush1.msra.mxu0 %v2555
  %2626 = vmatprep.subr.mxu0 0.0
  %2627 = vmatpush2.msra.mxu0 %v2586
  %2628 = vmatprep.subr.mxu0 0.0
  %2629 = vmatpush2.msra.mxu0 %v2585
  %2630 = vmatprep.subr.mxu0 0.0
  %2631 = vmatpush2.msra.mxu0 %v2584
  %2632 = vmatprep.subr.mxu0 0.0
  %2633 = vmatpush2.msra.mxu0 %v2583
  %2634 = vmatprep.subr.mxu0 0.0
  %2635 = vmatpush2.msra.mxu0 %v2582
  %2636 = vmatprep.subr.mxu0 0.0
  %2637 = vmatpush2.msra.mxu0 %v2581
  %2638 = vmatprep.subr.mxu0 0.0
  %2639 = vmatpush2.msra.mxu0 %v2580
  %2640 = vmatprep.subr.mxu0 0.0
  %2641 = vmatpush2.msra.mxu0 %v2579
  %2642 = vmatprep.subr.mxu0 0.0
  %2643 = vmatpush2.msra.mxu0 %v2578
  %2644 = vmatprep.subr.mxu0 0.0
  %2645 = vmatpush2.msra.mxu0 %v2577
  %2646 = vmatprep.subr.mxu0 0.0
  %2647 = vmatpush2.msra.mxu0 %v2576
  %2648 = vmatprep.subr.mxu0 0.0
  %2649 = vmatpush2.msra.mxu0 %v2575
  %2650 = vmatprep.subr.mxu0 0.0
  %2651 = vmatpush2.msra.mxu0 %v2574
  %2652 = vmatprep.subr.mxu0 0.0
  %2653 = vmatpush2.msra.mxu0 %v2573
  %2654 = vmatprep.subr.mxu0 0.0
  %2655 = vmatpush2.msra.mxu0 %v2572
  %2656 = vmatprep.subr.mxu0 0.0
  %2657 = vmatpush2.msra.mxu0 %v2571
  %2658 = vmatprep.mubr.f32.mxu0 %v2520
  %2659 = vmatmul.mubr.f32.gmra.mxu0 %v2519
  %v2660 = vpop.f32.mrf.mxu0
  %v2661 = vadd.f32 %v2592, %v2660
  %v2662 = vpop.f32.mrf.mxu0
  %2663 = vmatprep.mubr.f32.mxu0 %v2522
  %2664 = vmatmul.mubr.f32.gmra.mxu0 %v2521
  %v2665 = vpop.f32.mrf.mxu0
  %v2666 = vadd.f32 %v2592, %v2665
  %v2667 = vpop.f32.mrf.mxu0
  %2668 = vmatprep.mubr.f32.mxu0 %v2524
  %2669 = vmatmul.mubr.f32.gmra.mxu0 %v2523
  %v2670 = vpop.f32.mrf.mxu0
  %v2671 = vadd.f32 %v2592, %v2670
  %v2672 = vpop.f32.mrf.mxu0
  %2673 = vmatprep.mubr.f32.mxu0 %v2526
  %2674 = vmatmul.mubr.f32.gmra.mxu0 %v2525
  %v2675 = vpop.f32.mrf.mxu0
  %v2676 = vadd.f32 %v2592, %v2675
  %v2677 = vpop.f32.mrf.mxu0
  %2678 = vmatprep.mubr.f32.mxu0 %v2528
  %2679 = vmatmul.mubr.f32.gmra.mxu0 %v2527
  %v2680 = vpop.f32.mrf.mxu0
  %v2681 = vadd.f32 %v2592, %v2680
  %v2682 = vpop.f32.mrf.mxu0
  %2683 = vmatprep.mubr.f32.mxu0 %v2530
  %2684 = vmatmul.mubr.f32.gmra.mxu0 %v2529
  %v2685 = vpop.f32.mrf.mxu0
  %v2686 = vadd.f32 %v2592, %v2685
  %v2687 = vpop.f32.mrf.mxu0
  %2688 = vmatprep.mubr.f32.mxu0 %v2532
  %2689 = vmatmul.mubr.f32.gmra.mxu0 %v2531
  %v2690 = vpop.f32.mrf.mxu0
  %v2691 = vadd.f32 %v2592, %v2690
  %v2692 = vpop.f32.mrf.mxu0
  %2693 = vmatprep.mubr.f32.mxu0 %v2534
  %2694 = vmatmul.mubr.f32.gmra.mxu0 %v2533
  %v2695 = vpop.f32.mrf.mxu0
  %v2696 = vadd.f32 %v2592, %v2695
  %v2697 = vpop.f32.mrf.mxu0
  %2698 = vmatprep.mubr.f32.mxu0 %v2536
  %2699 = vmatmul.mubr.f32.gmra.mxu0 %v2535
  %v2700 = vpop.f32.mrf.mxu0
  %v2701 = vadd.f32 %v2592, %v2700
  %v2702 = vpop.f32.mrf.mxu0
  %2703 = vmatprep.mubr.f32.mxu0 %v2538
  %2704 = vmatmul.mubr.f32.gmra.mxu0 %v2537
  %v2705 = vpop.f32.mrf.mxu0
  %v2706 = vadd.f32 %v2592, %v2705
  %v2707 = vpop.f32.mrf.mxu0
  %2708 = vmatprep.mubr.f32.mxu0 %v2540
  %2709 = vmatmul.mubr.f32.gmra.mxu0 %v2539
  %v2710 = vpop.f32.mrf.mxu0
  %v2711 = vadd.f32 %v2592, %v2710
  %v2712 = vpop.f32.mrf.mxu0
  %2713 = vmatprep.mubr.f32.mxu0 %v2542
  %2714 = vmatmul.mubr.f32.gmra.mxu0 %v2541
  %v2715 = vpop.f32.mrf.mxu0
  %v2716 = vadd.f32 %v2592, %v2715
  %v2717 = vpop.f32.mrf.mxu0
  %2718 = vmatprep.mubr.f32.mxu0 %v2544
  %2719 = vmatmul.mubr.f32.gmra.mxu0 %v2543
  %v2720 = vpop.f32.mrf.mxu0
  %v2721 = vadd.f32 %v2592, %v2720
  %v2722 = vpop.f32.mrf.mxu0
  %2723 = vmatprep.mubr.f32.mxu0 %v2546
  %2724 = vmatmul.mubr.f32.gmra.mxu0 %v2545
  %v2725 = vpop.f32.mrf.mxu0
  %v2726 = vadd.f32 %v2592, %v2725
  %v2727 = vpop.f32.mrf.mxu0
  %2728 = vmatprep.mubr.f32.mxu0 %v2548
  %2729 = vmatmul.mubr.f32.gmra.mxu0 %v2547
  %v2730 = vpop.f32.mrf.mxu0
  %v2731 = vadd.f32 %v2592, %v2730
  %v2732 = vpop.f32.mrf.mxu0
  %2733 = vmatprep.mubr.f32.mxu0 %v2550
  %2734 = vmatmul.mubr.f32.gmra.mxu0 %v2549
  %v2735 = vpop.f32.mrf.mxu0
  %v2736 = vadd.f32 %v2592, %v2735
  %v2737 = vpop.f32.mrf.mxu0
  %2738 = vmatprep.mubr.f32.mxu0 %v2552
  %2739 = vmatmul.mubr.f32.gmra.mxu0 %v2551
  %v2740 = vpop.f32.mrf.mxu0
  %v2741 = vadd.f32 %v2592, %v2740
  %v2742 = vpop.f32.mrf.mxu0
  %2743 = vmatprep.mubr.f32.mxu0 %v2554
  %2744 = vmatmul.mubr.f32.gmra.mxu0 %v2553
  %v2745 = vpop.f32.mrf.mxu0
  %v2746 = vadd.f32 %v2592, %v2745
  %v2747 = vpop.f32.mrf.mxu0
  %2748 = vdwg.mxu0
  %2767 = vrot.lane.b32.xlu0 %v2661, 96
  %v2768 = vpop.permute.xlu0 %2767
  %2769 = vrot.lane.b32.xlu0 %v2666, 96
  %v2770 = vpop.permute.xlu0 %2769
  %2771 = vrot.lane.b32.xlu0 %v2671, 96
  %v2772 = vpop.permute.xlu0 %2771
  %2773 = vrot.lane.b32.xlu0 %v2676, 96
  %v2774 = vpop.permute.xlu0 %2773
  %2775 = vrot.lane.b32.xlu0 %v2681, 96
  %v2776 = vpop.permute.xlu0 %2775
  %2777 = vrot.lane.b32.xlu0 %v2686, 96
  %v2778 = vpop.permute.xlu0 %2777
  %2779 = vrot.lane.b32.xlu0 %v2691, 96
  %v2780 = vpop.permute.xlu0 %2779
  %2781 = vrot.lane.b32.xlu0 %v2696, 96
  %v2782 = vpop.permute.xlu0 %2781
  %2783 = vrot.lane.b32.xlu0 %v2701, 96
  %v2784 = vpop.permute.xlu0 %2783
  %2785 = vrot.lane.b32.xlu0 %v2706, 96
  %v2786 = vpop.permute.xlu0 %2785
  %2787 = vrot.lane.b32.xlu0 %v2711, 96
  %v2788 = vpop.permute.xlu0 %2787
  %2789 = vrot.lane.b32.xlu0 %v2716, 96
  %v2790 = vpop.permute.xlu0 %2789
  %2791 = vrot.lane.b32.xlu0 %v2721, 96
  %v2792 = vpop.permute.xlu0 %2791
  %2793 = vrot.lane.b32.xlu0 %v2726, 96
  %v2794 = vpop.permute.xlu0 %2793
  %2795 = vrot.lane.b32.xlu0 %v2731, 96
  %v2796 = vpop.permute.xlu0 %2795
  %2797 = vrot.lane.b32.xlu0 %v2736, 96
  %v2798 = vpop.permute.xlu0 %2797
  %2799 = vrot.lane.b32.xlu0 %v2741, 96
  %v2800 = vpop.permute.xlu0 %2799
  %2801 = vrot.lane.b32.xlu0 %v2746, 96
  %v2802 = vpop.permute.xlu0 %2801
  %v2821 = vsel %vm1919, %v2661, %v2768
  %v2822 = vsel %vm1920, %v2666, %v2770
  %v2823 = vsel %vm1921, %v2671, %v2772
  %v2824 = vsel %vm1922, %v2676, %v2774
  %v2825 = vsel %vm1923, %v2681, %v2776
  %v2826 = vsel %vm1924, %v2686, %v2778
  %v2827 = vsel %vm1925, %v2691, %v2780
  %v2828 = vsel %vm1926, %v2696, %v2782
  %v2829 = vsel %vm1927, %v2701, %v2784
  %v2830 = vsel %vm1928, %v2706, %v2786
  %v2831 = vsel %vm1929, %v2711, %v2788
  %v2832 = vsel %vm1930, %v2716, %v2790
  %v2833 = vsel %vm1931, %v2721, %v2792
  %v2834 = vsel %vm1932, %v2726, %v2794
  %v2835 = vsel %vm1933, %v2731, %v2796
  %v2836 = vsel %vm1934, %v2736, %v2798
  %v2837 = vsel %vm1935, %v2741, %v2800
  %v2838 = vsel %vm1936, %v2746, %v2802
  %v2839 = vadd.f32 %v2254, %v2821
  %v2840 = vadd.f32 %v2255, %v2822
  %v2841 = vadd.f32 %v2256, %v2823
  %v2842 = vadd.f32 %v2257, %v2824
  %v2843 = vadd.f32 %v2258, %v2825
  %v2844 = vadd.f32 %v2259, %v2826
  %v2845 = vadd.f32 %v2260, %v2827
  %v2846 = vadd.f32 %v2261, %v2828
  %v2847 = vadd.f32 %v2262, %v2829
  %v2848 = vadd.f32 %v2263, %v2830
  %v2849 = vadd.f32 %v2264, %v2831
  %v2850 = vadd.f32 %v2265, %v2832
  %v2851 = vadd.f32 %v2266, %v2833
  %v2852 = vadd.f32 %v2267, %v2834
  %v2853 = vadd.f32 %v2268, %v2835
  %v2854 = vadd.f32 %v2269, %v2836
  %v2855 = vadd.f32 %v2270, %v2837
  %v2856 = vadd.f32 %v2271, %v2838
  %s2857 = scalar_lea.vmem %s11, 1
  %v2858 = vld [vmem:[%s2857] sm:$0x1]
  %s2859 = scalar_lea.vmem %s11, 3
  %v2860 = vld [vmem:[%s2859] sm:$0x1]
  %v2862 = vlaneseq
  %v2863 = vshrl.u32 %v2862, 7
  %v2864 = vsub.s32 0, %v2863
  %v2865 = vrot.slane %v2858, %v2864
  %v2868 = vlaneseq
  %v2869 = vshrl.u32 %v2868, 7
  %v2870 = vsub.s32 0, %v2869
  %v2871 = vrot.slane %v2860, %v2870
  %v2873 = vsel %vm1919, %v2865, %v2871
  %v2874 = vsel %vm1920, %v2865, %v2871
  %v2875 = vsel %vm1921, %v2865, %v2871
  %v2876 = vsel %vm1922, %v2865, %v2871
  %v2877 = vsel %vm1923, %v2865, %v2871
  %v2878 = vsel %vm1924, %v2865, %v2871
  %v2879 = vsel %vm1925, %v2865, %v2871
  %v2880 = vsel %vm1926, %v2865, %v2871
  %v2881 = vsel %vm1927, %v2865, %v2871
  %v2882 = vsel %vm1928, %v2865, %v2871
  %v2883 = vsel %vm1929, %v2865, %v2871
  %v2884 = vsel %vm1930, %v2865, %v2871
  %v2885 = vsel %vm1931, %v2865, %v2871
  %v2886 = vsel %vm1932, %v2865, %v2871
  %v2887 = vsel %vm1933, %v2865, %v2871
  %v2888 = vsel %vm1934, %v2865, %v2871
  %v2889 = vsel %vm1935, %v2865, %v2871
  %v2890 = vsel %vm1936, %v2865, %v2871
  %s2891 = scalar_lea.vmem %s11, 5
  %v2892 = vld [vmem:[%s2891] sm:$0x1]
  %s2893 = scalar_lea.vmem %s11, 7
  %v2894 = vld [vmem:[%s2893] sm:$0x1]
  %v2896 = vlaneseq
  %v2897 = vshrl.u32 %v2896, 7
  %v2898 = vsub.s32 0, %v2897
  %v2899 = vrot.slane %v2892, %v2898
  %v2902 = vlaneseq
  %v2903 = vshrl.u32 %v2902, 7
  %v2904 = vsub.s32 0, %v2903
  %v2905 = vrot.slane %v2894, %v2904
  %v2907 = vsel %vm1919, %v2899, %v2905
  %v2908 = vsel %vm1920, %v2899, %v2905
  %v2909 = vsel %vm1921, %v2899, %v2905
  %v2910 = vsel %vm1922, %v2899, %v2905
  %v2911 = vsel %vm1923, %v2899, %v2905
  %v2912 = vsel %vm1924, %v2899, %v2905
  %v2913 = vsel %vm1925, %v2899, %v2905
  %v2914 = vsel %vm1926, %v2899, %v2905
  %v2915 = vsel %vm1927, %v2899, %v2905
  %v2916 = vsel %vm1928, %v2899, %v2905
  %v2917 = vsel %vm1929, %v2899, %v2905
  %v2918 = vsel %vm1930, %v2899, %v2905
  %v2919 = vsel %vm1931, %v2899, %v2905
  %v2920 = vsel %vm1932, %v2899, %v2905
  %v2921 = vsel %vm1933, %v2899, %v2905
  %v2922 = vsel %vm1934, %v2899, %v2905
  %v2923 = vsel %vm1935, %v2899, %v2905
  %v2924 = vsel %vm1936, %v2899, %v2905
  %v2925 = vsel %vm136, %v2839, 0.0
  %2926 = vadd.xlane.f32.xlu0 %v2925
  %v2927 = vpop.xlane.xlu0 %2926
  %v2928 = vsel %vm136, %v2840, 0.0
  %2929 = vadd.xlane.f32.xlu0 %v2928
  %v2930 = vpop.xlane.xlu0 %2929
  %v2931 = vsel %vm136, %v2841, 0.0
  %2932 = vadd.xlane.f32.xlu0 %v2931
  %v2933 = vpop.xlane.xlu0 %2932
  %v2934 = vsel %vm136, %v2842, 0.0
  %2935 = vadd.xlane.f32.xlu0 %v2934
  %v2936 = vpop.xlane.xlu0 %2935
  %v2937 = vsel %vm136, %v2843, 0.0
  %2938 = vadd.xlane.f32.xlu0 %v2937
  %v2939 = vpop.xlane.xlu0 %2938
  %v2940 = vsel %vm136, %v2844, 0.0
  %2941 = vadd.xlane.f32.xlu0 %v2940
  %v2942 = vpop.xlane.xlu0 %2941
  %v2943 = vsel %vm136, %v2845, 0.0
  %2944 = vadd.xlane.f32.xlu0 %v2943
  %v2945 = vpop.xlane.xlu0 %2944
  %v2946 = vsel %vm136, %v2846, 0.0
  %2947 = vadd.xlane.f32.xlu0 %v2946
  %v2948 = vpop.xlane.xlu0 %2947
  %v2949 = vsel %vm136, %v2847, 0.0
  %2950 = vadd.xlane.f32.xlu0 %v2949
  %v2951 = vpop.xlane.xlu0 %2950
  %v2952 = vsel %vm136, %v2848, 0.0
  %2953 = vadd.xlane.f32.xlu0 %v2952
  %v2954 = vpop.xlane.xlu0 %2953
  %v2955 = vsel %vm136, %v2849, 0.0
  %2956 = vadd.xlane.f32.xlu0 %v2955
  %v2957 = vpop.xlane.xlu0 %2956
  %v2958 = vsel %vm136, %v2850, 0.0
  %2959 = vadd.xlane.f32.xlu0 %v2958
  %v2960 = vpop.xlane.xlu0 %2959
  %v2961 = vsel %vm136, %v2851, 0.0
  %2962 = vadd.xlane.f32.xlu0 %v2961
  %v2963 = vpop.xlane.xlu0 %2962
  %v2964 = vsel %vm136, %v2852, 0.0
  %2965 = vadd.xlane.f32.xlu0 %v2964
  %v2966 = vpop.xlane.xlu0 %2965
  %v2967 = vsel %vm136, %v2853, 0.0
  %2968 = vadd.xlane.f32.xlu0 %v2967
  %v2969 = vpop.xlane.xlu0 %2968
  %v2970 = vsel %vm136, %v2854, 0.0
  %2971 = vadd.xlane.f32.xlu0 %v2970
  %v2972 = vpop.xlane.xlu0 %2971
  %v2973 = vsel %vm136, %v2855, 0.0
  %2974 = vadd.xlane.f32.xlu0 %v2973
  %v2975 = vpop.xlane.xlu0 %2974
  %v2976 = vsel %vm136, %v2856, 0.0
  %2977 = vadd.xlane.f32.xlu0 %v2976
  %v2978 = vpop.xlane.xlu0 %2977
  %v2979 = vmul.f32 %v2927, %v2055
  %v2980 = vmul.f32 %v2930, %v2055
  %v2981 = vmul.f32 %v2933, %v2055
  %v2982 = vmul.f32 %v2936, %v2055
  %v2983 = vmul.f32 %v2939, %v2055
  %v2984 = vmul.f32 %v2942, %v2055
  %v2985 = vmul.f32 %v2945, %v2055
  %v2986 = vmul.f32 %v2948, %v2055
  %v2987 = vmul.f32 %v2951, %v2055
  %v2988 = vmul.f32 %v2954, %v2055
  %v2989 = vmul.f32 %v2957, %v2055
  %v2990 = vmul.f32 %v2960, %v2055
  %v2991 = vmul.f32 %v2963, %v2055
  %v2992 = vmul.f32 %v2966, %v2055
  %v2993 = vmul.f32 %v2969, %v2055
  %v2994 = vmul.f32 %v2972, %v2055
  %v2995 = vmul.f32 %v2975, %v2055
  %v2996 = vmul.f32 %v2978, %v2055
  %v2997 = vsub.f32 %v2839, %v2979
  %v2998 = vsub.f32 %v2840, %v2980
  %v2999 = vsub.f32 %v2841, %v2981
  %v3000 = vsub.f32 %v2842, %v2982
  %v3001 = vsub.f32 %v2843, %v2983
  %v3002 = vsub.f32 %v2844, %v2984
  %v3003 = vsub.f32 %v2845, %v2985
  %v3004 = vsub.f32 %v2846, %v2986
  %v3005 = vsub.f32 %v2847, %v2987
  %v3006 = vsub.f32 %v2848, %v2988
  %v3007 = vsub.f32 %v2849, %v2989
  %v3008 = vsub.f32 %v2850, %v2990
  %v3009 = vsub.f32 %v2851, %v2991
  %v3010 = vsub.f32 %v2852, %v2992
  %v3011 = vsub.f32 %v2853, %v2993
  %v3012 = vsub.f32 %v2854, %v2994
  %v3013 = vsub.f32 %v2855, %v2995
  %v3014 = vsub.f32 %v2856, %v2996
  %v3015 = vmul.f32 %v2997, %v2997
  %v3016 = vmul.f32 %v2998, %v2998
  %v3017 = vmul.f32 %v2999, %v2999
  %v3018 = vmul.f32 %v3000, %v3000
  %v3019 = vmul.f32 %v3001, %v3001
  %v3020 = vmul.f32 %v3002, %v3002
  %v3021 = vmul.f32 %v3003, %v3003
  %v3022 = vmul.f32 %v3004, %v3004
  %v3023 = vmul.f32 %v3005, %v3005
  %v3024 = vmul.f32 %v3006, %v3006
  %v3025 = vmul.f32 %v3007, %v3007
  %v3026 = vmul.f32 %v3008, %v3008
  %v3027 = vmul.f32 %v3009, %v3009
  %v3028 = vmul.f32 %v3010, %v3010
  %v3029 = vmul.f32 %v3011, %v3011
  %v3030 = vmul.f32 %v3012, %v3012
  %v3031 = vmul.f32 %v3013, %v3013
  %v3032 = vmul.f32 %v3014, %v3014
  %v3033 = vsel %vm136, %v3015, 0.0
  %3034 = vadd.xlane.f32.xlu0 %v3033
  %v3035 = vpop.xlane.xlu0 %3034
  %v3036 = vsel %vm136, %v3016, 0.0
  %3037 = vadd.xlane.f32.xlu0 %v3036
  %v3038 = vpop.xlane.xlu0 %3037
  %v3039 = vsel %vm136, %v3017, 0.0
  %3040 = vadd.xlane.f32.xlu0 %v3039
  %v3041 = vpop.xlane.xlu0 %3040
  %v3042 = vsel %vm136, %v3018, 0.0
  %3043 = vadd.xlane.f32.xlu0 %v3042
  %v3044 = vpop.xlane.xlu0 %3043
  %v3045 = vsel %vm136, %v3019, 0.0
  %3046 = vadd.xlane.f32.xlu0 %v3045
  %v3047 = vpop.xlane.xlu0 %3046
  %v3048 = vsel %vm136, %v3020, 0.0
  %3049 = vadd.xlane.f32.xlu0 %v3048
  %v3050 = vpop.xlane.xlu0 %3049
  %v3051 = vsel %vm136, %v3021, 0.0
  %3052 = vadd.xlane.f32.xlu0 %v3051
  %v3053 = vpop.xlane.xlu0 %3052
  %v3054 = vsel %vm136, %v3022, 0.0
  %3055 = vadd.xlane.f32.xlu0 %v3054
  %v3056 = vpop.xlane.xlu0 %3055
  %v3057 = vsel %vm136, %v3023, 0.0
  %3058 = vadd.xlane.f32.xlu0 %v3057
  %v3059 = vpop.xlane.xlu0 %3058
  %v3060 = vsel %vm136, %v3024, 0.0
  %3061 = vadd.xlane.f32.xlu0 %v3060
  %v3062 = vpop.xlane.xlu0 %3061
  %v3063 = vsel %vm136, %v3025, 0.0
  %3064 = vadd.xlane.f32.xlu0 %v3063
  %v3065 = vpop.xlane.xlu0 %3064
  %v3066 = vsel %vm136, %v3026, 0.0
  %3067 = vadd.xlane.f32.xlu0 %v3066
  %v3068 = vpop.xlane.xlu0 %3067
  %v3069 = vsel %vm136, %v3027, 0.0
  %3070 = vadd.xlane.f32.xlu0 %v3069
  %v3071 = vpop.xlane.xlu0 %3070
  %v3072 = vsel %vm136, %v3028, 0.0
  %3073 = vadd.xlane.f32.xlu0 %v3072
  %v3074 = vpop.xlane.xlu0 %3073
  %v3075 = vsel %vm136, %v3029, 0.0
  %3076 = vadd.xlane.f32.xlu0 %v3075
  %v3077 = vpop.xlane.xlu0 %3076
  %v3078 = vsel %vm136, %v3030, 0.0
  %3079 = vadd.xlane.f32.xlu0 %v3078
  %v3080 = vpop.xlane.xlu0 %3079
  %v3081 = vsel %vm136, %v3031, 0.0
  %3082 = vadd.xlane.f32.xlu0 %v3081
  %v3083 = vpop.xlane.xlu0 %3082
  %v3084 = vsel %vm136, %v3032, 0.0
  %3085 = vadd.xlane.f32.xlu0 %v3084
  %v3086 = vpop.xlane.xlu0 %3085
  %v3087 = vmul.f32 %v3035, %v2055
  %v3088 = vmul.f32 %v3038, %v2055
  %v3089 = vmul.f32 %v3041, %v2055
  %v3090 = vmul.f32 %v3044, %v2055
  %v3091 = vmul.f32 %v3047, %v2055
  %v3092 = vmul.f32 %v3050, %v2055
  %v3093 = vmul.f32 %v3053, %v2055
  %v3094 = vmul.f32 %v3056, %v2055
  %v3095 = vmul.f32 %v3059, %v2055
  %v3096 = vmul.f32 %v3062, %v2055
  %v3097 = vmul.f32 %v3065, %v2055
  %v3098 = vmul.f32 %v3068, %v2055
  %v3099 = vmul.f32 %v3071, %v2055
  %v3100 = vmul.f32 %v3074, %v2055
  %v3101 = vmul.f32 %v3077, %v2055
  %v3102 = vmul.f32 %v3080, %v2055
  %v3103 = vmul.f32 %v3083, %v2055
  %v3104 = vmul.f32 %v3086, %v2055
  %v3105 = vadd.f32 %v3087, 1e-05
  %v3106 = vadd.f32 %v3088, 1e-05
  %v3107 = vadd.f32 %v3089, 1e-05
  %v3108 = vadd.f32 %v3090, 1e-05
  %v3109 = vadd.f32 %v3091, 1e-05
  %v3110 = vadd.f32 %v3092, 1e-05
  %v3111 = vadd.f32 %v3093, 1e-05
  %v3112 = vadd.f32 %v3094, 1e-05
  %v3113 = vadd.f32 %v3095, 1e-05
  %v3114 = vadd.f32 %v3096, 1e-05
  %v3115 = vadd.f32 %v3097, 1e-05
  %v3116 = vadd.f32 %v3098, 1e-05
  %v3117 = vadd.f32 %v3099, 1e-05
  %v3118 = vadd.f32 %v3100, 1e-05
  %v3119 = vadd.f32 %v3101, 1e-05
  %v3120 = vadd.f32 %v3102, 1e-05
  %v3121 = vadd.f32 %v3103, 1e-05
  %v3122 = vadd.f32 %v3104, 1e-05
  %v3123 = vrsqrt.pop %v3105
  %v3124 = vrsqrt.pop %v3106
  %v3125 = vrsqrt.pop %v3107
  %v3126 = vrsqrt.pop %v3108
  %v3127 = vrsqrt.pop %v3109
  %v3128 = vrsqrt.pop %v3110
  %v3129 = vrsqrt.pop %v3111
  %v3130 = vrsqrt.pop %v3112
  %v3131 = vrsqrt.pop %v3113
  %v3132 = vrsqrt.pop %v3114
  %v3133 = vrsqrt.pop %v3115
  %v3134 = vrsqrt.pop %v3116
  %v3135 = vrsqrt.pop %v3117
  %v3136 = vrsqrt.pop %v3118
  %v3137 = vrsqrt.pop %v3119
  %v3138 = vrsqrt.pop %v3120
  %v3139 = vrsqrt.pop %v3121
  %v3140 = vrsqrt.pop %v3122
  %v3141 = vmul.f32 %v2997, %v3123
  %v3142 = vmul.f32 %v2998, %v3124
  %v3143 = vmul.f32 %v2999, %v3125
  %v3144 = vmul.f32 %v3000, %v3126
  %v3145 = vmul.f32 %v3001, %v3127
  %v3146 = vmul.f32 %v3002, %v3128
  %v3147 = vmul.f32 %v3003, %v3129
  %v3148 = vmul.f32 %v3004, %v3130
  %v3149 = vmul.f32 %v3005, %v3131
  %v3150 = vmul.f32 %v3006, %v3132
  %v3151 = vmul.f32 %v3007, %v3133
  %v3152 = vmul.f32 %v3008, %v3134
  %v3153 = vmul.f32 %v3009, %v3135
  %v3154 = vmul.f32 %v3010, %v3136
  %v3155 = vmul.f32 %v3011, %v3137
  %v3156 = vmul.f32 %v3012, %v3138
  %v3157 = vmul.f32 %v3013, %v3139
  %v3158 = vmul.f32 %v3014, %v3140
  %v3159 = vmul.f32 %v3141, %v2873
  %v3160 = vmul.f32 %v3142, %v2874
  %v3161 = vmul.f32 %v3143, %v2875
  %v3162 = vmul.f32 %v3144, %v2876
  %v3163 = vmul.f32 %v3145, %v2877
  %v3164 = vmul.f32 %v3146, %v2878
  %v3165 = vmul.f32 %v3147, %v2879
  %v3166 = vmul.f32 %v3148, %v2880
  %v3167 = vmul.f32 %v3149, %v2881
  %v3168 = vmul.f32 %v3150, %v2882
  %v3169 = vmul.f32 %v3151, %v2883
  %v3170 = vmul.f32 %v3152, %v2884
  %v3171 = vmul.f32 %v3153, %v2885
  %v3172 = vmul.f32 %v3154, %v2886
  %v3173 = vmul.f32 %v3155, %v2887
  %v3174 = vmul.f32 %v3156, %v2888
  %v3175 = vmul.f32 %v3157, %v2889
  %v3176 = vmul.f32 %v3158, %v2890
  %v3177 = vadd.f32 %v3159, %v2907
  %v3178 = vadd.f32 %v3160, %v2908
  %v3179 = vadd.f32 %v3161, %v2909
  %v3180 = vadd.f32 %v3162, %v2910
  %v3181 = vadd.f32 %v3163, %v2911
  %v3182 = vadd.f32 %v3164, %v2912
  %v3183 = vadd.f32 %v3165, %v2913
  %v3184 = vadd.f32 %v3166, %v2914
  %v3185 = vadd.f32 %v3167, %v2915
  %v3186 = vadd.f32 %v3168, %v2916
  %v3187 = vadd.f32 %v3169, %v2917
  %v3188 = vadd.f32 %v3170, %v2918
  %v3189 = vadd.f32 %v3171, %v2919
  %v3190 = vadd.f32 %v3172, %v2920
  %v3191 = vadd.f32 %v3173, %v2921
  %v3192 = vadd.f32 %v3174, %v2922
  %v3193 = vadd.f32 %v3175, %v2923
  %v3194 = vadd.f32 %v3176, %v2924
  %3195 = vst.msk [vmem:[%s12] sm:$0xff] %vm136, %v3177
  %3196 = vst.msk [vmem:[%s12 + $0x8] sm:$0xff] %vm136, %v3178
  %3197 = vst.msk [vmem:[%s12 + $0x10] sm:$0xff] %vm136, %v3179
  %3198 = vst.msk [vmem:[%s12 + $0x18] sm:$0xff] %vm136, %v3180
  %3199 = vst.msk [vmem:[%s12 + $0x20] sm:$0xff] %vm136, %v3181
  %3200 = vst.msk [vmem:[%s12 + $0x28] sm:$0xff] %vm136, %v3182
  %3201 = vst.msk [vmem:[%s12 + $0x30] sm:$0xff] %vm136, %v3183
  %3202 = vst.msk [vmem:[%s12 + $0x38] sm:$0xff] %vm136, %v3184
  %3203 = vst.msk [vmem:[%s12 + $0x40] sm:$0xff] %vm136, %v3185
  %3204 = vst.msk [vmem:[%s12 + $0x48] sm:$0xff] %vm136, %v3186
  %3205 = vst.msk [vmem:[%s12 + $0x50] sm:$0xff] %vm136, %v3187
  %3206 = vst.msk [vmem:[%s12 + $0x58] sm:$0xff] %vm136, %v3188
  %3207 = vst.msk [vmem:[%s12 + $0x60] sm:$0xff] %vm136, %v3189
  %3208 = vst.msk [vmem:[%s12 + $0x68] sm:$0xff] %vm136, %v3190
  %3209 = vst.msk [vmem:[%s12 + $0x70] sm:$0xff] %vm136, %v3191
  %3210 = vst.msk [vmem:[%s12 + $0x78] sm:$0xff] %vm136, %v3192
  %3211 = vst.msk [vmem:[%s12 + $0x80] sm:$0xff] %vm136, %v3193
  %3212 = vst.msk [vmem:[%s12 + $0x88] sm:$0xff] %vm136, %v3194
  // Predicated region
  $region50: #{tpu_custom_call.1} parent=0 // pred_check
    _
  $region51: #{tpu_custom_call.1} parent=0 // pred_check_branch
    %3214 = sbr.rel (0) target = $region53
  $region52: #{tpu_custom_call.1} parent=0 // pred_region
    _
  $region53: #{tpu_custom_call.1} parent=0 // pred_fallthru
    _
  // Predicated region
  $region54: #{tpu_custom_call.1} parent=0 // pred_check
    _
  $region55: #{tpu_custom_call.1} parent=0 // pred_check_branch
    %3216 = sbr.rel (0) target = $region57
  $region56: #{tpu_custom_call.1} parent=0 // pred_region
    _
  $region57: #{tpu_custom_call.1} parent=0 // pred_fallthru
    _

</llo_original>
